<compile_context>
chip_gen: v7x
topology: tpu7x:2x2x1
jax: 0.10.0
libtpu: 0.0.40
codegen_flags: <defaults>
</compile_context>

<pallas_src>
import copy
import functools

import jax
import jax.numpy as jnp
from jax.experimental import pallas as pl
from jax.experimental.pallas import tpu as pltpu


# ----------------------------------------------------------------------------
# Static geometry / packed-parameter layout (pure Python, no tracing)
# ----------------------------------------------------------------------------
_K = (8, 4, 3)          # conv kernel sizes
_S = (4, 2, 1)          # conv strides
_W_ORDER = ("c1", "c2", "c3", "fc", "m1", "m2", "m3", "m4", "out")


def outputSize(in_size, kernel_size, stride, padding):
    conv_size = copy.deepcopy(in_size)
    for i in range(len(kernel_size)):
        conv_size[0] = int((conv_size[0] - kernel_size[i] + 2 * padding[i]) / stride[i]) + 1
        conv_size[1] = int((conv_size[1] - kernel_size[i] + 2 * padding[i]) / stride[i]) + 1
    return conv_size


def _round_up(x, m):
    return (x + m - 1) // m * m


def _layer_dims(sens2_shape, num_outputs):
    c1out, c2out, c3out = 32, 64, 64
    return {
        "c1": (_K[0] * _K[0] * 3, c1out),
        "c2": (_K[1] * _K[1] * c1out, c2out),
        "c3": (_K[2] * _K[2] * c2out, c3out),
        "fc": (c3out, num_outputs),                     # conv3 spatial out is 1x1
        "m1": (sens2_shape, sens2_shape * 5),
        "m2": (sens2_shape * 5, (num_outputs + sens2_shape) * 5),
        "m3": ((num_outputs + sens2_shape) * 5, num_outputs * 5),
        "m4": (num_outputs * 5, num_outputs),
        "out": (2 * num_outputs, num_outputs),
    }


def _pack_layout(dims):
    """Row offsets (16-aligned for bf16 sublane packing) for the weight pack,
    and row indices for the bias pack."""
    wcols = max(d for _, d in dims.values())
    wseg, off = {}, 0
    for name in _W_ORDER:
        din, dout = dims[name]
        wseg[name] = (off, din, dout)
        off = _round_up(off + din, 16)
    wrows = _round_up(off, 16)
    bcols = _round_up(max(d for _, d in dims.values()), 128)
    bseg = {name: (i, dims[name][1]) for i, name in enumerate(_W_ORDER)}
    return wseg, wrows, wcols, bseg, len(_W_ORDER), bcols


# ----------------------------------------------------------------------------
# Fused forward kernel (everything after conv1 patch extraction)
# ----------------------------------------------------------------------------
def _fused_forward_kernel(
        p1_ref, s2_ref, wp_ref, bp_ref,          # inputs  (VMEM)
        mu_ref,                                   # output  (VMEM)
        y1_ref, p2_ref, y2_ref, x3_ref,           # scratch (VMEM)
        *, batch, n_out, oh1, ow1, c1out, k2, st2, oh2, ow2, c2out,
        wseg, bseg):
    B = batch

    def weight(name):                              # bf16 (din, dout)
        off, din, dout = wseg[name]
        return wp_ref[off:off + din, 0:dout]

    def bias(name):                                # f32 (1, dout)
        i, dout = bseg[name]
        return bp_ref[i:i + 1, 0:dout]

    def mm(a, b):
        # bf16 MXU operands (full rate on v5e/v6e/v7x), f32 accumulation.
        return jnp.dot(a.astype(jnp.bfloat16), b,
                       preferred_element_type=jnp.float32)

    def relu(x):
        return jnp.maximum(x, 0.0)

    # --- conv1: fused (x - 127)/255 preprocess (f32 on the VPU) + matmul ----
    # p1/y1 rows are (b, oh1, ow1') with ow1' grouped by parity (iw % st2).
    x = (p1_ref[...].astype(jnp.float32) - 127.0) * (1.0 / 255.0)
    y1_ref[...] = relu(mm(x, weight("c1")) + bias("c1"))       # (B*OH1*OW1, 32)

    # --- conv2: in-VMEM im2col + ONE (B*OH2*OW2, 512)@(512, 64) matmul ------
    # Thanks to the parity-grouped ow1 ordering, the OW2 output columns of a
    # given tap (kh, kw) read OW2 consecutive y1 rows -> contiguous copies.
    half = ow1 // st2
    for b in range(B):
        for ph in range(oh2):
            dst = (b * oh2 + ph) * ow2
            for kh in range(k2):
                band = b * oh1 * ow1 + (st2 * ph + kh) * ow1
                for kw in range(k2):
                    src = band + (kw % st2) * half + kw // st2
                    col = (kh * k2 + kw) * c1out
                    p2_ref[dst:dst + ow2, col:col + c1out] = \
                        y1_ref[src:src + ow2, :]
    y2_ref[...] = relu(mm(p2_ref[...], weight("c2")) + bias("c2"))   # (B*9, 64)

    # --- conv3 (1x1 spatial output): flatten to (B, 9*64), one matmul -------
    npos = oh2 * ow2
    for b in range(B):
        for j in range(npos):
            x3_ref[b:b + 1, j * c2out:(j + 1) * c2out] = \
                y2_ref[b * npos + j:b * npos + j + 1, :]
    y3 = relu(mm(x3_ref[...], weight("c3")) + bias("c3"))            # (B, 64)
    x1 = relu(mm(y3, weight("fc")) + bias("fc"))                     # (B, n_out)

    # --- actorMLP on sensor 2 (torch module has ReLU on its last layer) -----
    h = relu(mm(s2_ref[...], weight("m1")) + bias("m1"))
    h = relu(mm(h, weight("m2")) + bias("m2"))
    h = relu(mm(h, weight("m3")) + bias("m3"))
    x2 = relu(mm(h, weight("m4")) + bias("m4"))                      # (B, n_out)

    # --- late fusion head: cat([x1, x2]) @ W == x1 @ W[:n] + x2 @ W[n:] -----
    o_off, _, _ = wseg["out"]
    w_img = wp_ref[o_off:o_off + n_out, 0:n_out]
    w_sen = wp_ref[o_off + n_out:o_off + 2 * n_out, 0:n_out]
    mu_ref[...] = jnp.tanh(mm(x1, w_img) + mm(x2, w_sen) + bias("out"))


# ----------------------------------------------------------------------------
# conv1 im2col on the raw input (XLA glue; rows (b, oh1, ow1'), bf16 output)
# ----------------------------------------------------------------------------
def _conv1_patches(image, k, s, ow_perm):
    B, H, W, C = image.shape
    OH = (H - k) // s + 1
    OW = (W - k) // s + 1
    cols = []
    for kh in range(k):
        for kw in range(k):
            cols.append(image[:, kh:kh + OH * s:s, kw:kw + OW * s:s, :])
    p = jnp.stack(cols, axis=3)                       # (B, OH, OW, k*k, C)
    p = p.reshape(B, OH, OW, k * k * C)
    p = jnp.take(p, jnp.asarray(ow_perm, jnp.int32), axis=2)   # parity-grouped
    return p.reshape(B * OH * OW, k * k * C).astype(jnp.bfloat16)


# ----------------------------------------------------------------------------
# One-time parameter packing (outside jit): 2 buffers instead of 20 inputs
# ----------------------------------------------------------------------------
def prepare_params(params, sens2_shape, num_outputs):
    dims = _layer_dims(sens2_shape, num_outputs)
    wseg, wrows, wcols, bseg, brows, bcols = _pack_layout(dims)
    w2d = {
        "c1": params["c1_w"].reshape(dims["c1"]),
        "c2": params["c2_w"].reshape(dims["c2"]),
        "c3": params["c3_w"].reshape(dims["c3"]),
        "fc": params["fc_w"], "m1": params["m1_w"], "m2": params["m2_w"],
        "m3": params["m3_w"], "m4": params["m4_w"], "out": params["out_w"],
    }
    b1d = {
        "c1": params["c1_b"], "c2": params["c2_b"], "c3": params["c3_b"],
        "fc": params["fc_b"], "m1": params["m1_b"], "m2": params["m2_b"],
        "m3": params["m3_b"], "m4": params["m4_b"], "out": params["out_b"],
    }
    wp = jnp.zeros((wrows, wcols), jnp.bfloat16)
    bp = jnp.zeros((brows, bcols), jnp.float32)
    for name in _W_ORDER:
        off, din, dout = wseg[name]
        wp = wp.at[off:off + din, :dout].set(w2d[name].astype(jnp.bfloat16))
        i, _ = bseg[name]
        bp = bp.at[i, :dout].set(b1d[name].reshape(-1).astype(jnp.float32))
    return wp, bp


# ----------------------------------------------------------------------------
# Forward builder (actor branch: returns mu) — one pallas_call per forward
# ----------------------------------------------------------------------------
def make_forward(image_shape, sens2_shape, num_outputs):
    dims = _layer_dims(sens2_shape, num_outputs)
    wseg, wrows, wcols, bseg, brows, bcols = _pack_layout(dims)

    H, W = image_shape
    OH1, OW1 = (H - _K[0]) // _S[0] + 1, (W - _K[0]) // _S[0] + 1
    OH2, OW2 = (OH1 - _K[1]) // _S[1] + 1, (OW1 - _K[1]) // _S[1] + 1
    OH3, OW3 = (OH2 - _K[2]) // _S[2] + 1, (OW2 - _K[2]) // _S[2] + 1
    assert OH3 == 1 and OW3 == 1, (OH3, OW3)           # flatten-order + conv3-as-matmul
    assert OW1 % _S[1] == 0, (OW1, _S[1])              # parity trick requirement
    c1out, c2out = dims["c1"][1], dims["c2"][1]

    # ow1 permutation: group columns by residue mod conv2 stride so conv2
    # im2col taps become contiguous row blocks of the conv1 output.
    ow_perm = tuple(iw for r in range(_S[1]) for iw in range(r, OW1, _S[1]))

    def forward(wp, bp, image, sens2):
        B = image.shape[0]
        patches = _conv1_patches(image, _K[0], _S[0], ow_perm)   # (B*OH1*OW1, 192) bf16

        kern = functools.partial(
            _fused_forward_kernel, batch=B, n_out=num_outputs,
            oh1=OH1, ow1=OW1, c1out=c1out, k2=_K[1], st2=_S[1],
            oh2=OH2, ow2=OW2, c2out=c2out, wseg=wseg, bseg=bseg)

        mm_rows = {"c1": B * OH1 * OW1, "c2": B * OH2 * OW2, "c3": B, "fc": B,
                   "m1": B, "m2": B, "m3": B, "m4": B, "out": B}
        flops = 2 * sum(mm_rows[n] * dims[n][0] * dims[n][1] for n in _W_ORDER)
        bytes_accessed = (patches.size * 2 + sens2.size * 4
                          + wrows * wcols * 2 + brows * bcols * 4
                          + B * num_outputs * 4)
        cost = pl.CostEstimate(flops=int(flops),
                               transcendentals=int(B * num_outputs),
                               bytes_accessed=int(bytes_accessed))

        return pl.pallas_call(
            kern,
            out_shape=jax.ShapeDtypeStruct((B, num_outputs), jnp.float32),
            in_specs=[pl.BlockSpec(memory_space=pltpu.MemorySpace.VMEM)] * 4,
            out_specs=pl.BlockSpec(memory_space=pltpu.MemorySpace.VMEM),
            scratch_shapes=[
                pltpu.VMEM((B * OH1 * OW1, c1out), jnp.float32),                 # y1
                pltpu.VMEM((B * OH2 * OW2, _K[1] * _K[1] * c1out), jnp.float32),  # im2col
                pltpu.VMEM((B * OH2 * OW2, c2out), jnp.float32),                 # y2
                pltpu.VMEM((B, OH2 * OW2 * c2out), jnp.float32),                 # conv3 in
            ],
            cost_estimate=cost,
        )(patches, sens2, wp, bp)

    return jax.jit(forward)


# ----------------------------------------------------------------------------
# Parameter init (deterministic; mirrors init_weights shapes/scheme)
# ----------------------------------------------------------------------------
def _conv_init(key, k, cin, cout):
    # xavier_normal_: std = sqrt(2 / (fan_in + fan_out))
    std = (2.0 / (cin * k * k + cout * k * k)) ** 0.5
    w = jax.random.normal(key, (k, k, cin, cout), jnp.float32) * std
    b = jnp.zeros((1, cout), jnp.float32)
    return w, b


def _lin_init(key, din, dout):
    # nn.init.normal_(w, 0, 0.1), bias = 0.1.  Stored as (in, out).
    w = jax.random.normal(key, (din, dout), jnp.float32) * 0.1
    b = jnp.full((1, dout), 0.1, jnp.float32)
    return w, b


def init_params(key, image_shape, sens2_shape, num_outputs):
    fc = outputSize(list(image_shape), list(_K), list(_S), [0, 0, 0])
    keys = jax.random.split(key, 9)
    p = {}
    p["c1_w"], p["c1_b"] = _conv_init(keys[0], 8, 3, 32)
    p["c2_w"], p["c2_b"] = _conv_init(keys[1], 4, 32, 64)
    p["c3_w"], p["c3_b"] = _conv_init(keys[2], 3, 64, 64)
    p["fc_w"], p["fc_b"] = _lin_init(keys[3], fc[0] * fc[1] * 64, num_outputs)
    p["m1_w"], p["m1_b"] = _lin_init(keys[4], sens2_shape, sens2_shape * 5)
    p["m2_w"], p["m2_b"] = _lin_init(keys[5], sens2_shape * 5,
                                     (num_outputs + sens2_shape) * 5)
    p["m3_w"], p["m3_b"] = _lin_init(keys[6], (num_outputs + sens2_shape) * 5,
                                     num_outputs * 5)
    p["m4_w"], p["m4_b"] = _lin_init(keys[7], num_outputs * 5, num_outputs)
    p["out_w"], p["out_b"] = _lin_init(keys[8], num_outputs * 2, num_outputs)
    return p


if __name__ == "__main__":
    key = jax.random.PRNGKey(0)
    k_img, k_sens, k_par = jax.random.split(key, 3)

    B = 2
    image_shape = [36, 36]      # -> conv3 spatial output = 1x1
    sens2_shape = 8
    num_outputs = 4

    # data[0]: NHWC uint8-like pixel values; data[1]: sensor-2 vector
    image = jax.random.uniform(k_img, (B, image_shape[0], image_shape[1], 3),
                               jnp.float32, 0.0, 255.0)
    sens2 = jax.random.normal(k_sens, (B, sens2_shape), jnp.float32)

    params = init_params(k_par, image_shape, sens2_shape, num_outputs)
    wp, bp = prepare_params(params, sens2_shape, num_outputs)   # one-time pack

    fwd = make_forward(image_shape, sens2_shape, num_outputs)
    mu = jax.block_until_ready(fwd(wp, bp, image, sens2))
    assert mu.shape == (B, num_outputs)
    assert bool(jnp.all(jnp.isfinite(mu)))
    print("KERNEL_OK")
</pallas_src>

<mosaic_0001>
module attributes {stable_mosaic.version = 11 : i64} {
  func.func @_fused_forward_kernel(%arg0: memref<128x192xbf16, #tpu.memory_space<vmem>>, %arg1: memref<2x8xf32, #tpu.memory_space<vmem>>, %arg2: memref<1520x64xbf16, #tpu.memory_space<vmem>>, %arg3: memref<9x128xf32, #tpu.memory_space<vmem>>, %arg4: memref<2x4xf32, #tpu.memory_space<vmem>>, %arg5: memref<128x32xf32, #tpu.memory_space<vmem>>, %arg6: memref<18x512xf32, #tpu.memory_space<vmem>>, %arg7: memref<18x64xf32, #tpu.memory_space<vmem>>, %arg8: memref<2x576xf32, #tpu.memory_space<vmem>>) attributes {dimension_semantics = [], scalar_prefetch = 0 : i64, scratch_operands = 4 : i64, tpu.core_type = #tpu.core_type<tc>} {
    %c0 = arith.constant 0 : index
    %c0_0 = arith.constant 0 : index
    %0 = vector.load %arg0[%c0, %c0_0] : memref<128x192xbf16, #tpu.memory_space<vmem>>, vector<128x192xbf16>
    %1 = arith.extf %0 : vector<128x192xbf16> to vector<128x192xf32>
    %cst = arith.constant 1.270000e+02 : f32
    %2 = vector.broadcast %cst : f32 to vector<128x192xf32>
    %3 = arith.subf %1, %2 : vector<128x192xf32>
    %cst_1 = arith.constant 0.00392156886 : f32
    %4 = vector.broadcast %cst_1 : f32 to vector<128x192xf32>
    %5 = arith.mulf %3, %4 : vector<128x192xf32>
    %c0_2 = arith.constant 0 : index
    %c0_3 = arith.constant 0 : index
    %6 = vector.load %arg2[%c0_2, %c0_3] : memref<1520x64xbf16, #tpu.memory_space<vmem>>, vector<192x32xbf16>
    %7 = arith.truncf %5 : vector<128x192xf32> to vector<128x192xbf16>
    %cst_4 = arith.constant dense<0.000000e+00> : vector<128x32xf32>
    %8 = tpu.matmul %7, %6, %cst_4 {dimension_numbers = #tpu.dot_dimension_numbers<[1], [0], [0], [1], [0, 0, 1, 1], [], []>} : vector<128x192xbf16>, vector<192x32xbf16>, vector<128x32xf32> -> vector<128x32xf32>
    %c0_5 = arith.constant 0 : index
    %c0_6 = arith.constant 0 : index
    %9 = vector.load %arg3[%c0_5, %c0_6] : memref<9x128xf32, #tpu.memory_space<vmem>>, vector<1x32xf32>
    %10 = vector.broadcast %9 : vector<1x32xf32> to vector<128x32xf32>
    %11 = arith.addf %8, %10 : vector<128x32xf32>
    %cst_7 = arith.constant 0.000000e+00 : f32
    %12 = vector.broadcast %cst_7 : f32 to vector<128x32xf32>
    %13 = arith.maximumf %11, %12 : vector<128x32xf32>
    %c0_8 = arith.constant 0 : index
    %c0_9 = arith.constant 0 : index
    %14 = vector.load %arg5[%c0_8, %c0_9] : memref<128x32xf32, #tpu.memory_space<vmem>>, vector<128x32xf32>
    tpu.vector_store %arg5[%c0_8, %c0_9], %13 {strides = array<i32>} : memref<128x32xf32, #tpu.memory_space<vmem>>, vector<128x32xf32>,
    %c0_10 = arith.constant 0 : index
    %c0_11 = arith.constant 0 : index
    %15 = vector.load %arg5[%c0_10, %c0_11] : memref<128x32xf32, #tpu.memory_space<vmem>>, vector<3x32xf32>
    %c0_12 = arith.constant 0 : index
    %c0_13 = arith.constant 0 : index
    %16 = vector.load %arg6[%c0_12, %c0_13] : memref<18x512xf32, #tpu.memory_space<vmem>>, vector<3x32xf32>
    tpu.vector_store %arg6[%c0_12, %c0_13], %15 {strides = array<i32>} : memref<18x512xf32, #tpu.memory_space<vmem>>, vector<3x32xf32>,
    %c4 = arith.constant 4 : index
    %c0_14 = arith.constant 0 : index
    %17 = vector.load %arg5[%c4, %c0_14] : memref<128x32xf32, #tpu.memory_space<vmem>>, vector<3x32xf32>
    %c0_15 = arith.constant 0 : index
    %c32 = arith.constant 32 : index
    %18 = vector.load %arg6[%c0_15, %c32] : memref<18x512xf32, #tpu.memory_space<vmem>>, vector<3x32xf32>
    tpu.vector_store %arg6[%c0_15, %c32], %17 {strides = array<i32>} : memref<18x512xf32, #tpu.memory_space<vmem>>, vector<3x32xf32>,
    %c1 = arith.constant 1 : index
    %c0_16 = arith.constant 0 : index
    %19 = vector.load %arg5[%c1, %c0_16] : memref<128x32xf32, #tpu.memory_space<vmem>>, vector<3x32xf32>
    %c0_17 = arith.constant 0 : index
    %c64 = arith.constant 64 : index
    %20 = vector.load %arg6[%c0_17, %c64] : memref<18x512xf32, #tpu.memory_space<vmem>>, vector<3x32xf32>
    tpu.vector_store %arg6[%c0_17, %c64], %19 {strides = array<i32>} : memref<18x512xf32, #tpu.memory_space<vmem>>, vector<3x32xf32>,
    %c5 = arith.constant 5 : index
    %c0_18 = arith.constant 0 : index
    %21 = vector.load %arg5[%c5, %c0_18] : memref<128x32xf32, #tpu.memory_space<vmem>>, vector<3x32xf32>
    %c0_19 = arith.constant 0 : index
    %c96 = arith.constant 96 : index
    %22 = vector.load %arg6[%c0_19, %c96] : memref<18x512xf32, #tpu.memory_space<vmem>>, vector<3x32xf32>
    tpu.vector_store %arg6[%c0_19, %c96], %21 {strides = array<i32>} : memref<18x512xf32, #tpu.memory_space<vmem>>, vector<3x32xf32>,
    %c8 = arith.constant 8 : index
    %c0_20 = arith.constant 0 : index
    %23 = vector.load %arg5[%c8, %c0_20] : memref<128x32xf32, #tpu.memory_space<vmem>>, vector<3x32xf32>
    %c0_21 = arith.constant 0 : index
    %c128 = arith.constant 128 : index
    %24 = vector.load %arg6[%c0_21, %c128] : memref<18x512xf32, #tpu.memory_space<vmem>>, vector<3x32xf32>
    tpu.vector_store %arg6[%c0_21, %c128], %23 {strides = array<i32>} : memref<18x512xf32, #tpu.memory_space<vmem>>, vector<3x32xf32>,
    %c12 = arith.constant 12 : index
    %c0_22 = arith.constant 0 : index
    %25 = vector.load %arg5[%c12, %c0_22] : memref<128x32xf32, #tpu.memory_space<vmem>>, vector<3x32xf32>
    %c0_23 = arith.constant 0 : index
    %c160 = arith.constant 160 : index
    %26 = vector.load %arg6[%c0_23, %c160] : memref<18x512xf32, #tpu.memory_space<vmem>>, vector<3x32xf32>
    tpu.vector_store %arg6[%c0_23, %c160], %25 {strides = array<i32>} : memref<18x512xf32, #tpu.memory_space<vmem>>, vector<3x32xf32>,
    %c9 = arith.constant 9 : index
    %c0_24 = arith.constant 0 : index
    %27 = vector.load %arg5[%c9, %c0_24] : memref<128x32xf32, #tpu.memory_space<vmem>>, vector<3x32xf32>
    %c0_25 = arith.constant 0 : index
    %c192 = arith.constant 192 : index
    %28 = vector.load %arg6[%c0_25, %c192] : memref<18x512xf32, #tpu.memory_space<vmem>>, vector<3x32xf32>
    tpu.vector_store %arg6[%c0_25, %c192], %27 {strides = array<i32>} : memref<18x512xf32, #tpu.memory_space<vmem>>, vector<3x32xf32>,
    %c13 = arith.constant 13 : index
    %c0_26 = arith.constant 0 : index
    %29 = vector.load %arg5[%c13, %c0_26] : memref<128x32xf32, #tpu.memory_space<vmem>>, vector<3x32xf32>
    %c0_27 = arith.constant 0 : index
    %c224 = arith.constant 224 : index
    %30 = vector.load %arg6[%c0_27, %c224] : memref<18x512xf32, #tpu.memory_space<vmem>>, vector<3x32xf32>
    tpu.vector_store %arg6[%c0_27, %c224], %29 {strides = array<i32>} : memref<18x512xf32, #tpu.memory_space<vmem>>, vector<3x32xf32>,
    %c16 = arith.constant 16 : index
    %c0_28 = arith.constant 0 : index
    %31 = vector.load %arg5[%c16, %c0_28] : memref<128x32xf32, #tpu.memory_space<vmem>>, vector<3x32xf32>
    %c0_29 = arith.constant 0 : index
    %c256 = arith.constant 256 : index
    %32 = vector.load %arg6[%c0_29, %c256] : memref<18x512xf32, #tpu.memory_space<vmem>>, vector<3x32xf32>
    tpu.vector_store %arg6[%c0_29, %c256], %31 {strides = array<i32>} : memref<18x512xf32, #tpu.memory_space<vmem>>, vector<3x32xf32>,
    %c20 = arith.constant 20 : index
    %c0_30 = arith.constant 0 : index
    %33 = vector.load %arg5[%c20, %c0_30] : memref<128x32xf32, #tpu.memory_space<vmem>>, vector<3x32xf32>
    %c0_31 = arith.constant 0 : index
    %c288 = arith.constant 288 : index
    %34 = vector.load %arg6[%c0_31, %c288] : memref<18x512xf32, #tpu.memory_space<vmem>>, vector<3x32xf32>
    tpu.vector_store %arg6[%c0_31, %c288], %33 {strides = array<i32>} : memref<18x512xf32, #tpu.memory_space<vmem>>, vector<3x32xf32>,
    %c17 = arith.constant 17 : index
    %c0_32 = arith.constant 0 : index
    %35 = vector.load %arg5[%c17, %c0_32] : memref<128x32xf32, #tpu.memory_space<vmem>>, vector<3x32xf32>
    %c0_33 = arith.constant 0 : index
    %c320 = arith.constant 320 : index
    %36 = vector.load %arg6[%c0_33, %c320] : memref<18x512xf32, #tpu.memory_space<vmem>>, vector<3x32xf32>
    tpu.vector_store %arg6[%c0_33, %c320], %35 {strides = array<i32>} : memref<18x512xf32, #tpu.memory_space<vmem>>, vector<3x32xf32>,
    %c21 = arith.constant 21 : index
    %c0_34 = arith.constant 0 : index
    %37 = vector.load %arg5[%c21, %c0_34] : memref<128x32xf32, #tpu.memory_space<vmem>>, vector<3x32xf32>
    %c0_35 = arith.constant 0 : index
    %c352 = arith.constant 352 : index
    %38 = vector.load %arg6[%c0_35, %c352] : memref<18x512xf32, #tpu.memory_space<vmem>>, vector<3x32xf32>
    tpu.vector_store %arg6[%c0_35, %c352], %37 {strides = array<i32>} : memref<18x512xf32, #tpu.memory_space<vmem>>, vector<3x32xf32>,
    %c24 = arith.constant 24 : index
    %c0_36 = arith.constant 0 : index
    %39 = vector.load %arg5[%c24, %c0_36] : memref<128x32xf32, #tpu.memory_space<vmem>>, vector<3x32xf32>
    %c0_37 = arith.constant 0 : index
    %c384 = arith.constant 384 : index
    %40 = vector.load %arg6[%c0_37, %c384] : memref<18x512xf32, #tpu.memory_space<vmem>>, vector<3x32xf32>
    tpu.vector_store %arg6[%c0_37, %c384], %39 {strides = array<i32>} : memref<18x512xf32, #tpu.memory_space<vmem>>, vector<3x32xf32>,
    %c28 = arith.constant 28 : index
    %c0_38 = arith.constant 0 : index
    %41 = vector.load %arg5[%c28, %c0_38] : memref<128x32xf32, #tpu.memory_space<vmem>>, vector<3x32xf32>
    %c0_39 = arith.constant 0 : index
    %c416 = arith.constant 416 : index
    %42 = vector.load %arg6[%c0_39, %c416] : memref<18x512xf32, #tpu.memory_space<vmem>>, vector<3x32xf32>
    tpu.vector_store %arg6[%c0_39, %c416], %41 {strides = array<i32>} : memref<18x512xf32, #tpu.memory_space<vmem>>, vector<3x32xf32>,
    %c25 = arith.constant 25 : index
    %c0_40 = arith.constant 0 : index
    %43 = vector.load %arg5[%c25, %c0_40] : memref<128x32xf32, #tpu.memory_space<vmem>>, vector<3x32xf32>
    %c0_41 = arith.constant 0 : index
    %c448 = arith.constant 448 : index
    %44 = vector.load %arg6[%c0_41, %c448] : memref<18x512xf32, #tpu.memory_space<vmem>>, vector<3x32xf32>
    tpu.vector_store %arg6[%c0_41, %c448], %43 {strides = array<i32>} : memref<18x512xf32, #tpu.memory_space<vmem>>, vector<3x32xf32>,
    %c29 = arith.constant 29 : index
    %c0_42 = arith.constant 0 : index
    %45 = vector.load %arg5[%c29, %c0_42] : memref<128x32xf32, #tpu.memory_space<vmem>>, vector<3x32xf32>
    %c0_43 = arith.constant 0 : index
    %c480 = arith.constant 480 : index
    %46 = vector.load %arg6[%c0_43, %c480] : memref<18x512xf32, #tpu.memory_space<vmem>>, vector<3x32xf32>
    tpu.vector_store %arg6[%c0_43, %c480], %45 {strides = array<i32>} : memref<18x512xf32, #tpu.memory_space<vmem>>, vector<3x32xf32>,
    %c16_44 = arith.constant 16 : index
    %c0_45 = arith.constant 0 : index
    %47 = vector.load %arg5[%c16_44, %c0_45] : memref<128x32xf32, #tpu.memory_space<vmem>>, vector<3x32xf32>
    %c3 = arith.constant 3 : index
    %c0_46 = arith.constant 0 : index
    %48 = vector.load %arg6[%c3, %c0_46] : memref<18x512xf32, #tpu.memory_space<vmem>>, vector<3x32xf32>
    tpu.vector_store %arg6[%c3, %c0_46], %47 {strides = array<i32>} : memref<18x512xf32, #tpu.memory_space<vmem>>, vector<3x32xf32>,
    %c20_47 = arith.constant 20 : index
    %c0_48 = arith.constant 0 : index
    %49 = vector.load %arg5[%c20_47, %c0_48] : memref<128x32xf32, #tpu.memory_space<vmem>>, vector<3x32xf32>
    %c3_49 = arith.constant 3 : index
    %c32_50 = arith.constant 32 : index
    %50 = vector.load %arg6[%c3_49, %c32_50] : memref<18x512xf32, #tpu.memory_space<vmem>>, vector<3x32xf32>
    tpu.vector_store %arg6[%c3_49, %c32_50], %49 {strides = array<i32>} : memref<18x512xf32, #tpu.memory_space<vmem>>, vector<3x32xf32>,
    %c17_51 = arith.constant 17 : index
    %c0_52 = arith.constant 0 : index
    %51 = vector.load %arg5[%c17_51, %c0_52] : memref<128x32xf32, #tpu.memory_space<vmem>>, vector<3x32xf32>
    %c3_53 = arith.constant 3 : index
    %c64_54 = arith.constant 64 : index
    %52 = vector.load %arg6[%c3_53, %c64_54] : memref<18x512xf32, #tpu.memory_space<vmem>>, vector<3x32xf32>
    tpu.vector_store %arg6[%c3_53, %c64_54], %51 {strides = array<i32>} : memref<18x512xf32, #tpu.memory_space<vmem>>, vector<3x32xf32>,
    %c21_55 = arith.constant 21 : index
    %c0_56 = arith.constant 0 : index
    %53 = vector.load %arg5[%c21_55, %c0_56] : memref<128x32xf32, #tpu.memory_space<vmem>>, vector<3x32xf32>
    %c3_57 = arith.constant 3 : index
    %c96_58 = arith.constant 96 : index
    %54 = vector.load %arg6[%c3_57, %c96_58] : memref<18x512xf32, #tpu.memory_space<vmem>>, vector<3x32xf32>
    tpu.vector_store %arg6[%c3_57, %c96_58], %53 {strides = array<i32>} : memref<18x512xf32, #tpu.memory_space<vmem>>, vector<3x32xf32>,
    %c24_59 = arith.constant 24 : index
    %c0_60 = arith.constant 0 : index
    %55 = vector.load %arg5[%c24_59, %c0_60] : memref<128x32xf32, #tpu.memory_space<vmem>>, vector<3x32xf32>
    %c3_61 = arith.constant 3 : index
    %c128_62 = arith.constant 128 : index
    %56 = vector.load %arg6[%c3_61, %c128_62] : memref<18x512xf32, #tpu.memory_space<vmem>>, vector<3x32xf32>
    tpu.vector_store %arg6[%c3_61, %c128_62], %55 {strides = array<i32>} : memref<18x512xf32, #tpu.memory_space<vmem>>, vector<3x32xf32>,
    %c28_63 = arith.constant 28 : index
    %c0_64 = arith.constant 0 : index
    %57 = vector.load %arg5[%c28_63, %c0_64] : memref<128x32xf32, #tpu.memory_space<vmem>>, vector<3x32xf32>
    %c3_65 = arith.constant 3 : index
    %c160_66 = arith.constant 160 : index
    %58 = vector.load %arg6[%c3_65, %c160_66] : memref<18x512xf32, #tpu.memory_space<vmem>>, vector<3x32xf32>
    tpu.vector_store %arg6[%c3_65, %c160_66], %57 {strides = array<i32>} : memref<18x512xf32, #tpu.memory_space<vmem>>, vector<3x32xf32>,
    %c25_67 = arith.constant 25 : index
    %c0_68 = arith.constant 0 : index
    %59 = vector.load %arg5[%c25_67, %c0_68] : memref<128x32xf32, #tpu.memory_space<vmem>>, vector<3x32xf32>
    %c3_69 = arith.constant 3 : index
    %c192_70 = arith.constant 192 : index
    %60 = vector.load %arg6[%c3_69, %c192_70] : memref<18x512xf32, #tpu.memory_space<vmem>>, vector<3x32xf32>
    tpu.vector_store %arg6[%c3_69, %c192_70], %59 {strides = array<i32>} : memref<18x512xf32, #tpu.memory_space<vmem>>, vector<3x32xf32>,
    %c29_71 = arith.constant 29 : index
    %c0_72 = arith.constant 0 : index
    %61 = vector.load %arg5[%c29_71, %c0_72] : memref<128x32xf32, #tpu.memory_space<vmem>>, vector<3x32xf32>
    %c3_73 = arith.constant 3 : index
    %c224_74 = arith.constant 224 : index
    %62 = vector.load %arg6[%c3_73, %c224_74] : memref<18x512xf32, #tpu.memory_space<vmem>>, vector<3x32xf32>
    tpu.vector_store %arg6[%c3_73, %c224_74], %61 {strides = array<i32>} : memref<18x512xf32, #tpu.memory_space<vmem>>, vector<3x32xf32>,
    %c32_75 = arith.constant 32 : index
    %c0_76 = arith.constant 0 : index
    %63 = vector.load %arg5[%c32_75, %c0_76] : memref<128x32xf32, #tpu.memory_space<vmem>>, vector<3x32xf32>
    %c3_77 = arith.constant 3 : index
    %c256_78 = arith.constant 256 : index
    %64 = vector.load %arg6[%c3_77, %c256_78] : memref<18x512xf32, #tpu.memory_space<vmem>>, vector<3x32xf32>
    tpu.vector_store %arg6[%c3_77, %c256_78], %63 {strides = array<i32>} : memref<18x512xf32, #tpu.memory_space<vmem>>, vector<3x32xf32>,
    %c36 = arith.constant 36 : index
    %c0_79 = arith.constant 0 : index
    %65 = vector.load %arg5[%c36, %c0_79] : memref<128x32xf32, #tpu.memory_space<vmem>>, vector<3x32xf32>
    %c3_80 = arith.constant 3 : index
    %c288_81 = arith.constant 288 : index
    %66 = vector.load %arg6[%c3_80, %c288_81] : memref<18x512xf32, #tpu.memory_space<vmem>>, vector<3x32xf32>
    tpu.vector_store %arg6[%c3_80, %c288_81], %65 {strides = array<i32>} : memref<18x512xf32, #tpu.memory_space<vmem>>, vector<3x32xf32>,
    %c33 = arith.constant 33 : index
    %c0_82 = arith.constant 0 : index
    %67 = vector.load %arg5[%c33, %c0_82] : memref<128x32xf32, #tpu.memory_space<vmem>>, vector<3x32xf32>
    %c3_83 = arith.constant 3 : index
    %c320_84 = arith.constant 320 : index
    %68 = vector.load %arg6[%c3_83, %c320_84] : memref<18x512xf32, #tpu.memory_space<vmem>>, vector<3x32xf32>
    tpu.vector_store %arg6[%c3_83, %c320_84], %67 {strides = array<i32>} : memref<18x512xf32, #tpu.memory_space<vmem>>, vector<3x32xf32>,
    %c37 = arith.constant 37 : index
    %c0_85 = arith.constant 0 : index
    %69 = vector.load %arg5[%c37, %c0_85] : memref<128x32xf32, #tpu.memory_space<vmem>>, vector<3x32xf32>
    %c3_86 = arith.constant 3 : index
    %c352_87 = arith.constant 352 : index
    %70 = vector.load %arg6[%c3_86, %c352_87] : memref<18x512xf32, #tpu.memory_space<vmem>>, vector<3x32xf32>
    tpu.vector_store %arg6[%c3_86, %c352_87], %69 {strides = array<i32>} : memref<18x512xf32, #tpu.memory_space<vmem>>, vector<3x32xf32>,
    %c40 = arith.constant 40 : index
    %c0_88 = arith.constant 0 : index
    %71 = vector.load %arg5[%c40, %c0_88] : memref<128x32xf32, #tpu.memory_space<vmem>>, vector<3x32xf32>
    %c3_89 = arith.constant 3 : index
    %c384_90 = arith.constant 384 : index
    %72 = vector.load %arg6[%c3_89, %c384_90] : memref<18x512xf32, #tpu.memory_space<vmem>>, vector<3x32xf32>
    tpu.vector_store %arg6[%c3_89, %c384_90], %71 {strides = array<i32>} : memref<18x512xf32, #tpu.memory_space<vmem>>, vector<3x32xf32>,
    %c44 = arith.constant 44 : index
    %c0_91 = arith.constant 0 : index
    %73 = vector.load %arg5[%c44, %c0_91] : memref<128x32xf32, #tpu.memory_space<vmem>>, vector<3x32xf32>
    %c3_92 = arith.constant 3 : index
    %c416_93 = arith.constant 416 : index
    %74 = vector.load %arg6[%c3_92, %c416_93] : memref<18x512xf32, #tpu.memory_space<vmem>>, vector<3x32xf32>
    tpu.vector_store %arg6[%c3_92, %c416_93], %73 {strides = array<i32>} : memref<18x512xf32, #tpu.memory_space<vmem>>, vector<3x32xf32>,
    %c41 = arith.constant 41 : index
    %c0_94 = arith.constant 0 : index
    %75 = vector.load %arg5[%c41, %c0_94] : memref<128x32xf32, #tpu.memory_space<vmem>>, vector<3x32xf32>
    %c3_95 = arith.constant 3 : index
    %c448_96 = arith.constant 448 : index
    %76 = vector.load %arg6[%c3_95, %c448_96] : memref<18x512xf32, #tpu.memory_space<vmem>>, vector<3x32xf32>
    tpu.vector_store %arg6[%c3_95, %c448_96], %75 {strides = array<i32>} : memref<18x512xf32, #tpu.memory_space<vmem>>, vector<3x32xf32>,
    %c45 = arith.constant 45 : index
    %c0_97 = arith.constant 0 : index
    %77 = vector.load %arg5[%c45, %c0_97] : memref<128x32xf32, #tpu.memory_space<vmem>>, vector<3x32xf32>
    %c3_98 = arith.constant 3 : index
    %c480_99 = arith.constant 480 : index
    %78 = vector.load %arg6[%c3_98, %c480_99] : memref<18x512xf32, #tpu.memory_space<vmem>>, vector<3x32xf32>
    tpu.vector_store %arg6[%c3_98, %c480_99], %77 {strides = array<i32>} : memref<18x512xf32, #tpu.memory_space<vmem>>, vector<3x32xf32>,
    %c32_100 = arith.constant 32 : index
    %c0_101 = arith.constant 0 : index
    %79 = vector.load %arg5[%c32_100, %c0_101] : memref<128x32xf32, #tpu.memory_space<vmem>>, vector<3x32xf32>
    %c6 = arith.constant 6 : index
    %c0_102 = arith.constant 0 : index
    %80 = vector.load %arg6[%c6, %c0_102] : memref<18x512xf32, #tpu.memory_space<vmem>>, vector<3x32xf32>
    tpu.vector_store %arg6[%c6, %c0_102], %79 {strides = array<i32>} : memref<18x512xf32, #tpu.memory_space<vmem>>, vector<3x32xf32>,
    %c36_103 = arith.constant 36 : index
    %c0_104 = arith.constant 0 : index
    %81 = vector.load %arg5[%c36_103, %c0_104] : memref<128x32xf32, #tpu.memory_space<vmem>>, vector<3x32xf32>
    %c6_105 = arith.constant 6 : index
    %c32_106 = arith.constant 32 : index
    %82 = vector.load %arg6[%c6_105, %c32_106] : memref<18x512xf32, #tpu.memory_space<vmem>>, vector<3x32xf32>
    tpu.vector_store %arg6[%c6_105, %c32_106], %81 {strides = array<i32>} : memref<18x512xf32, #tpu.memory_space<vmem>>, vector<3x32xf32>,
    %c33_107 = arith.constant 33 : index
    %c0_108 = arith.constant 0 : index
    %83 = vector.load %arg5[%c33_107, %c0_108] : memref<128x32xf32, #tpu.memory_space<vmem>>, vector<3x32xf32>
    %c6_109 = arith.constant 6 : index
    %c64_110 = arith.constant 64 : index
    %84 = vector.load %arg6[%c6_109, %c64_110] : memref<18x512xf32, #tpu.memory_space<vmem>>, vector<3x32xf32>
    tpu.vector_store %arg6[%c6_109, %c64_110], %83 {strides = array<i32>} : memref<18x512xf32, #tpu.memory_space<vmem>>, vector<3x32xf32>,
    %c37_111 = arith.constant 37 : index
    %c0_112 = arith.constant 0 : index
    %85 = vector.load %arg5[%c37_111, %c0_112] : memref<128x32xf32, #tpu.memory_space<vmem>>, vector<3x32xf32>
    %c6_113 = arith.constant 6 : index
    %c96_114 = arith.constant 96 : index
    %86 = vector.load %arg6[%c6_113, %c96_114] : memref<18x512xf32, #tpu.memory_space<vmem>>, vector<3x32xf32>
    tpu.vector_store %arg6[%c6_113, %c96_114], %85 {strides = array<i32>} : memref<18x512xf32, #tpu.memory_space<vmem>>, vector<3x32xf32>,
    %c40_115 = arith.constant 40 : index
    %c0_116 = arith.constant 0 : index
    %87 = vector.load %arg5[%c40_115, %c0_116] : memref<128x32xf32, #tpu.memory_space<vmem>>, vector<3x32xf32>
    %c6_117 = arith.constant 6 : index
    %c128_118 = arith.constant 128 : index
    %88 = vector.load %arg6[%c6_117, %c128_118] : memref<18x512xf32, #tpu.memory_space<vmem>>, vector<3x32xf32>
    tpu.vector_store %arg6[%c6_117, %c128_118], %87 {strides = array<i32>} : memref<18x512xf32, #tpu.memory_space<vmem>>, vector<3x32xf32>,
    %c44_119 = arith.constant 44 : index
    %c0_120 = arith.constant 0 : index
    %89 = vector.load %arg5[%c44_119, %c0_120] : memref<128x32xf32, #tpu.memory_space<vmem>>, vector<3x32xf32>
    %c6_121 = arith.constant 6 : index
    %c160_122 = arith.constant 160 : index
    %90 = vector.load %arg6[%c6_121, %c160_122] : memref<18x512xf32, #tpu.memory_space<vmem>>, vector<3x32xf32>
    tpu.vector_store %arg6[%c6_121, %c160_122], %89 {strides = array<i32>} : memref<18x512xf32, #tpu.memory_space<vmem>>, vector<3x32xf32>,
    %c41_123 = arith.constant 41 : index
    %c0_124 = arith.constant 0 : index
    %91 = vector.load %arg5[%c41_123, %c0_124] : memref<128x32xf32, #tpu.memory_space<vmem>>, vector<3x32xf32>
    %c6_125 = arith.constant 6 : index
    %c192_126 = arith.constant 192 : index
    %92 = vector.load %arg6[%c6_125, %c192_126] : memref<18x512xf32, #tpu.memory_space<vmem>>, vector<3x32xf32>
    tpu.vector_store %arg6[%c6_125, %c192_126], %91 {strides = array<i32>} : memref<18x512xf32, #tpu.memory_space<vmem>>, vector<3x32xf32>,
    %c45_127 = arith.constant 45 : index
    %c0_128 = arith.constant 0 : index
    %93 = vector.load %arg5[%c45_127, %c0_128] : memref<128x32xf32, #tpu.memory_space<vmem>>, vector<3x32xf32>
    %c6_129 = arith.constant 6 : index
    %c224_130 = arith.constant 224 : index
    %94 = vector.load %arg6[%c6_129, %c224_130] : memref<18x512xf32, #tpu.memory_space<vmem>>, vector<3x32xf32>
    tpu.vector_store %arg6[%c6_129, %c224_130], %93 {strides = array<i32>} : memref<18x512xf32, #tpu.memory_space<vmem>>, vector<3x32xf32>,
    %c48 = arith.constant 48 : index
    %c0_131 = arith.constant 0 : index
    %95 = vector.load %arg5[%c48, %c0_131] : memref<128x32xf32, #tpu.memory_space<vmem>>, vector<3x32xf32>
    %c6_132 = arith.constant 6 : index
    %c256_133 = arith.constant 256 : index
    %96 = vector.load %arg6[%c6_132, %c256_133] : memref<18x512xf32, #tpu.memory_space<vmem>>, vector<3x32xf32>
    tpu.vector_store %arg6[%c6_132, %c256_133], %95 {strides = array<i32>} : memref<18x512xf32, #tpu.memory_space<vmem>>, vector<3x32xf32>,
    %c52 = arith.constant 52 : index
    %c0_134 = arith.constant 0 : index
    %97 = vector.load %arg5[%c52, %c0_134] : memref<128x32xf32, #tpu.memory_space<vmem>>, vector<3x32xf32>
    %c6_135 = arith.constant 6 : index
    %c288_136 = arith.constant 288 : index
    %98 = vector.load %arg6[%c6_135, %c288_136] : memref<18x512xf32, #tpu.memory_space<vmem>>, vector<3x32xf32>
    tpu.vector_store %arg6[%c6_135, %c288_136], %97 {strides = array<i32>} : memref<18x512xf32, #tpu.memory_space<vmem>>, vector<3x32xf32>,
    %c49 = arith.constant 49 : index
    %c0_137 = arith.constant 0 : index
    %99 = vector.load %arg5[%c49, %c0_137] : memref<128x32xf32, #tpu.memory_space<vmem>>, vector<3x32xf32>
    %c6_138 = arith.constant 6 : index
    %c320_139 = arith.constant 320 : index
    %100 = vector.load %arg6[%c6_138, %c320_139] : memref<18x512xf32, #tpu.memory_space<vmem>>, vector<3x32xf32>
    tpu.vector_store %arg6[%c6_138, %c320_139], %99 {strides = array<i32>} : memref<18x512xf32, #tpu.memory_space<vmem>>, vector<3x32xf32>,
    %c53 = arith.constant 53 : index
    %c0_140 = arith.constant 0 : index
    %101 = vector.load %arg5[%c53, %c0_140] : memref<128x32xf32, #tpu.memory_space<vmem>>, vector<3x32xf32>
    %c6_141 = arith.constant 6 : index
    %c352_142 = arith.constant 352 : index
    %102 = vector.load %arg6[%c6_141, %c352_142] : memref<18x512xf32, #tpu.memory_space<vmem>>, vector<3x32xf32>
    tpu.vector_store %arg6[%c6_141, %c352_142], %101 {strides = array<i32>} : memref<18x512xf32, #tpu.memory_space<vmem>>, vector<3x32xf32>,
    %c56 = arith.constant 56 : index
    %c0_143 = arith.constant 0 : index
    %103 = vector.load %arg5[%c56, %c0_143] : memref<128x32xf32, #tpu.memory_space<vmem>>, vector<3x32xf32>
    %c6_144 = arith.constant 6 : index
    %c384_145 = arith.constant 384 : index
    %104 = vector.load %arg6[%c6_144, %c384_145] : memref<18x512xf32, #tpu.memory_space<vmem>>, vector<3x32xf32>
    tpu.vector_store %arg6[%c6_144, %c384_145], %103 {strides = array<i32>} : memref<18x512xf32, #tpu.memory_space<vmem>>, vector<3x32xf32>,
    %c60 = arith.constant 60 : index
    %c0_146 = arith.constant 0 : index
    %105 = vector.load %arg5[%c60, %c0_146] : memref<128x32xf32, #tpu.memory_space<vmem>>, vector<3x32xf32>
    %c6_147 = arith.constant 6 : index
    %c416_148 = arith.constant 416 : index
    %106 = vector.load %arg6[%c6_147, %c416_148] : memref<18x512xf32, #tpu.memory_space<vmem>>, vector<3x32xf32>
    tpu.vector_store %arg6[%c6_147, %c416_148], %105 {strides = array<i32>} : memref<18x512xf32, #tpu.memory_space<vmem>>, vector<3x32xf32>,
    %c57 = arith.constant 57 : index
    %c0_149 = arith.constant 0 : index
    %107 = vector.load %arg5[%c57, %c0_149] : memref<128x32xf32, #tpu.memory_space<vmem>>, vector<3x32xf32>
    %c6_150 = arith.constant 6 : index
    %c448_151 = arith.constant 448 : index
    %108 = vector.load %arg6[%c6_150, %c448_151] : memref<18x512xf32, #tpu.memory_space<vmem>>, vector<3x32xf32>
    tpu.vector_store %arg6[%c6_150, %c448_151], %107 {strides = array<i32>} : memref<18x512xf32, #tpu.memory_space<vmem>>, vector<3x32xf32>,
    %c61 = arith.constant 61 : index
    %c0_152 = arith.constant 0 : index
    %109 = vector.load %arg5[%c61, %c0_152] : memref<128x32xf32, #tpu.memory_space<vmem>>, vector<3x32xf32>
    %c6_153 = arith.constant 6 : index
    %c480_154 = arith.constant 480 : index
    %110 = vector.load %arg6[%c6_153, %c480_154] : memref<18x512xf32, #tpu.memory_space<vmem>>, vector<3x32xf32>
    tpu.vector_store %arg6[%c6_153, %c480_154], %109 {strides = array<i32>} : memref<18x512xf32, #tpu.memory_space<vmem>>, vector<3x32xf32>,
    %c64_155 = arith.constant 64 : index
    %c0_156 = arith.constant 0 : index
    %111 = vector.load %arg5[%c64_155, %c0_156] : memref<128x32xf32, #tpu.memory_space<vmem>>, vector<3x32xf32>
    %c9_157 = arith.constant 9 : index
    %c0_158 = arith.constant 0 : index
    %112 = vector.load %arg6[%c9_157, %c0_158] : memref<18x512xf32, #tpu.memory_space<vmem>>, vector<3x32xf32>
    tpu.vector_store %arg6[%c9_157, %c0_158], %111 {strides = array<i32>} : memref<18x512xf32, #tpu.memory_space<vmem>>, vector<3x32xf32>,
    %c68 = arith.constant 68 : index
    %c0_159 = arith.constant 0 : index
    %113 = vector.load %arg5[%c68, %c0_159] : memref<128x32xf32, #tpu.memory_space<vmem>>, vector<3x32xf32>
    %c9_160 = arith.constant 9 : index
    %c32_161 = arith.constant 32 : index
    %114 = vector.load %arg6[%c9_160, %c32_161] : memref<18x512xf32, #tpu.memory_space<vmem>>, vector<3x32xf32>
    tpu.vector_store %arg6[%c9_160, %c32_161], %113 {strides = array<i32>} : memref<18x512xf32, #tpu.memory_space<vmem>>, vector<3x32xf32>,
    %c65 = arith.constant 65 : index
    %c0_162 = arith.constant 0 : index
    %115 = vector.load %arg5[%c65, %c0_162] : memref<128x32xf32, #tpu.memory_space<vmem>>, vector<3x32xf32>
    %c9_163 = arith.constant 9 : index
    %c64_164 = arith.constant 64 : index
    %116 = vector.load %arg6[%c9_163, %c64_164] : memref<18x512xf32, #tpu.memory_space<vmem>>, vector<3x32xf32>
    tpu.vector_store %arg6[%c9_163, %c64_164], %115 {strides = array<i32>} : memref<18x512xf32, #tpu.memory_space<vmem>>, vector<3x32xf32>,
    %c69 = arith.constant 69 : index
    %c0_165 = arith.constant 0 : index
    %117 = vector.load %arg5[%c69, %c0_165] : memref<128x32xf32, #tpu.memory_space<vmem>>, vector<3x32xf32>
    %c9_166 = arith.constant 9 : index
    %c96_167 = arith.constant 96 : index
    %118 = vector.load %arg6[%c9_166, %c96_167] : memref<18x512xf32, #tpu.memory_space<vmem>>, vector<3x32xf32>
    tpu.vector_store %arg6[%c9_166, %c96_167], %117 {strides = array<i32>} : memref<18x512xf32, #tpu.memory_space<vmem>>, vector<3x32xf32>,
    %c72 = arith.constant 72 : index
    %c0_168 = arith.constant 0 : index
    %119 = vector.load %arg5[%c72, %c0_168] : memref<128x32xf32, #tpu.memory_space<vmem>>, vector<3x32xf32>
    %c9_169 = arith.constant 9 : index
    %c128_170 = arith.constant 128 : index
    %120 = vector.load %arg6[%c9_169, %c128_170] : memref<18x512xf32, #tpu.memory_space<vmem>>, vector<3x32xf32>
    tpu.vector_store %arg6[%c9_169, %c128_170], %119 {strides = array<i32>} : memref<18x512xf32, #tpu.memory_space<vmem>>, vector<3x32xf32>,
    %c76 = arith.constant 76 : index
    %c0_171 = arith.constant 0 : index
    %121 = vector.load %arg5[%c76, %c0_171] : memref<128x32xf32, #tpu.memory_space<vmem>>, vector<3x32xf32>
    %c9_172 = arith.constant 9 : index
    %c160_173 = arith.constant 160 : index
    %122 = vector.load %arg6[%c9_172, %c160_173] : memref<18x512xf32, #tpu.memory_space<vmem>>, vector<3x32xf32>
    tpu.vector_store %arg6[%c9_172, %c160_173], %121 {strides = array<i32>} : memref<18x512xf32, #tpu.memory_space<vmem>>, vector<3x32xf32>,
    %c73 = arith.constant 73 : index
    %c0_174 = arith.constant 0 : index
    %123 = vector.load %arg5[%c73, %c0_174] : memref<128x32xf32, #tpu.memory_space<vmem>>, vector<3x32xf32>
    %c9_175 = arith.constant 9 : index
    %c192_176 = arith.constant 192 : index
    %124 = vector.load %arg6[%c9_175, %c192_176] : memref<18x512xf32, #tpu.memory_space<vmem>>, vector<3x32xf32>
    tpu.vector_store %arg6[%c9_175, %c192_176], %123 {strides = array<i32>} : memref<18x512xf32, #tpu.memory_space<vmem>>, vector<3x32xf32>,
    %c77 = arith.constant 77 : index
    %c0_177 = arith.constant 0 : index
    %125 = vector.load %arg5[%c77, %c0_177] : memref<128x32xf32, #tpu.memory_space<vmem>>, vector<3x32xf32>
    %c9_178 = arith.constant 9 : index
    %c224_179 = arith.constant 224 : index
    %126 = vector.load %arg6[%c9_178, %c224_179] : memref<18x512xf32, #tpu.memory_space<vmem>>, vector<3x32xf32>
    tpu.vector_store %arg6[%c9_178, %c224_179], %125 {strides = array<i32>} : memref<18x512xf32, #tpu.memory_space<vmem>>, vector<3x32xf32>,
    %c80 = arith.constant 80 : index
    %c0_180 = arith.constant 0 : index
    %127 = vector.load %arg5[%c80, %c0_180] : memref<128x32xf32, #tpu.memory_space<vmem>>, vector<3x32xf32>
    %c9_181 = arith.constant 9 : index
    %c256_182 = arith.constant 256 : index
    %128 = vector.load %arg6[%c9_181, %c256_182] : memref<18x512xf32, #tpu.memory_space<vmem>>, vector<3x32xf32>
    tpu.vector_store %arg6[%c9_181, %c256_182], %127 {strides = array<i32>} : memref<18x512xf32, #tpu.memory_space<vmem>>, vector<3x32xf32>,
    %c84 = arith.constant 84 : index
    %c0_183 = arith.constant 0 : index
    %129 = vector.load %arg5[%c84, %c0_183] : memref<128x32xf32, #tpu.memory_space<vmem>>, vector<3x32xf32>
    %c9_184 = arith.constant 9 : index
    %c288_185 = arith.constant 288 : index
    %130 = vector.load %arg6[%c9_184, %c288_185] : memref<18x512xf32, #tpu.memory_space<vmem>>, vector<3x32xf32>
    tpu.vector_store %arg6[%c9_184, %c288_185], %129 {strides = array<i32>} : memref<18x512xf32, #tpu.memory_space<vmem>>, vector<3x32xf32>,
    %c81 = arith.constant 81 : index
    %c0_186 = arith.constant 0 : index
    %131 = vector.load %arg5[%c81, %c0_186] : memref<128x32xf32, #tpu.memory_space<vmem>>, vector<3x32xf32>
    %c9_187 = arith.constant 9 : index
    %c320_188 = arith.constant 320 : index
    %132 = vector.load %arg6[%c9_187, %c320_188] : memref<18x512xf32, #tpu.memory_space<vmem>>, vector<3x32xf32>
    tpu.vector_store %arg6[%c9_187, %c320_188], %131 {strides = array<i32>} : memref<18x512xf32, #tpu.memory_space<vmem>>, vector<3x32xf32>,
    %c85 = arith.constant 85 : index
    %c0_189 = arith.constant 0 : index
    %133 = vector.load %arg5[%c85, %c0_189] : memref<128x32xf32, #tpu.memory_space<vmem>>, vector<3x32xf32>
    %c9_190 = arith.constant 9 : index
    %c352_191 = arith.constant 352 : index
    %134 = vector.load %arg6[%c9_190, %c352_191] : memref<18x512xf32, #tpu.memory_space<vmem>>, vector<3x32xf32>
    tpu.vector_store %arg6[%c9_190, %c352_191], %133 {strides = array<i32>} : memref<18x512xf32, #tpu.memory_space<vmem>>, vector<3x32xf32>,
    %c88 = arith.constant 88 : index
    %c0_192 = arith.constant 0 : index
    %135 = vector.load %arg5[%c88, %c0_192] : memref<128x32xf32, #tpu.memory_space<vmem>>, vector<3x32xf32>
    %c9_193 = arith.constant 9 : index
    %c384_194 = arith.constant 384 : index
    %136 = vector.load %arg6[%c9_193, %c384_194] : memref<18x512xf32, #tpu.memory_space<vmem>>, vector<3x32xf32>
    tpu.vector_store %arg6[%c9_193, %c384_194], %135 {strides = array<i32>} : memref<18x512xf32, #tpu.memory_space<vmem>>, vector<3x32xf32>,
    %c92 = arith.constant 92 : index
    %c0_195 = arith.constant 0 : index
    %137 = vector.load %arg5[%c92, %c0_195] : memref<128x32xf32, #tpu.memory_space<vmem>>, vector<3x32xf32>
    %c9_196 = arith.constant 9 : index
    %c416_197 = arith.constant 416 : index
    %138 = vector.load %arg6[%c9_196, %c416_197] : memref<18x512xf32, #tpu.memory_space<vmem>>, vector<3x32xf32>
    tpu.vector_store %arg6[%c9_196, %c416_197], %137 {strides = array<i32>} : memref<18x512xf32, #tpu.memory_space<vmem>>, vector<3x32xf32>,
    %c89 = arith.constant 89 : index
    %c0_198 = arith.constant 0 : index
    %139 = vector.load %arg5[%c89, %c0_198] : memref<128x32xf32, #tpu.memory_space<vmem>>, vector<3x32xf32>
    %c9_199 = arith.constant 9 : index
    %c448_200 = arith.constant 448 : index
    %140 = vector.load %arg6[%c9_199, %c448_200] : memref<18x512xf32, #tpu.memory_space<vmem>>, vector<3x32xf32>
    tpu.vector_store %arg6[%c9_199, %c448_200], %139 {strides = array<i32>} : memref<18x512xf32, #tpu.memory_space<vmem>>, vector<3x32xf32>,
    %c93 = arith.constant 93 : index
    %c0_201 = arith.constant 0 : index
    %141 = vector.load %arg5[%c93, %c0_201] : memref<128x32xf32, #tpu.memory_space<vmem>>, vector<3x32xf32>
    %c9_202 = arith.constant 9 : index
    %c480_203 = arith.constant 480 : index
    %142 = vector.load %arg6[%c9_202, %c480_203] : memref<18x512xf32, #tpu.memory_space<vmem>>, vector<3x32xf32>
    tpu.vector_store %arg6[%c9_202, %c480_203], %141 {strides = array<i32>} : memref<18x512xf32, #tpu.memory_space<vmem>>, vector<3x32xf32>,
    %c80_204 = arith.constant 80 : index
    %c0_205 = arith.constant 0 : index
    %143 = vector.load %arg5[%c80_204, %c0_205] : memref<128x32xf32, #tpu.memory_space<vmem>>, vector<3x32xf32>
    %c12_206 = arith.constant 12 : index
    %c0_207 = arith.constant 0 : index
    %144 = vector.load %arg6[%c12_206, %c0_207] : memref<18x512xf32, #tpu.memory_space<vmem>>, vector<3x32xf32>
    tpu.vector_store %arg6[%c12_206, %c0_207], %143 {strides = array<i32>} : memref<18x512xf32, #tpu.memory_space<vmem>>, vector<3x32xf32>,
    %c84_208 = arith.constant 84 : index
    %c0_209 = arith.constant 0 : index
    %145 = vector.load %arg5[%c84_208, %c0_209] : memref<128x32xf32, #tpu.memory_space<vmem>>, vector<3x32xf32>
    %c12_210 = arith.constant 12 : index
    %c32_211 = arith.constant 32 : index
    %146 = vector.load %arg6[%c12_210, %c32_211] : memref<18x512xf32, #tpu.memory_space<vmem>>, vector<3x32xf32>
    tpu.vector_store %arg6[%c12_210, %c32_211], %145 {strides = array<i32>} : memref<18x512xf32, #tpu.memory_space<vmem>>, vector<3x32xf32>,
    %c81_212 = arith.constant 81 : index
    %c0_213 = arith.constant 0 : index
    %147 = vector.load %arg5[%c81_212, %c0_213] : memref<128x32xf32, #tpu.memory_space<vmem>>, vector<3x32xf32>
    %c12_214 = arith.constant 12 : index
    %c64_215 = arith.constant 64 : index
    %148 = vector.load %arg6[%c12_214, %c64_215] : memref<18x512xf32, #tpu.memory_space<vmem>>, vector<3x32xf32>
    tpu.vector_store %arg6[%c12_214, %c64_215], %147 {strides = array<i32>} : memref<18x512xf32, #tpu.memory_space<vmem>>, vector<3x32xf32>,
    %c85_216 = arith.constant 85 : index
    %c0_217 = arith.constant 0 : index
    %149 = vector.load %arg5[%c85_216, %c0_217] : memref<128x32xf32, #tpu.memory_space<vmem>>, vector<3x32xf32>
    %c12_218 = arith.constant 12 : index
    %c96_219 = arith.constant 96 : index
    %150 = vector.load %arg6[%c12_218, %c96_219] : memref<18x512xf32, #tpu.memory_space<vmem>>, vector<3x32xf32>
    tpu.vector_store %arg6[%c12_218, %c96_219], %149 {strides = array<i32>} : memref<18x512xf32, #tpu.memory_space<vmem>>, vector<3x32xf32>,
    %c88_220 = arith.constant 88 : index
    %c0_221 = arith.constant 0 : index
    %151 = vector.load %arg5[%c88_220, %c0_221] : memref<128x32xf32, #tpu.memory_space<vmem>>, vector<3x32xf32>
    %c12_222 = arith.constant 12 : index
    %c128_223 = arith.constant 128 : index
    %152 = vector.load %arg6[%c12_222, %c128_223] : memref<18x512xf32, #tpu.memory_space<vmem>>, vector<3x32xf32>
    tpu.vector_store %arg6[%c12_222, %c128_223], %151 {strides = array<i32>} : memref<18x512xf32, #tpu.memory_space<vmem>>, vector<3x32xf32>,
    %c92_224 = arith.constant 92 : index
    %c0_225 = arith.constant 0 : index
    %153 = vector.load %arg5[%c92_224, %c0_225] : memref<128x32xf32, #tpu.memory_space<vmem>>, vector<3x32xf32>
    %c12_226 = arith.constant 12 : index
    %c160_227 = arith.constant 160 : index
    %154 = vector.load %arg6[%c12_226, %c160_227] : memref<18x512xf32, #tpu.memory_space<vmem>>, vector<3x32xf32>
    tpu.vector_store %arg6[%c12_226, %c160_227], %153 {strides = array<i32>} : memref<18x512xf32, #tpu.memory_space<vmem>>, vector<3x32xf32>,
    %c89_228 = arith.constant 89 : index
    %c0_229 = arith.constant 0 : index
    %155 = vector.load %arg5[%c89_228, %c0_229] : memref<128x32xf32, #tpu.memory_space<vmem>>, vector<3x32xf32>
    %c12_230 = arith.constant 12 : index
    %c192_231 = arith.constant 192 : index
    %156 = vector.load %arg6[%c12_230, %c192_231] : memref<18x512xf32, #tpu.memory_space<vmem>>, vector<3x32xf32>
    tpu.vector_store %arg6[%c12_230, %c192_231], %155 {strides = array<i32>} : memref<18x512xf32, #tpu.memory_space<vmem>>, vector<3x32xf32>,
    %c93_232 = arith.constant 93 : index
    %c0_233 = arith.constant 0 : index
    %157 = vector.load %arg5[%c93_232, %c0_233] : memref<128x32xf32, #tpu.memory_space<vmem>>, vector<3x32xf32>
    %c12_234 = arith.constant 12 : index
    %c224_235 = arith.constant 224 : index
    %158 = vector.load %arg6[%c12_234, %c224_235] : memref<18x512xf32, #tpu.memory_space<vmem>>, vector<3x32xf32>
    tpu.vector_store %arg6[%c12_234, %c224_235], %157 {strides = array<i32>} : memref<18x512xf32, #tpu.memory_space<vmem>>, vector<3x32xf32>,
    %c96_236 = arith.constant 96 : index
    %c0_237 = arith.constant 0 : index
    %159 = vector.load %arg5[%c96_236, %c0_237] : memref<128x32xf32, #tpu.memory_space<vmem>>, vector<3x32xf32>
    %c12_238 = arith.constant 12 : index
    %c256_239 = arith.constant 256 : index
    %160 = vector.load %arg6[%c12_238, %c256_239] : memref<18x512xf32, #tpu.memory_space<vmem>>, vector<3x32xf32>
    tpu.vector_store %arg6[%c12_238, %c256_239], %159 {strides = array<i32>} : memref<18x512xf32, #tpu.memory_space<vmem>>, vector<3x32xf32>,
    %c100 = arith.constant 100 : index
    %c0_240 = arith.constant 0 : index
    %161 = vector.load %arg5[%c100, %c0_240] : memref<128x32xf32, #tpu.memory_space<vmem>>, vector<3x32xf32>
    %c12_241 = arith.constant 12 : index
    %c288_242 = arith.constant 288 : index
    %162 = vector.load %arg6[%c12_241, %c288_242] : memref<18x512xf32, #tpu.memory_space<vmem>>, vector<3x32xf32>
    tpu.vector_store %arg6[%c12_241, %c288_242], %161 {strides = array<i32>} : memref<18x512xf32, #tpu.memory_space<vmem>>, vector<3x32xf32>,
    %c97 = arith.constant 97 : index
    %c0_243 = arith.constant 0 : index
    %163 = vector.load %arg5[%c97, %c0_243] : memref<128x32xf32, #tpu.memory_space<vmem>>, vector<3x32xf32>
    %c12_244 = arith.constant 12 : index
    %c320_245 = arith.constant 320 : index
    %164 = vector.load %arg6[%c12_244, %c320_245] : memref<18x512xf32, #tpu.memory_space<vmem>>, vector<3x32xf32>
    tpu.vector_store %arg6[%c12_244, %c320_245], %163 {strides = array<i32>} : memref<18x512xf32, #tpu.memory_space<vmem>>, vector<3x32xf32>,
    %c101 = arith.constant 101 : index
    %c0_246 = arith.constant 0 : index
    %165 = vector.load %arg5[%c101, %c0_246] : memref<128x32xf32, #tpu.memory_space<vmem>>, vector<3x32xf32>
    %c12_247 = arith.constant 12 : index
    %c352_248 = arith.constant 352 : index
    %166 = vector.load %arg6[%c12_247, %c352_248] : memref<18x512xf32, #tpu.memory_space<vmem>>, vector<3x32xf32>
    tpu.vector_store %arg6[%c12_247, %c352_248], %165 {strides = array<i32>} : memref<18x512xf32, #tpu.memory_space<vmem>>, vector<3x32xf32>,
    %c104 = arith.constant 104 : index
    %c0_249 = arith.constant 0 : index
    %167 = vector.load %arg5[%c104, %c0_249] : memref<128x32xf32, #tpu.memory_space<vmem>>, vector<3x32xf32>
    %c12_250 = arith.constant 12 : index
    %c384_251 = arith.constant 384 : index
    %168 = vector.load %arg6[%c12_250, %c384_251] : memref<18x512xf32, #tpu.memory_space<vmem>>, vector<3x32xf32>
    tpu.vector_store %arg6[%c12_250, %c384_251], %167 {strides = array<i32>} : memref<18x512xf32, #tpu.memory_space<vmem>>, vector<3x32xf32>,
    %c108 = arith.constant 108 : index
    %c0_252 = arith.constant 0 : index
    %169 = vector.load %arg5[%c108, %c0_252] : memref<128x32xf32, #tpu.memory_space<vmem>>, vector<3x32xf32>
    %c12_253 = arith.constant 12 : index
    %c416_254 = arith.constant 416 : index
    %170 = vector.load %arg6[%c12_253, %c416_254] : memref<18x512xf32, #tpu.memory_space<vmem>>, vector<3x32xf32>
    tpu.vector_store %arg6[%c12_253, %c416_254], %169 {strides = array<i32>} : memref<18x512xf32, #tpu.memory_space<vmem>>, vector<3x32xf32>,
    %c105 = arith.constant 105 : index
    %c0_255 = arith.constant 0 : index
    %171 = vector.load %arg5[%c105, %c0_255] : memref<128x32xf32, #tpu.memory_space<vmem>>, vector<3x32xf32>
    %c12_256 = arith.constant 12 : index
    %c448_257 = arith.constant 448 : index
    %172 = vector.load %arg6[%c12_256, %c448_257] : memref<18x512xf32, #tpu.memory_space<vmem>>, vector<3x32xf32>
    tpu.vector_store %arg6[%c12_256, %c448_257], %171 {strides = array<i32>} : memref<18x512xf32, #tpu.memory_space<vmem>>, vector<3x32xf32>,
    %c109 = arith.constant 109 : index
    %c0_258 = arith.constant 0 : index
    %173 = vector.load %arg5[%c109, %c0_258] : memref<128x32xf32, #tpu.memory_space<vmem>>, vector<3x32xf32>
    %c12_259 = arith.constant 12 : index
    %c480_260 = arith.constant 480 : index
    %174 = vector.load %arg6[%c12_259, %c480_260] : memref<18x512xf32, #tpu.memory_space<vmem>>, vector<3x32xf32>
    tpu.vector_store %arg6[%c12_259, %c480_260], %173 {strides = array<i32>} : memref<18x512xf32, #tpu.memory_space<vmem>>, vector<3x32xf32>,
    %c96_261 = arith.constant 96 : index
    %c0_262 = arith.constant 0 : index
    %175 = vector.load %arg5[%c96_261, %c0_262] : memref<128x32xf32, #tpu.memory_space<vmem>>, vector<3x32xf32>
    %c15 = arith.constant 15 : index
    %c0_263 = arith.constant 0 : index
    %176 = vector.load %arg6[%c15, %c0_263] : memref<18x512xf32, #tpu.memory_space<vmem>>, vector<3x32xf32>
    tpu.vector_store %arg6[%c15, %c0_263], %175 {strides = array<i32>} : memref<18x512xf32, #tpu.memory_space<vmem>>, vector<3x32xf32>,
    %c100_264 = arith.constant 100 : index
    %c0_265 = arith.constant 0 : index
    %177 = vector.load %arg5[%c100_264, %c0_265] : memref<128x32xf32, #tpu.memory_space<vmem>>, vector<3x32xf32>
    %c15_266 = arith.constant 15 : index
    %c32_267 = arith.constant 32 : index
    %178 = vector.load %arg6[%c15_266, %c32_267] : memref<18x512xf32, #tpu.memory_space<vmem>>, vector<3x32xf32>
    tpu.vector_store %arg6[%c15_266, %c32_267], %177 {strides = array<i32>} : memref<18x512xf32, #tpu.memory_space<vmem>>, vector<3x32xf32>,
    %c97_268 = arith.constant 97 : index
    %c0_269 = arith.constant 0 : index
    %179 = vector.load %arg5[%c97_268, %c0_269] : memref<128x32xf32, #tpu.memory_space<vmem>>, vector<3x32xf32>
    %c15_270 = arith.constant 15 : index
    %c64_271 = arith.constant 64 : index
    %180 = vector.load %arg6[%c15_270, %c64_271] : memref<18x512xf32, #tpu.memory_space<vmem>>, vector<3x32xf32>
    tpu.vector_store %arg6[%c15_270, %c64_271], %179 {strides = array<i32>} : memref<18x512xf32, #tpu.memory_space<vmem>>, vector<3x32xf32>,
    %c101_272 = arith.constant 101 : index
    %c0_273 = arith.constant 0 : index
    %181 = vector.load %arg5[%c101_272, %c0_273] : memref<128x32xf32, #tpu.memory_space<vmem>>, vector<3x32xf32>
    %c15_274 = arith.constant 15 : index
    %c96_275 = arith.constant 96 : index
    %182 = vector.load %arg6[%c15_274, %c96_275] : memref<18x512xf32, #tpu.memory_space<vmem>>, vector<3x32xf32>
    tpu.vector_store %arg6[%c15_274, %c96_275], %181 {strides = array<i32>} : memref<18x512xf32, #tpu.memory_space<vmem>>, vector<3x32xf32>,
    %c104_276 = arith.constant 104 : index
    %c0_277 = arith.constant 0 : index
    %183 = vector.load %arg5[%c104_276, %c0_277] : memref<128x32xf32, #tpu.memory_space<vmem>>, vector<3x32xf32>
    %c15_278 = arith.constant 15 : index
    %c128_279 = arith.constant 128 : index
    %184 = vector.load %arg6[%c15_278, %c128_279] : memref<18x512xf32, #tpu.memory_space<vmem>>, vector<3x32xf32>
    tpu.vector_store %arg6[%c15_278, %c128_279], %183 {strides = array<i32>} : memref<18x512xf32, #tpu.memory_space<vmem>>, vector<3x32xf32>,
    %c108_280 = arith.constant 108 : index
    %c0_281 = arith.constant 0 : index
    %185 = vector.load %arg5[%c108_280, %c0_281] : memref<128x32xf32, #tpu.memory_space<vmem>>, vector<3x32xf32>
    %c15_282 = arith.constant 15 : index
    %c160_283 = arith.constant 160 : index
    %186 = vector.load %arg6[%c15_282, %c160_283] : memref<18x512xf32, #tpu.memory_space<vmem>>, vector<3x32xf32>
    tpu.vector_store %arg6[%c15_282, %c160_283], %185 {strides = array<i32>} : memref<18x512xf32, #tpu.memory_space<vmem>>, vector<3x32xf32>,
    %c105_284 = arith.constant 105 : index
    %c0_285 = arith.constant 0 : index
    %187 = vector.load %arg5[%c105_284, %c0_285] : memref<128x32xf32, #tpu.memory_space<vmem>>, vector<3x32xf32>
    %c15_286 = arith.constant 15 : index
    %c192_287 = arith.constant 192 : index
    %188 = vector.load %arg6[%c15_286, %c192_287] : memref<18x512xf32, #tpu.memory_space<vmem>>, vector<3x32xf32>
    tpu.vector_store %arg6[%c15_286, %c192_287], %187 {strides = array<i32>} : memref<18x512xf32, #tpu.memory_space<vmem>>, vector<3x32xf32>,
    %c109_288 = arith.constant 109 : index
    %c0_289 = arith.constant 0 : index
    %189 = vector.load %arg5[%c109_288, %c0_289] : memref<128x32xf32, #tpu.memory_space<vmem>>, vector<3x32xf32>
    %c15_290 = arith.constant 15 : index
    %c224_291 = arith.constant 224 : index
    %190 = vector.load %arg6[%c15_290, %c224_291] : memref<18x512xf32, #tpu.memory_space<vmem>>, vector<3x32xf32>
    tpu.vector_store %arg6[%c15_290, %c224_291], %189 {strides = array<i32>} : memref<18x512xf32, #tpu.memory_space<vmem>>, vector<3x32xf32>,
    %c112 = arith.constant 112 : index
    %c0_292 = arith.constant 0 : index
    %191 = vector.load %arg5[%c112, %c0_292] : memref<128x32xf32, #tpu.memory_space<vmem>>, vector<3x32xf32>
    %c15_293 = arith.constant 15 : index
    %c256_294 = arith.constant 256 : index
    %192 = vector.load %arg6[%c15_293, %c256_294] : memref<18x512xf32, #tpu.memory_space<vmem>>, vector<3x32xf32>
    tpu.vector_store %arg6[%c15_293, %c256_294], %191 {strides = array<i32>} : memref<18x512xf32, #tpu.memory_space<vmem>>, vector<3x32xf32>,
    %c116 = arith.constant 116 : index
    %c0_295 = arith.constant 0 : index
    %193 = vector.load %arg5[%c116, %c0_295] : memref<128x32xf32, #tpu.memory_space<vmem>>, vector<3x32xf32>
    %c15_296 = arith.constant 15 : index
    %c288_297 = arith.constant 288 : index
    %194 = vector.load %arg6[%c15_296, %c288_297] : memref<18x512xf32, #tpu.memory_space<vmem>>, vector<3x32xf32>
    tpu.vector_store %arg6[%c15_296, %c288_297], %193 {strides = array<i32>} : memref<18x512xf32, #tpu.memory_space<vmem>>, vector<3x32xf32>,
    %c113 = arith.constant 113 : index
    %c0_298 = arith.constant 0 : index
    %195 = vector.load %arg5[%c113, %c0_298] : memref<128x32xf32, #tpu.memory_space<vmem>>, vector<3x32xf32>
    %c15_299 = arith.constant 15 : index
    %c320_300 = arith.constant 320 : index
    %196 = vector.load %arg6[%c15_299, %c320_300] : memref<18x512xf32, #tpu.memory_space<vmem>>, vector<3x32xf32>
    tpu.vector_store %arg6[%c15_299, %c320_300], %195 {strides = array<i32>} : memref<18x512xf32, #tpu.memory_space<vmem>>, vector<3x32xf32>,
    %c117 = arith.constant 117 : index
    %c0_301 = arith.constant 0 : index
    %197 = vector.load %arg5[%c117, %c0_301] : memref<128x32xf32, #tpu.memory_space<vmem>>, vector<3x32xf32>
    %c15_302 = arith.constant 15 : index
    %c352_303 = arith.constant 352 : index
    %198 = vector.load %arg6[%c15_302, %c352_303] : memref<18x512xf32, #tpu.memory_space<vmem>>, vector<3x32xf32>
    tpu.vector_store %arg6[%c15_302, %c352_303], %197 {strides = array<i32>} : memref<18x512xf32, #tpu.memory_space<vmem>>, vector<3x32xf32>,
    %c120 = arith.constant 120 : index
    %c0_304 = arith.constant 0 : index
    %199 = vector.load %arg5[%c120, %c0_304] : memref<128x32xf32, #tpu.memory_space<vmem>>, vector<3x32xf32>
    %c15_305 = arith.constant 15 : index
    %c384_306 = arith.constant 384 : index
    %200 = vector.load %arg6[%c15_305, %c384_306] : memref<18x512xf32, #tpu.memory_space<vmem>>, vector<3x32xf32>
    tpu.vector_store %arg6[%c15_305, %c384_306], %199 {strides = array<i32>} : memref<18x512xf32, #tpu.memory_space<vmem>>, vector<3x32xf32>,
    %c124 = arith.constant 124 : index
    %c0_307 = arith.constant 0 : index
    %201 = vector.load %arg5[%c124, %c0_307] : memref<128x32xf32, #tpu.memory_space<vmem>>, vector<3x32xf32>
    %c15_308 = arith.constant 15 : index
    %c416_309 = arith.constant 416 : index
    %202 = vector.load %arg6[%c15_308, %c416_309] : memref<18x512xf32, #tpu.memory_space<vmem>>, vector<3x32xf32>
    tpu.vector_store %arg6[%c15_308, %c416_309], %201 {strides = array<i32>} : memref<18x512xf32, #tpu.memory_space<vmem>>, vector<3x32xf32>,
    %c121 = arith.constant 121 : index
    %c0_310 = arith.constant 0 : index
    %203 = vector.load %arg5[%c121, %c0_310] : memref<128x32xf32, #tpu.memory_space<vmem>>, vector<3x32xf32>
    %c15_311 = arith.constant 15 : index
    %c448_312 = arith.constant 448 : index
    %204 = vector.load %arg6[%c15_311, %c448_312] : memref<18x512xf32, #tpu.memory_space<vmem>>, vector<3x32xf32>
    tpu.vector_store %arg6[%c15_311, %c448_312], %203 {strides = array<i32>} : memref<18x512xf32, #tpu.memory_space<vmem>>, vector<3x32xf32>,
    %c125 = arith.constant 125 : index
    %c0_313 = arith.constant 0 : index
    %205 = vector.load %arg5[%c125, %c0_313] : memref<128x32xf32, #tpu.memory_space<vmem>>, vector<3x32xf32>
    %c15_314 = arith.constant 15 : index
    %c480_315 = arith.constant 480 : index
    %206 = vector.load %arg6[%c15_314, %c480_315] : memref<18x512xf32, #tpu.memory_space<vmem>>, vector<3x32xf32>
    tpu.vector_store %arg6[%c15_314, %c480_315], %205 {strides = array<i32>} : memref<18x512xf32, #tpu.memory_space<vmem>>, vector<3x32xf32>,
    %c0_316 = arith.constant 0 : index
    %c0_317 = arith.constant 0 : index
    %207 = vector.load %arg6[%c0_316, %c0_317] : memref<18x512xf32, #tpu.memory_space<vmem>>, vector<18x512xf32>
    %c192_318 = arith.constant 192 : index
    %c0_319 = arith.constant 0 : index
    %208 = vector.load %arg2[%c192_318, %c0_319] : memref<1520x64xbf16, #tpu.memory_space<vmem>>, vector<512x64xbf16>
    %209 = arith.truncf %207 : vector<18x512xf32> to vector<18x512xbf16>
    %cst_320 = arith.constant dense<0.000000e+00> : vector<18x64xf32>
    %210 = tpu.matmul %209, %208, %cst_320 {dimension_numbers = #tpu.dot_dimension_numbers<[1], [0], [0], [1], [0, 0, 1, 1], [], []>} : vector<18x512xbf16>, vector<512x64xbf16>, vector<18x64xf32> -> vector<18x64xf32>
    %c1_321 = arith.constant 1 : index
    %c0_322 = arith.constant 0 : index
    %211 = vector.load %arg3[%c1_321, %c0_322] : memref<9x128xf32, #tpu.memory_space<vmem>>, vector<1x64xf32>
    %212 = vector.broadcast %211 : vector<1x64xf32> to vector<18x64xf32>
    %213 = arith.addf %210, %212 : vector<18x64xf32>
    %cst_323 = arith.constant 0.000000e+00 : f32
    %214 = vector.broadcast %cst_323 : f32 to vector<18x64xf32>
    %215 = arith.maximumf %213, %214 : vector<18x64xf32>
    %c0_324 = arith.constant 0 : index
    %c0_325 = arith.constant 0 : index
    %216 = vector.load %arg7[%c0_324, %c0_325] : memref<18x64xf32, #tpu.memory_space<vmem>>, vector<18x64xf32>
    tpu.vector_store %arg7[%c0_324, %c0_325], %215 {strides = array<i32>} : memref<18x64xf32, #tpu.memory_space<vmem>>, vector<18x64xf32>,
    %c0_326 = arith.constant 0 : index
    %c0_327 = arith.constant 0 : index
    %217 = vector.load %arg7[%c0_326, %c0_327] : memref<18x64xf32, #tpu.memory_space<vmem>>, vector<1x64xf32>
    %c0_328 = arith.constant 0 : index
    %c0_329 = arith.constant 0 : index
    %218 = vector.load %arg8[%c0_328, %c0_329] : memref<2x576xf32, #tpu.memory_space<vmem>>, vector<1x64xf32>
    tpu.vector_store %arg8[%c0_328, %c0_329], %217 {strides = array<i32>} : memref<2x576xf32, #tpu.memory_space<vmem>>, vector<1x64xf32>,
    %c1_330 = arith.constant 1 : index
    %c0_331 = arith.constant 0 : index
    %219 = vector.load %arg7[%c1_330, %c0_331] : memref<18x64xf32, #tpu.memory_space<vmem>>, vector<1x64xf32>
    %c0_332 = arith.constant 0 : index
    %c64_333 = arith.constant 64 : index
    %220 = vector.load %arg8[%c0_332, %c64_333] : memref<2x576xf32, #tpu.memory_space<vmem>>, vector<1x64xf32>
    tpu.vector_store %arg8[%c0_332, %c64_333], %219 {strides = array<i32>} : memref<2x576xf32, #tpu.memory_space<vmem>>, vector<1x64xf32>,
    %c2 = arith.constant 2 : index
    %c0_334 = arith.constant 0 : index
    %221 = vector.load %arg7[%c2, %c0_334] : memref<18x64xf32, #tpu.memory_space<vmem>>, vector<1x64xf32>
    %c0_335 = arith.constant 0 : index
    %c128_336 = arith.constant 128 : index
    %222 = vector.load %arg8[%c0_335, %c128_336] : memref<2x576xf32, #tpu.memory_space<vmem>>, vector<1x64xf32>
    tpu.vector_store %arg8[%c0_335, %c128_336], %221 {strides = array<i32>} : memref<2x576xf32, #tpu.memory_space<vmem>>, vector<1x64xf32>,
    %c3_337 = arith.constant 3 : index
    %c0_338 = arith.constant 0 : index
    %223 = vector.load %arg7[%c3_337, %c0_338] : memref<18x64xf32, #tpu.memory_space<vmem>>, vector<1x64xf32>
    %c0_339 = arith.constant 0 : index
    %c192_340 = arith.constant 192 : index
    %224 = vector.load %arg8[%c0_339, %c192_340] : memref<2x576xf32, #tpu.memory_space<vmem>>, vector<1x64xf32>
    tpu.vector_store %arg8[%c0_339, %c192_340], %223 {strides = array<i32>} : memref<2x576xf32, #tpu.memory_space<vmem>>, vector<1x64xf32>,
    %c4_341 = arith.constant 4 : index
    %c0_342 = arith.constant 0 : index
    %225 = vector.load %arg7[%c4_341, %c0_342] : memref<18x64xf32, #tpu.memory_space<vmem>>, vector<1x64xf32>
    %c0_343 = arith.constant 0 : index
    %c256_344 = arith.constant 256 : index
    %226 = vector.load %arg8[%c0_343, %c256_344] : memref<2x576xf32, #tpu.memory_space<vmem>>, vector<1x64xf32>
    tpu.vector_store %arg8[%c0_343, %c256_344], %225 {strides = array<i32>} : memref<2x576xf32, #tpu.memory_space<vmem>>, vector<1x64xf32>,
    %c5_345 = arith.constant 5 : index
    %c0_346 = arith.constant 0 : index
    %227 = vector.load %arg7[%c5_345, %c0_346] : memref<18x64xf32, #tpu.memory_space<vmem>>, vector<1x64xf32>
    %c0_347 = arith.constant 0 : index
    %c320_348 = arith.constant 320 : index
    %228 = vector.load %arg8[%c0_347, %c320_348] : memref<2x576xf32, #tpu.memory_space<vmem>>, vector<1x64xf32>
    tpu.vector_store %arg8[%c0_347, %c320_348], %227 {strides = array<i32>} : memref<2x576xf32, #tpu.memory_space<vmem>>, vector<1x64xf32>,
    %c6_349 = arith.constant 6 : index
    %c0_350 = arith.constant 0 : index
    %229 = vector.load %arg7[%c6_349, %c0_350] : memref<18x64xf32, #tpu.memory_space<vmem>>, vector<1x64xf32>
    %c0_351 = arith.constant 0 : index
    %c384_352 = arith.constant 384 : index
    %230 = vector.load %arg8[%c0_351, %c384_352] : memref<2x576xf32, #tpu.memory_space<vmem>>, vector<1x64xf32>
    tpu.vector_store %arg8[%c0_351, %c384_352], %229 {strides = array<i32>} : memref<2x576xf32, #tpu.memory_space<vmem>>, vector<1x64xf32>,
    %c7 = arith.constant 7 : index
    %c0_353 = arith.constant 0 : index
    %231 = vector.load %arg7[%c7, %c0_353] : memref<18x64xf32, #tpu.memory_space<vmem>>, vector<1x64xf32>
    %c0_354 = arith.constant 0 : index
    %c448_355 = arith.constant 448 : index
    %232 = vector.load %arg8[%c0_354, %c448_355] : memref<2x576xf32, #tpu.memory_space<vmem>>, vector<1x64xf32>
    tpu.vector_store %arg8[%c0_354, %c448_355], %231 {strides = array<i32>} : memref<2x576xf32, #tpu.memory_space<vmem>>, vector<1x64xf32>,
    %c8_356 = arith.constant 8 : index
    %c0_357 = arith.constant 0 : index
    %233 = vector.load %arg7[%c8_356, %c0_357] : memref<18x64xf32, #tpu.memory_space<vmem>>, vector<1x64xf32>
    %c0_358 = arith.constant 0 : index
    %c512 = arith.constant 512 : index
    %234 = vector.load %arg8[%c0_358, %c512] : memref<2x576xf32, #tpu.memory_space<vmem>>, vector<1x64xf32>
    tpu.vector_store %arg8[%c0_358, %c512], %233 {strides = array<i32>} : memref<2x576xf32, #tpu.memory_space<vmem>>, vector<1x64xf32>,
    %c9_359 = arith.constant 9 : index
    %c0_360 = arith.constant 0 : index
    %235 = vector.load %arg7[%c9_359, %c0_360] : memref<18x64xf32, #tpu.memory_space<vmem>>, vector<1x64xf32>
    %c1_361 = arith.constant 1 : index
    %c0_362 = arith.constant 0 : index
    %236 = vector.load %arg8[%c1_361, %c0_362] : memref<2x576xf32, #tpu.memory_space<vmem>>, vector<1x64xf32>
    tpu.vector_store %arg8[%c1_361, %c0_362], %235 {strides = array<i32>} : memref<2x576xf32, #tpu.memory_space<vmem>>, vector<1x64xf32>,
    %c10 = arith.constant 10 : index
    %c0_363 = arith.constant 0 : index
    %237 = vector.load %arg7[%c10, %c0_363] : memref<18x64xf32, #tpu.memory_space<vmem>>, vector<1x64xf32>
    %c1_364 = arith.constant 1 : index
    %c64_365 = arith.constant 64 : index
    %238 = vector.load %arg8[%c1_364, %c64_365] : memref<2x576xf32, #tpu.memory_space<vmem>>, vector<1x64xf32>
    tpu.vector_store %arg8[%c1_364, %c64_365], %237 {strides = array<i32>} : memref<2x576xf32, #tpu.memory_space<vmem>>, vector<1x64xf32>,
    %c11 = arith.constant 11 : index
    %c0_366 = arith.constant 0 : index
    %239 = vector.load %arg7[%c11, %c0_366] : memref<18x64xf32, #tpu.memory_space<vmem>>, vector<1x64xf32>
    %c1_367 = arith.constant 1 : index
    %c128_368 = arith.constant 128 : index
    %240 = vector.load %arg8[%c1_367, %c128_368] : memref<2x576xf32, #tpu.memory_space<vmem>>, vector<1x64xf32>
    tpu.vector_store %arg8[%c1_367, %c128_368], %239 {strides = array<i32>} : memref<2x576xf32, #tpu.memory_space<vmem>>, vector<1x64xf32>,
    %c12_369 = arith.constant 12 : index
    %c0_370 = arith.constant 0 : index
    %241 = vector.load %arg7[%c12_369, %c0_370] : memref<18x64xf32, #tpu.memory_space<vmem>>, vector<1x64xf32>
    %c1_371 = arith.constant 1 : index
    %c192_372 = arith.constant 192 : index
    %242 = vector.load %arg8[%c1_371, %c192_372] : memref<2x576xf32, #tpu.memory_space<vmem>>, vector<1x64xf32>
    tpu.vector_store %arg8[%c1_371, %c192_372], %241 {strides = array<i32>} : memref<2x576xf32, #tpu.memory_space<vmem>>, vector<1x64xf32>,
    %c13_373 = arith.constant 13 : index
    %c0_374 = arith.constant 0 : index
    %243 = vector.load %arg7[%c13_373, %c0_374] : memref<18x64xf32, #tpu.memory_space<vmem>>, vector<1x64xf32>
    %c1_375 = arith.constant 1 : index
    %c256_376 = arith.constant 256 : index
    %244 = vector.load %arg8[%c1_375, %c256_376] : memref<2x576xf32, #tpu.memory_space<vmem>>, vector<1x64xf32>
    tpu.vector_store %arg8[%c1_375, %c256_376], %243 {strides = array<i32>} : memref<2x576xf32, #tpu.memory_space<vmem>>, vector<1x64xf32>,
    %c14 = arith.constant 14 : index
    %c0_377 = arith.constant 0 : index
    %245 = vector.load %arg7[%c14, %c0_377] : memref<18x64xf32, #tpu.memory_space<vmem>>, vector<1x64xf32>
    %c1_378 = arith.constant 1 : index
    %c320_379 = arith.constant 320 : index
    %246 = vector.load %arg8[%c1_378, %c320_379] : memref<2x576xf32, #tpu.memory_space<vmem>>, vector<1x64xf32>
    tpu.vector_store %arg8[%c1_378, %c320_379], %245 {strides = array<i32>} : memref<2x576xf32, #tpu.memory_space<vmem>>, vector<1x64xf32>,
    %c15_380 = arith.constant 15 : index
    %c0_381 = arith.constant 0 : index
    %247 = vector.load %arg7[%c15_380, %c0_381] : memref<18x64xf32, #tpu.memory_space<vmem>>, vector<1x64xf32>
    %c1_382 = arith.constant 1 : index
    %c384_383 = arith.constant 384 : index
    %248 = vector.load %arg8[%c1_382, %c384_383] : memref<2x576xf32, #tpu.memory_space<vmem>>, vector<1x64xf32>
    tpu.vector_store %arg8[%c1_382, %c384_383], %247 {strides = array<i32>} : memref<2x576xf32, #tpu.memory_space<vmem>>, vector<1x64xf32>,
    %c16_384 = arith.constant 16 : index
    %c0_385 = arith.constant 0 : index
    %249 = vector.load %arg7[%c16_384, %c0_385] : memref<18x64xf32, #tpu.memory_space<vmem>>, vector<1x64xf32>
    %c1_386 = arith.constant 1 : index
    %c448_387 = arith.constant 448 : index
    %250 = vector.load %arg8[%c1_386, %c448_387] : memref<2x576xf32, #tpu.memory_space<vmem>>, vector<1x64xf32>
    tpu.vector_store %arg8[%c1_386, %c448_387], %249 {strides = array<i32>} : memref<2x576xf32, #tpu.memory_space<vmem>>, vector<1x64xf32>,
    %c17_388 = arith.constant 17 : index
    %c0_389 = arith.constant 0 : index
    %251 = vector.load %arg7[%c17_388, %c0_389] : memref<18x64xf32, #tpu.memory_space<vmem>>, vector<1x64xf32>
    %c1_390 = arith.constant 1 : index
    %c512_391 = arith.constant 512 : index
    %252 = vector.load %arg8[%c1_390, %c512_391] : memref<2x576xf32, #tpu.memory_space<vmem>>, vector<1x64xf32>
    tpu.vector_store %arg8[%c1_390, %c512_391], %251 {strides = array<i32>} : memref<2x576xf32, #tpu.memory_space<vmem>>, vector<1x64xf32>,
    %c0_392 = arith.constant 0 : index
    %c0_393 = arith.constant 0 : index
    %253 = vector.load %arg8[%c0_392, %c0_393] : memref<2x576xf32, #tpu.memory_space<vmem>>, vector<2x576xf32>
    %c704 = arith.constant 704 : index
    %c0_394 = arith.constant 0 : index
    %254 = vector.load %arg2[%c704, %c0_394] : memref<1520x64xbf16, #tpu.memory_space<vmem>>, vector<576x64xbf16>
    %255 = arith.truncf %253 : vector<2x576xf32> to vector<2x576xbf16>
    %cst_395 = arith.constant dense<0.000000e+00> : vector<2x64xf32>
    %256 = tpu.matmul %255, %254, %cst_395 {dimension_numbers = #tpu.dot_dimension_numbers<[1], [0], [0], [1], [0, 0, 1, 1], [], []>} : vector<2x576xbf16>, vector<576x64xbf16>, vector<2x64xf32> -> vector<2x64xf32>
    %c2_396 = arith.constant 2 : index
    %c0_397 = arith.constant 0 : index
    %257 = vector.load %arg3[%c2_396, %c0_397] : memref<9x128xf32, #tpu.memory_space<vmem>>, vector<1x64xf32>
    %258 = vector.broadcast %257 : vector<1x64xf32> to vector<2x64xf32>
    %259 = arith.addf %256, %258 : vector<2x64xf32>
    %cst_398 = arith.constant 0.000000e+00 : f32
    %260 = vector.broadcast %cst_398 : f32 to vector<2x64xf32>
    %261 = arith.maximumf %259, %260 : vector<2x64xf32>
    %c1280 = arith.constant 1280 : index
    %c0_399 = arith.constant 0 : index
    %262 = vector.load %arg2[%c1280, %c0_399] : memref<1520x64xbf16, #tpu.memory_space<vmem>>, vector<64x4xbf16>
    %263 = arith.truncf %261 : vector<2x64xf32> to vector<2x64xbf16>
    %cst_400 = arith.constant dense<0.000000e+00> : vector<2x4xf32>
    %264 = tpu.matmul %263, %262, %cst_400 {dimension_numbers = #tpu.dot_dimension_numbers<[1], [0], [0], [1], [0, 0, 1, 1], [], []>} : vector<2x64xbf16>, vector<64x4xbf16>, vector<2x4xf32> -> vector<2x4xf32>
    %c3_401 = arith.constant 3 : index
    %c0_402 = arith.constant 0 : index
    %265 = vector.load %arg3[%c3_401, %c0_402] : memref<9x128xf32, #tpu.memory_space<vmem>>, vector<1x4xf32>
    %266 = vector.broadcast %265 : vector<1x4xf32> to vector<2x4xf32>
    %267 = arith.addf %264, %266 : vector<2x4xf32>
    %cst_403 = arith.constant 0.000000e+00 : f32
    %268 = vector.broadcast %cst_403 : f32 to vector<2x4xf32>
    %269 = arith.maximumf %267, %268 : vector<2x4xf32>
    %c0_404 = arith.constant 0 : index
    %c0_405 = arith.constant 0 : index
    %270 = vector.load %arg1[%c0_404, %c0_405] : memref<2x8xf32, #tpu.memory_space<vmem>>, vector<2x8xf32>
    %c1344 = arith.constant 1344 : index
    %c0_406 = arith.constant 0 : index
    %271 = vector.load %arg2[%c1344, %c0_406] : memref<1520x64xbf16, #tpu.memory_space<vmem>>, vector<8x40xbf16>
    %272 = arith.truncf %270 : vector<2x8xf32> to vector<2x8xbf16>
    %cst_407 = arith.constant dense<0.000000e+00> : vector<2x40xf32>
    %273 = tpu.matmul %272, %271, %cst_407 {dimension_numbers = #tpu.dot_dimension_numbers<[1], [0], [0], [1], [0, 0, 1, 1], [], []>} : vector<2x8xbf16>, vector<8x40xbf16>, vector<2x40xf32> -> vector<2x40xf32>
    %c4_408 = arith.constant 4 : index
    %c0_409 = arith.constant 0 : index
    %274 = vector.load %arg3[%c4_408, %c0_409] : memref<9x128xf32, #tpu.memory_space<vmem>>, vector<1x40xf32>
    %275 = vector.broadcast %274 : vector<1x40xf32> to vector<2x40xf32>
    %276 = arith.addf %273, %275 : vector<2x40xf32>
    %cst_410 = arith.constant 0.000000e+00 : f32
    %277 = vector.broadcast %cst_410 : f32 to vector<2x40xf32>
    %278 = arith.maximumf %276, %277 : vector<2x40xf32>
    %c1360 = arith.constant 1360 : index
    %c0_411 = arith.constant 0 : index
    %279 = vector.load %arg2[%c1360, %c0_411] : memref<1520x64xbf16, #tpu.memory_space<vmem>>, vector<40x60xbf16>
    %280 = arith.truncf %278 : vector<2x40xf32> to vector<2x40xbf16>
    %cst_412 = arith.constant dense<0.000000e+00> : vector<2x60xf32>
    %281 = tpu.matmul %280, %279, %cst_412 {dimension_numbers = #tpu.dot_dimension_numbers<[1], [0], [0], [1], [0, 0, 1, 1], [], []>} : vector<2x40xbf16>, vector<40x60xbf16>, vector<2x60xf32> -> vector<2x60xf32>
    %c5_413 = arith.constant 5 : index
    %c0_414 = arith.constant 0 : index
    %282 = vector.load %arg3[%c5_413, %c0_414] : memref<9x128xf32, #tpu.memory_space<vmem>>, vector<1x60xf32>
    %283 = vector.broadcast %282 : vector<1x60xf32> to vector<2x60xf32>
    %284 = arith.addf %281, %283 : vector<2x60xf32>
    %cst_415 = arith.constant 0.000000e+00 : f32
    %285 = vector.broadcast %cst_415 : f32 to vector<2x60xf32>
    %286 = arith.maximumf %284, %285 : vector<2x60xf32>
    %c1408 = arith.constant 1408 : index
    %c0_416 = arith.constant 0 : index
    %287 = vector.load %arg2[%c1408, %c0_416] : memref<1520x64xbf16, #tpu.memory_space<vmem>>, vector<60x20xbf16>
    %288 = arith.truncf %286 : vector<2x60xf32> to vector<2x60xbf16>
    %cst_417 = arith.constant dense<0.000000e+00> : vector<2x20xf32>
    %289 = tpu.matmul %288, %287, %cst_417 {dimension_numbers = #tpu.dot_dimension_numbers<[1], [0], [0], [1], [0, 0, 1, 1], [], []>} : vector<2x60xbf16>, vector<60x20xbf16>, vector<2x20xf32> -> vector<2x20xf32>
    %c6_418 = arith.constant 6 : index
    %c0_419 = arith.constant 0 : index
    %290 = vector.load %arg3[%c6_418, %c0_419] : memref<9x128xf32, #tpu.memory_space<vmem>>, vector<1x20xf32>
    %291 = vector.broadcast %290 : vector<1x20xf32> to vector<2x20xf32>
    %292 = arith.addf %289, %291 : vector<2x20xf32>
    %cst_420 = arith.constant 0.000000e+00 : f32
    %293 = vector.broadcast %cst_420 : f32 to vector<2x20xf32>
    %294 = arith.maximumf %292, %293 : vector<2x20xf32>
    %c1472 = arith.constant 1472 : index
    %c0_421 = arith.constant 0 : index
    %295 = vector.load %arg2[%c1472, %c0_421] : memref<1520x64xbf16, #tpu.memory_space<vmem>>, vector<20x4xbf16>
    %296 = arith.truncf %294 : vector<2x20xf32> to vector<2x20xbf16>
    %cst_422 = arith.constant dense<0.000000e+00> : vector<2x4xf32>
    %297 = tpu.matmul %296, %295, %cst_422 {dimension_numbers = #tpu.dot_dimension_numbers<[1], [0], [0], [1], [0, 0, 1, 1], [], []>} : vector<2x20xbf16>, vector<20x4xbf16>, vector<2x4xf32> -> vector<2x4xf32>
    %c7_423 = arith.constant 7 : index
    %c0_424 = arith.constant 0 : index
    %298 = vector.load %arg3[%c7_423, %c0_424] : memref<9x128xf32, #tpu.memory_space<vmem>>, vector<1x4xf32>
    %299 = vector.broadcast %298 : vector<1x4xf32> to vector<2x4xf32>
    %300 = arith.addf %297, %299 : vector<2x4xf32>
    %cst_425 = arith.constant 0.000000e+00 : f32
    %301 = vector.broadcast %cst_425 : f32 to vector<2x4xf32>
    %302 = arith.maximumf %300, %301 : vector<2x4xf32>
    %c1504 = arith.constant 1504 : index
    %c0_426 = arith.constant 0 : index
    %303 = vector.load %arg2[%c1504, %c0_426] : memref<1520x64xbf16, #tpu.memory_space<vmem>>, vector<4x4xbf16>
    %c1508 = arith.constant 1508 : index
    %c0_427 = arith.constant 0 : index
    %304 = vector.load %arg2[%c1508, %c0_427] : memref<1520x64xbf16, #tpu.memory_space<vmem>>, vector<4x4xbf16>
    %305 = arith.truncf %269 : vector<2x4xf32> to vector<2x4xbf16>
    %cst_428 = arith.constant dense<0.000000e+00> : vector<2x4xf32>
    %306 = tpu.matmul %305, %303, %cst_428 {dimension_numbers = #tpu.dot_dimension_numbers<[1], [0], [0], [1], [0, 0, 1, 1], [], []>} : vector<2x4xbf16>, vector<4x4xbf16>, vector<2x4xf32> -> vector<2x4xf32>
    %307 = arith.truncf %302 : vector<2x4xf32> to vector<2x4xbf16>
    %cst_429 = arith.constant dense<0.000000e+00> : vector<2x4xf32>
    %308 = tpu.matmul %307, %304, %cst_429 {dimension_numbers = #tpu.dot_dimension_numbers<[1], [0], [0], [1], [0, 0, 1, 1], [], []>} : vector<2x4xbf16>, vector<4x4xbf16>, vector<2x4xf32> -> vector<2x4xf32>
    %309 = arith.addf %306, %308 : vector<2x4xf32>
    %c8_430 = arith.constant 8 : index
    %c0_431 = arith.constant 0 : index
    %310 = vector.load %arg3[%c8_430, %c0_431] : memref<9x128xf32, #tpu.memory_space<vmem>>, vector<1x4xf32>
    %311 = vector.broadcast %310 : vector<1x4xf32> to vector<2x4xf32>
    %312 = arith.addf %309, %311 : vector<2x4xf32>
    %313 = math.tanh %312 : vector<2x4xf32>
    %c0_432 = arith.constant 0 : index
    %c0_433 = arith.constant 0 : index
    %314 = vector.load %arg4[%c0_432, %c0_433] : memref<2x4xf32, #tpu.memory_space<vmem>>, vector<2x4xf32>
    tpu.vector_store %arg4[%c0_432, %c0_433], %313 {strides = array<i32>} : memref<2x4xf32, #tpu.memory_space<vmem>>, vector<2x4xf32>,
    return
  }
}

</mosaic_0001>

<llo_original>
// kernel: forward.1
$region0: #{forward.1}
  #allocation0 [shape = 'u32[]', space=smem, size = 0x4, offset = 0x4, fixed_abs, tag = 'smem constant byte address 0x4 - core index']
  #allocation1 [shape = 'u32[144,128]{1,0:T(1,128)}', space=vmem, size = 0x12000, scoped, tag = 'internal scratch']
  #allocation2 [shape = 'f32[128,32]{1,0:T(8,128)}', space=vmem, size = 0x10000, scoped, tag = 'scratch operand']
  #allocation3 [shape = 'f32[18,512]{1,0:T(8,128)}', space=vmem, size = 0xc000, scoped, tag = 'scratch operand']
  #allocation4 [shape = 'f32[18,64]{1,0:T(8,128)}', space=vmem, size = 0x3000, scoped, tag = 'scratch operand']
  #allocation5 [shape = 'f32[2,576]{1,0:T(2,128)}', space=vmem, size = 0x1400, scoped, tag = 'scratch operand']
  %s0 = inlined_call_operand.vmem [shape: bf16[128,192], index: 0, kind: input, shape index: {}]
  %s1 = inlined_call_operand.vmem [shape: f32[2,8], index: 1, kind: input, shape index: {}]
  %s2 = inlined_call_operand.vmem [shape: bf16[1520,64], index: 2, kind: input, shape index: {}]
  %s3 = inlined_call_operand.vmem [shape: f32[9,128], index: 3, kind: input, shape index: {}]
  %s4 = inlined_call_operand.hbm [shape: f32[2,4], index: 4, kind: output, shape index: {}]
  %s5 = sld [smem:[#allocation0]]
  $region26: #{forward.1} parent=0
    _
  %s7 = ssub.s32 1, %s5
  %s8 = scalar_select 0, %s7, %s5
  $region1: #{forward.1} parent=0
    #allocation6 [shape = 'u8[1024]{0}', space=vmem, size = 0x400, scoped, tag = 'output window, operand 0, single buffered']
    #allocation7 [shape = 's32[1]{0}', space=sflag, size = 0x4, scoped, tag = 'scoped memory for forward.1']
    %9 = vsyncpa [#allocation7], 0
    // Predicated region
    $region2: #{forward.1} parent=1 // pred_check
      _
    $region3: #{forward.1} parent=1 // pred_check_branch
      %11 = sbr.rel (0) target = $region5
    $region4: #{forward.1} parent=1 // pred_region
      _
    $region5: #{forward.1} parent=1 // pred_fallthru
      _
    // Predicated region
    $region6: #{forward.1} parent=1 // pred_check
      _
    $region7: #{forward.1} parent=1 // pred_check_branch
      %13 = sbr.rel (0) target = $region9
    $region8: #{forward.1} parent=1 // pred_region
      _
    $region9: #{forward.1} parent=1 // pred_fallthru
      _
    // Predicated region
    $region10: #{forward.1} parent=1 // pred_check
      _
    $region11: #{forward.1} parent=1 // pred_check_branch
      %15 = sbr.rel (0) target = $region13
    $region12: #{forward.1} parent=1 // pred_region
      _
    $region13: #{forward.1} parent=1 // pred_fallthru
      _
    // Predicated region
    $region14: #{forward.1} parent=1 // pred_check
      _
    $region15: #{forward.1} parent=1 // pred_check_branch
      %17 = sbr.rel (0) target = $region17
    $region16: #{forward.1} parent=1 // pred_region
      _
    $region17: #{forward.1} parent=1 // pred_fallthru
      _
    %v19 = vld [vmem:[%s0] sm:$0xff]
    %v20 = vld [vmem:[%s0 + $0x8] sm:$0xff]
    %v21 = vld [vmem:[%s0 + $0x10] sm:$0xff]
    %v22 = vld [vmem:[%s0 + $0x18] sm:$0xff]
    %v23 = vld [vmem:[%s0 + $0x20] sm:$0xff]
    %v24 = vld [vmem:[%s0 + $0x28] sm:$0xff]
    %v25 = vld [vmem:[%s0 + $0x30] sm:$0xff]
    %v26 = vld [vmem:[%s0 + $0x38] sm:$0xff]
    %v27 = vld [vmem:[%s0 + $0x40] sm:$0xff]
    %v28 = vld [vmem:[%s0 + $0x48] sm:$0xff]
    %v29 = vld [vmem:[%s0 + $0x50] sm:$0xff]
    %v30 = vld [vmem:[%s0 + $0x58] sm:$0xff]
    %v31 = vld [vmem:[%s0 + $0x60] sm:$0xff]
    %v32 = vld [vmem:[%s0 + $0x68] sm:$0xff]
    %v33 = vld [vmem:[%s0 + $0x70] sm:$0xff]
    %v34 = vld [vmem:[%s0 + $0x78] sm:$0xff]
    %v35 = vunpack.c.l.bf16 %v19
    %v36 = vunpack.c.h.bf16 %v19
    %v37 = vunpack.c.l.bf16 %v20
    %v38 = vunpack.c.h.bf16 %v20
    %v39 = vunpack.c.l.bf16 %v21
    %v40 = vunpack.c.h.bf16 %v21
    %v41 = vunpack.c.l.bf16 %v22
    %v42 = vunpack.c.h.bf16 %v22
    %v43 = vunpack.c.l.bf16 %v23
    %v44 = vunpack.c.h.bf16 %v23
    %v45 = vunpack.c.l.bf16 %v24
    %v46 = vunpack.c.h.bf16 %v24
    %v47 = vunpack.c.l.bf16 %v25
    %v48 = vunpack.c.h.bf16 %v25
    %v49 = vunpack.c.l.bf16 %v26
    %v50 = vunpack.c.h.bf16 %v26
    %v51 = vunpack.c.l.bf16 %v27
    %v52 = vunpack.c.h.bf16 %v27
    %v53 = vunpack.c.l.bf16 %v28
    %v54 = vunpack.c.h.bf16 %v28
    %v55 = vunpack.c.l.bf16 %v29
    %v56 = vunpack.c.h.bf16 %v29
    %v57 = vunpack.c.l.bf16 %v30
    %v58 = vunpack.c.h.bf16 %v30
    %v59 = vunpack.c.l.bf16 %v31
    %v60 = vunpack.c.h.bf16 %v31
    %v61 = vunpack.c.l.bf16 %v32
    %v62 = vunpack.c.h.bf16 %v32
    %v63 = vunpack.c.l.bf16 %v33
    %v64 = vunpack.c.h.bf16 %v33
    %v65 = vunpack.c.l.bf16 %v34
    %v66 = vunpack.c.h.bf16 %v34
    %v67 = vsub.f32 %v35, 127.0
    %v68 = vsub.f32 %v36, 127.0
    %v69 = vsub.f32 %v37, 127.0
    %v70 = vsub.f32 %v38, 127.0
    %v71 = vsub.f32 %v39, 127.0
    %v72 = vsub.f32 %v40, 127.0
    %v73 = vsub.f32 %v41, 127.0
    %v74 = vsub.f32 %v42, 127.0
    %v75 = vsub.f32 %v43, 127.0
    %v76 = vsub.f32 %v44, 127.0
    %v77 = vsub.f32 %v45, 127.0
    %v78 = vsub.f32 %v46, 127.0
    %v79 = vsub.f32 %v47, 127.0
    %v80 = vsub.f32 %v48, 127.0
    %v81 = vsub.f32 %v49, 127.0
    %v82 = vsub.f32 %v50, 127.0
    %v83 = vsub.f32 %v51, 127.0
    %v84 = vsub.f32 %v52, 127.0
    %v85 = vsub.f32 %v53, 127.0
    %v86 = vsub.f32 %v54, 127.0
    %v87 = vsub.f32 %v55, 127.0
    %v88 = vsub.f32 %v56, 127.0
    %v89 = vsub.f32 %v57, 127.0
    %v90 = vsub.f32 %v58, 127.0
    %v91 = vsub.f32 %v59, 127.0
    %v92 = vsub.f32 %v60, 127.0
    %v93 = vsub.f32 %v61, 127.0
    %v94 = vsub.f32 %v62, 127.0
    %v95 = vsub.f32 %v63, 127.0
    %v96 = vsub.f32 %v64, 127.0
    %v97 = vsub.f32 %v65, 127.0
    %v98 = vsub.f32 %v66, 127.0
    %v99 = vmul.f32 %v67, 0.003921569
    %v100 = vmul.f32 %v68, 0.003921569
    %v101 = vmul.f32 %v69, 0.003921569
    %v102 = vmul.f32 %v70, 0.003921569
    %v103 = vmul.f32 %v71, 0.003921569
    %v104 = vmul.f32 %v72, 0.003921569
    %v105 = vmul.f32 %v73, 0.003921569
    %v106 = vmul.f32 %v74, 0.003921569
    %v107 = vmul.f32 %v75, 0.003921569
    %v108 = vmul.f32 %v76, 0.003921569
    %v109 = vmul.f32 %v77, 0.003921569
    %v110 = vmul.f32 %v78, 0.003921569
    %v111 = vmul.f32 %v79, 0.003921569
    %v112 = vmul.f32 %v80, 0.003921569
    %v113 = vmul.f32 %v81, 0.003921569
    %v114 = vmul.f32 %v82, 0.003921569
    %v115 = vmul.f32 %v83, 0.003921569
    %v116 = vmul.f32 %v84, 0.003921569
    %v117 = vmul.f32 %v85, 0.003921569
    %v118 = vmul.f32 %v86, 0.003921569
    %v119 = vmul.f32 %v87, 0.003921569
    %v120 = vmul.f32 %v88, 0.003921569
    %v121 = vmul.f32 %v89, 0.003921569
    %v122 = vmul.f32 %v90, 0.003921569
    %v123 = vmul.f32 %v91, 0.003921569
    %v124 = vmul.f32 %v92, 0.003921569
    %v125 = vmul.f32 %v93, 0.003921569
    %v126 = vmul.f32 %v94, 0.003921569
    %v127 = vmul.f32 %v95, 0.003921569
    %v128 = vmul.f32 %v96, 0.003921569
    %v129 = vmul.f32 %v97, 0.003921569
    %v130 = vmul.f32 %v98, 0.003921569
    %v131 = vld [vmem:[%s2] sm:$0xf]
    %v132 = vld [vmem:[%s2 + $0x4] sm:$0xf]
    %v133 = vld [vmem:[%s2 + $0x8] sm:$0xf]
    %v134 = vld [vmem:[%s2 + $0xc] sm:$0xf]
    %v135 = vld [vmem:[%s2 + $0x10] sm:$0xf]
    %v136 = vld [vmem:[%s2 + $0x14] sm:$0xf]
    %v137 = vld [vmem:[%s2 + $0x18] sm:$0xf]
    %v138 = vld [vmem:[%s2 + $0x1c] sm:$0xf]
    %v139 = vld [vmem:[%s2 + $0x20] sm:$0xf]
    %v140 = vld [vmem:[%s2 + $0x24] sm:$0xf]
    %v141 = vld [vmem:[%s2 + $0x28] sm:$0xf]
    %v142 = vld [vmem:[%s2 + $0x2c] sm:$0xf]
    %v143 = vld [vmem:[%s2 + $0x30] sm:$0xf]
    %v144 = vld [vmem:[%s2 + $0x34] sm:$0xf]
    %v145 = vld [vmem:[%s2 + $0x38] sm:$0xf]
    %v146 = vld [vmem:[%s2 + $0x3c] sm:$0xf]
    %v147 = vld [vmem:[%s2 + $0x40] sm:$0xf]
    %v148 = vld [vmem:[%s2 + $0x44] sm:$0xf]
    %v149 = vld [vmem:[%s2 + $0x48] sm:$0xf]
    %v150 = vld [vmem:[%s2 + $0x4c] sm:$0xf]
    %v151 = vld [vmem:[%s2 + $0x50] sm:$0xf]
    %v152 = vld [vmem:[%s2 + $0x54] sm:$0xf]
    %v153 = vld [vmem:[%s2 + $0x58] sm:$0xf]
    %v154 = vld [vmem:[%s2 + $0x5c] sm:$0xf]
    %v155 = vpack.c.bf16 %v101, %v99
    %v156 = vpack.c.bf16 %v102, %v100
    %v157 = vpack.c.bf16 %v105, %v103
    %v158 = vpack.c.bf16 %v106, %v104
    %v159 = vpack.c.bf16 %v109, %v107
    %v160 = vpack.c.bf16 %v110, %v108
    %v161 = vpack.c.bf16 %v113, %v111
    %v162 = vpack.c.bf16 %v114, %v112
    %v163 = vpack.c.bf16 %v117, %v115
    %v164 = vpack.c.bf16 %v118, %v116
    %v165 = vpack.c.bf16 %v121, %v119
    %v166 = vpack.c.bf16 %v122, %v120
    %v167 = vpack.c.bf16 %v125, %v123
    %v168 = vpack.c.bf16 %v126, %v124
    %v169 = vpack.c.bf16 %v129, %v127
    %v170 = vpack.c.bf16 %v130, %v128
    %v171 = vld [vmem:[%s3] sm:$0x1]
    %v172 = vlaneseq
    %v173 = vshrl.u32 %v172, 7
    %v174 = vsub.s32 0, %v173
    %v175 = vrot.slane %v171, %v174
    %v200 = vunpack.c.l.b16 %v131
    %v201 = vunpack.c.l.b16 %v132
    %v202 = vunpack.c.l.b16 %v133
    %v203 = vunpack.c.l.b16 %v134
    %v204 = vunpack.c.l.b16 %v135
    %v205 = vunpack.c.l.b16 %v136
    %v206 = vunpack.c.l.b16 %v137
    %v207 = vunpack.c.l.b16 %v138
    %v208 = vunpack.c.l.b16 %v139
    %v209 = vunpack.c.l.b16 %v140
    %v210 = vunpack.c.l.b16 %v141
    %v211 = vunpack.c.l.b16 %v142
    %v212 = vunpack.c.l.b16 %v143
    %v213 = vunpack.c.l.b16 %v144
    %v214 = vunpack.c.l.b16 %v145
    %v215 = vunpack.c.l.b16 %v146
    %v216 = vunpack.c.l.b16 %v147
    %v217 = vunpack.c.l.b16 %v148
    %v218 = vunpack.c.l.b16 %v149
    %v219 = vunpack.c.l.b16 %v150
    %v220 = vunpack.c.l.b16 %v151
    %v221 = vunpack.c.l.b16 %v152
    %v222 = vunpack.c.l.b16 %v153
    %v223 = vunpack.c.l.b16 %v154
    %v224 = vpack.c.b16 %v201, %v200
    %v225 = vpack.c.b16 %v203, %v202
    %v226 = vpack.c.b16 %v205, %v204
    %v227 = vpack.c.b16 %v207, %v206
    %v228 = vpack.c.b16 %v209, %v208
    %v229 = vpack.c.b16 %v211, %v210
    %v230 = vpack.c.b16 %v213, %v212
    %v231 = vpack.c.b16 %v215, %v214
    %v232 = vpack.c.b16 %v217, %v216
    %v233 = vpack.c.b16 %v219, %v218
    %v234 = vpack.c.b16 %v221, %v220
    %v235 = vpack.c.b16 %v223, %v222
    %vm248 = vcmask 523264
    %v250 = vsel %vm248, %v156, 0
    %v253 = vsel %vm248, %v158, 0
    %v256 = vsel %vm248, %v160, 0
    %v259 = vsel %vm248, %v162, 0
    %v262 = vsel %vm248, %v164, 0
    %v265 = vsel %vm248, %v166, 0
    %v268 = vsel %vm248, %v168, 0
    %v271 = vsel %vm248, %v170, 0
    %273 = vmatprep.subr.bf16.mxu0 0
    %274 = vmatpush1.bf16.msra.mxu0 %v224
    %275 = vmatprep.subr.bf16.mxu0 0
    %276 = vmatpush1.bf16.msra.mxu0 %v225
    %277 = vmatprep.subr.bf16.mxu0 0
    %278 = vmatpush1.bf16.msra.mxu0 %v226
    %279 = vmatprep.subr.bf16.mxu0 0
    %280 = vmatpush1.bf16.msra.mxu0 %v227
    %281 = vmatprep.subr.bf16.mxu0 0
    %282 = vmatpush1.bf16.msra.mxu0 %v228
    %283 = vmatprep.subr.bf16.mxu0 0
    %284 = vmatpush1.bf16.msra.mxu0 %v229
    %285 = vmatprep.subr.bf16.mxu0 0
    %286 = vmatpush1.bf16.msra.mxu0 %v230
    %287 = vmatprep.subr.bf16.mxu0 0
    %288 = vmatpush1.bf16.msra.mxu0 %v231
    %289 = vmatprep.subr.bf16.mxu0 0
    %290 = vmatpush1.bf16.msra.mxu0 %v232
    %291 = vmatprep.subr.bf16.mxu0 0
    %292 = vmatpush1.bf16.msra.mxu0 %v233
    %293 = vmatprep.subr.bf16.mxu0 0
    %294 = vmatpush1.bf16.msra.mxu0 %v234
    %295 = vmatprep.subr.bf16.mxu0 0
    %296 = vmatpush1.bf16.msra.mxu0 %v235
    %297 = vmatprep.subr.bf16.mxu0 0
    %298 = vmatpush1.bf16.msra.mxu0 0
    %299 = vmatprep.subr.bf16.mxu0 0
    %300 = vmatpush1.bf16.msra.mxu0 0
    %301 = vmatprep.subr.bf16.mxu0 0
    %302 = vmatpush1.bf16.msra.mxu0 0
    %303 = vmatprep.subr.bf16.mxu0 0
    %304 = vmatpush1.bf16.msra.mxu0 0
    %305 = vmatprep.mubr.bf16.mxu0 %v250
    %306 = vmatmul.mubr.bf16.gmra.mrb[0].mxu0 %v155
    %v307 = vpop.f32.mrb[0].mxu0
    %v308 = vadd.f32 %v175, %v307
    %v309 = vpop.f32.mrb[0].mxu0
    %v310 = vpop.f32.mrb[0].mxu0
    %v311 = vadd.f32 %v175, %v310
    %v312 = vpop.f32.mrb[0].mxu0
    %313 = vmatprep.mubr.bf16.mxu0 %v253
    %314 = vmatmul.mubr.bf16.gmra.mrb[0].mxu0 %v157
    %v315 = vpop.f32.mrb[0].mxu0
    %v316 = vadd.f32 %v175, %v315
    %v317 = vpop.f32.mrb[0].mxu0
    %v318 = vpop.f32.mrb[0].mxu0
    %v319 = vadd.f32 %v175, %v318
    %v320 = vpop.f32.mrb[0].mxu0
    %321 = vmatprep.mubr.bf16.mxu0 %v256
    %322 = vmatmul.mubr.bf16.gmra.mrb[0].mxu0 %v159
    %v323 = vpop.f32.mrb[0].mxu0
    %v324 = vadd.f32 %v175, %v323
    %v325 = vpop.f32.mrb[0].mxu0
    %v326 = vpop.f32.mrb[0].mxu0
    %v327 = vadd.f32 %v175, %v326
    %v328 = vpop.f32.mrb[0].mxu0
    %329 = vmatprep.mubr.bf16.mxu0 %v259
    %330 = vmatmul.mubr.bf16.gmra.mrb[0].mxu0 %v161
    %v331 = vpop.f32.mrb[0].mxu0
    %v332 = vadd.f32 %v175, %v331
    %v333 = vpop.f32.mrb[0].mxu0
    %v334 = vpop.f32.mrb[0].mxu0
    %v335 = vadd.f32 %v175, %v334
    %v336 = vpop.f32.mrb[0].mxu0
    %337 = vmatprep.mubr.bf16.mxu0 %v262
    %338 = vmatmul.mubr.bf16.gmra.mrb[0].mxu0 %v163
    %v339 = vpop.f32.mrb[0].mxu0
    %v340 = vadd.f32 %v175, %v339
    %v341 = vpop.f32.mrb[0].mxu0
    %v342 = vpop.f32.mrb[0].mxu0
    %v343 = vadd.f32 %v175, %v342
    %v344 = vpop.f32.mrb[0].mxu0
    %345 = vmatprep.mubr.bf16.mxu0 %v265
    %346 = vmatmul.mubr.bf16.gmra.mrb[0].mxu0 %v165
    %v347 = vpop.f32.mrb[0].mxu0
    %v348 = vadd.f32 %v175, %v347
    %v349 = vpop.f32.mrb[0].mxu0
    %v350 = vpop.f32.mrb[0].mxu0
    %v351 = vadd.f32 %v175, %v350
    %v352 = vpop.f32.mrb[0].mxu0
    %353 = vmatprep.mubr.bf16.mxu0 %v268
    %354 = vmatmul.mubr.bf16.gmra.mrb[0].mxu0 %v167
    %v355 = vpop.f32.mrb[0].mxu0
    %v356 = vadd.f32 %v175, %v355
    %v357 = vpop.f32.mrb[0].mxu0
    %v358 = vpop.f32.mrb[0].mxu0
    %v359 = vadd.f32 %v175, %v358
    %v360 = vpop.f32.mrb[0].mxu0
    %361 = vmatprep.mubr.bf16.mxu0 %v271
    %362 = vmatmul.mubr.bf16.gmra.mrb[0].mxu0 %v169
    %v363 = vpop.f32.mrb[0].mxu0
    %v364 = vadd.f32 %v175, %v363
    %v365 = vpop.f32.mrb[0].mxu0
    %v366 = vpop.f32.mrb[0].mxu0
    %v367 = vadd.f32 %v175, %v366
    %v368 = vpop.f32.mrb[0].mxu0
    %369 = vdwg.mxu0
    %v370 = vmax.f32 %v308, 0.0
    %v371 = vmax.f32 %v311, 0.0
    %v372 = vmax.f32 %v316, 0.0
    %v373 = vmax.f32 %v319, 0.0
    %v374 = vmax.f32 %v324, 0.0
    %v375 = vmax.f32 %v327, 0.0
    %v376 = vmax.f32 %v332, 0.0
    %v377 = vmax.f32 %v335, 0.0
    %v378 = vmax.f32 %v340, 0.0
    %v379 = vmax.f32 %v343, 0.0
    %v380 = vmax.f32 %v348, 0.0
    %v381 = vmax.f32 %v351, 0.0
    %v382 = vmax.f32 %v356, 0.0
    %v383 = vmax.f32 %v359, 0.0
    %v384 = vmax.f32 %v364, 0.0
    %v385 = vmax.f32 %v367, 0.0
    %vm386 = vcmask 261120
    %387 = vst.msk [vmem:[#allocation2] sm:$0xff] %vm386, %v370
    %388 = vst.msk [vmem:[#allocation2 + $0x8] sm:$0xff] %vm386, %v371
    %389 = vst.msk [vmem:[#allocation2 + $0x10] sm:$0xff] %vm386, %v372
    %390 = vst.msk [vmem:[#allocation2 + $0x18] sm:$0xff] %vm386, %v373
    %391 = vst.msk [vmem:[#allocation2 + $0x20] sm:$0xff] %vm386, %v374
    %392 = vst.msk [vmem:[#allocation2 + $0x28] sm:$0xff] %vm386, %v375
    %393 = vst.msk [vmem:[#allocation2 + $0x30] sm:$0xff] %vm386, %v376
    %394 = vst.msk [vmem:[#allocation2 + $0x38] sm:$0xff] %vm386, %v377
    %395 = vst.msk [vmem:[#allocation2 + $0x40] sm:$0xff] %vm386, %v378
    %396 = vst.msk [vmem:[#allocation2 + $0x48] sm:$0xff] %vm386, %v379
    %397 = vst.msk [vmem:[#allocation2 + $0x50] sm:$0xff] %vm386, %v380
    %398 = vst.msk [vmem:[#allocation2 + $0x58] sm:$0xff] %vm386, %v381
    %399 = vst.msk [vmem:[#allocation2 + $0x60] sm:$0xff] %vm386, %v382
    %400 = vst.msk [vmem:[#allocation2 + $0x68] sm:$0xff] %vm386, %v383
    %401 = vst.msk [vmem:[#allocation2 + $0x70] sm:$0xff] %vm386, %v384
    %402 = vst.msk [vmem:[#allocation2 + $0x78] sm:$0xff] %vm386, %v385
    %v403 = vld [vmem:[#allocation2] sm:$0x7]
    %vm404 = vcmask 256000
    %405 = vst.msk [vmem:[#allocation3] sm:$0x7] %vm404, %v403
    %v406 = vld [vmem:[#allocation2 + $0x4] sm:$0x7]
    %408 = vrot.lane.b32.xlu0 %v406, 32
    %v409 = vpop.permute.xlu0 %408
    %vm411 = vcmask 518400
    %412 = vst.msk [vmem:[#allocation3] sm:$0x7] %vm411, %v409
    %v413 = vld [vmem:[#allocation2 + $0x1] sm:$0x7]
    %415 = vrot.lane.b32.xlu0 %v413, 64
    %v416 = vpop.permute.xlu0 %415
    %vm418 = vcmask 780800
    %419 = vst.msk [vmem:[#allocation3] sm:$0x7] %vm418, %v416
    %v420 = vld [vmem:[#allocation2 + $0x5] sm:$0x7]
    %422 = vrot.lane.b32.xlu0 %v420, 96
    %v423 = vpop.permute.xlu0 %422
    %vm425 = vcmask 1043200
    %426 = vst.msk [vmem:[#allocation3] sm:$0x7] %vm425, %v423
    %v427 = vld [vmem:[#allocation2 + $0x8] sm:$0x7]
    %428 = vst.msk [vmem:[#allocation3 + $0x8] sm:$0x7] %vm404, %v427
    %v429 = vld [vmem:[#allocation2 + $0xc] sm:$0x7]
    %431 = vrot.lane.b32.xlu0 %v429, 32
    %v432 = vpop.permute.xlu0 %431
    %434 = vst.msk [vmem:[#allocation3 + $0x8] sm:$0x7] %vm411, %v432
    %v435 = vld [vmem:[#allocation2 + $0x9] sm:$0x7]
    %437 = vrot.lane.b32.xlu0 %v435, 64
    %v438 = vpop.permute.xlu0 %437
    %440 = vst.msk [vmem:[#allocation3 + $0x8] sm:$0x7] %vm418, %v438
    %v441 = vld [vmem:[#allocation2 + $0xd] sm:$0x7]
    %443 = vrot.lane.b32.xlu0 %v441, 96
    %v444 = vpop.permute.xlu0 %443
    %446 = vst.msk [vmem:[#allocation3 + $0x8] sm:$0x7] %vm425, %v444
    %v447 = vld [vmem:[#allocation2 + $0x10] sm:$0x7]
    %448 = vst.msk [vmem:[#allocation3 + $0x10] sm:$0x7] %vm404, %v447
    %v449 = vld [vmem:[#allocation2 + $0x14] sm:$0x7]
    %451 = vrot.lane.b32.xlu0 %v449, 32
    %v452 = vpop.permute.xlu0 %451
    %454 = vst.msk [vmem:[#allocation3 + $0x10] sm:$0x7] %vm411, %v452
    %v455 = vld [vmem:[#allocation2 + $0x11] sm:$0x7]
    %457 = vrot.lane.b32.xlu0 %v455, 64
    %v458 = vpop.permute.xlu0 %457
    %460 = vst.msk [vmem:[#allocation3 + $0x10] sm:$0x7] %vm418, %v458
    %v461 = vld [vmem:[#allocation2 + $0x15] sm:$0x7]
    %463 = vrot.lane.b32.xlu0 %v461, 96
    %v464 = vpop.permute.xlu0 %463
    %466 = vst.msk [vmem:[#allocation3 + $0x10] sm:$0x7] %vm425, %v464
    %v467 = vld [vmem:[#allocation2 + $0x18] sm:$0x7]
    %468 = vst.msk [vmem:[#allocation3 + $0x18] sm:$0x7] %vm404, %v467
    %v469 = vld [vmem:[#allocation2 + $0x1c] sm:$0x7]
    %471 = vrot.lane.b32.xlu0 %v469, 32
    %v472 = vpop.permute.xlu0 %471
    %474 = vst.msk [vmem:[#allocation3 + $0x18] sm:$0x7] %vm411, %v472
    %v475 = vld [vmem:[#allocation2 + $0x19] sm:$0x7]
    %477 = vrot.lane.b32.xlu0 %v475, 64
    %v478 = vpop.permute.xlu0 %477
    %480 = vst.msk [vmem:[#allocation3 + $0x18] sm:$0x7] %vm418, %v478
    %v481 = vld [vmem:[#allocation2 + $0x1d] sm:$0x7]
    %483 = vrot.lane.b32.xlu0 %v481, 96
    %v484 = vpop.permute.xlu0 %483
    %486 = vst.msk [vmem:[#allocation3 + $0x18] sm:$0x7] %vm425, %v484
    %v487 = vld [vmem:[#allocation2 + $0x10] sm:$0x7]
    %v489 = vrot.slane %v487, 5
    %vm491 = vcmask 259075
    %492 = vst.msk [vmem:[#allocation3] sm:$0x38] %vm491, %v489
    %v493 = vld [vmem:[#allocation2 + $0x14] sm:$0x7]
    %v495 = vrot.slane %v493, 5
    %496 = vrot.lane.b32.xlu0 %v495, 32
    %v497 = vpop.permute.xlu0 %496
    %vm499 = vcmask 521475
    %500 = vst.msk [vmem:[#allocation3] sm:$0x38] %vm499, %v497
    %v501 = vld [vmem:[#allocation2 + $0x11] sm:$0x7]
    %v503 = vrot.slane %v501, 5
    %504 = vrot.lane.b32.xlu0 %v503, 64
    %v505 = vpop.permute.xlu0 %504
    %vm507 = vcmask 783875
    %508 = vst.msk [vmem:[#allocation3] sm:$0x38] %vm507, %v505
    %v509 = vld [vmem:[#allocation2 + $0x15] sm:$0x7]
    %v511 = vrot.slane %v509, 5
    %512 = vrot.lane.b32.xlu0 %v511, 96
    %v513 = vpop.permute.xlu0 %512
    %vm515 = vcmask 1046275
    %516 = vst.msk [vmem:[#allocation3] sm:$0x38] %vm515, %v513
    %v517 = vld [vmem:[#allocation2 + $0x18] sm:$0x7]
    %v519 = vrot.slane %v517, 5
    %521 = vst.msk [vmem:[#allocation3 + $0x8] sm:$0x38] %vm491, %v519
    %v522 = vld [vmem:[#allocation2 + $0x1c] sm:$0x7]
    %v524 = vrot.slane %v522, 5
    %525 = vrot.lane.b32.xlu0 %v524, 32
    %v526 = vpop.permute.xlu0 %525
    %528 = vst.msk [vmem:[#allocation3 + $0x8] sm:$0x38] %vm499, %v526
    %v529 = vld [vmem:[#allocation2 + $0x19] sm:$0x7]
    %v531 = vrot.slane %v529, 5
    %532 = vrot.lane.b32.xlu0 %v531, 64
    %v533 = vpop.permute.xlu0 %532
    %535 = vst.msk [vmem:[#allocation3 + $0x8] sm:$0x38] %vm507, %v533
    %v536 = vld [vmem:[#allocation2 + $0x1d] sm:$0x7]
    %v538 = vrot.slane %v536, 5
    %539 = vrot.lane.b32.xlu0 %v538, 96
    %v540 = vpop.permute.xlu0 %539
    %542 = vst.msk [vmem:[#allocation3 + $0x8] sm:$0x38] %vm515, %v540
    %v543 = vld [vmem:[#allocation2 + $0x20] sm:$0x7]
    %v545 = vrot.slane %v543, 5
    %547 = vst.msk [vmem:[#allocation3 + $0x10] sm:$0x38] %vm491, %v545
    %v548 = vld [vmem:[#allocation2 + $0x24] sm:$0x7]
    %v550 = vrot.slane %v548, 5
    %551 = vrot.lane.b32.xlu0 %v550, 32
    %v552 = vpop.permute.xlu0 %551
    %554 = vst.msk [vmem:[#allocation3 + $0x10] sm:$0x38] %vm499, %v552
    %v555 = vld [vmem:[#allocation2 + $0x21] sm:$0x7]
    %v557 = vrot.slane %v555, 5
    %558 = vrot.lane.b32.xlu0 %v557, 64
    %v559 = vpop.permute.xlu0 %558
    %561 = vst.msk [vmem:[#allocation3 + $0x10] sm:$0x38] %vm507, %v559
    %v562 = vld [vmem:[#allocation2 + $0x25] sm:$0x7]
    %v564 = vrot.slane %v562, 5
    %565 = vrot.lane.b32.xlu0 %v564, 96
    %v566 = vpop.permute.xlu0 %565
    %568 = vst.msk [vmem:[#allocation3 + $0x10] sm:$0x38] %vm515, %v566
    %v569 = vld [vmem:[#allocation2 + $0x28] sm:$0x7]
    %v571 = vrot.slane %v569, 5
    %573 = vst.msk [vmem:[#allocation3 + $0x18] sm:$0x38] %vm491, %v571
    %v574 = vld [vmem:[#allocation2 + $0x2c] sm:$0x7]
    %v576 = vrot.slane %v574, 5
    %577 = vrot.lane.b32.xlu0 %v576, 32
    %v578 = vpop.permute.xlu0 %577
    %580 = vst.msk [vmem:[#allocation3 + $0x18] sm:$0x38] %vm499, %v578
    %v581 = vld [vmem:[#allocation2 + $0x29] sm:$0x7]
    %v583 = vrot.slane %v581, 5
    %584 = vrot.lane.b32.xlu0 %v583, 64
    %v585 = vpop.permute.xlu0 %584
    %587 = vst.msk [vmem:[#allocation3 + $0x18] sm:$0x38] %vm507, %v585
    %v588 = vld [vmem:[#allocation2 + $0x2d] sm:$0x7]
    %v590 = vrot.slane %v588, 5
    %591 = vrot.lane.b32.xlu0 %v590, 96
    %v592 = vpop.permute.xlu0 %591
    %594 = vst.msk [vmem:[#allocation3 + $0x18] sm:$0x38] %vm515, %v592
    %v595 = vld [vmem:[#allocation2 + $0x20] sm:$0x7]
    %v597 = vrot.slane %v595, 2
    %vm599 = vcmask 261126
    %600 = vst.msk [vmem:[#allocation3] sm:$0xc0] %vm599, %v597
    %vm601 = vcmask 253952
    %602 = vst.msk [vmem:[#allocation3 + $0x20] sm:$0x1] %vm601, %v597
    %v603 = vld [vmem:[#allocation2 + $0x24] sm:$0x7]
    %v605 = vrot.slane %v603, 2
    %606 = vrot.lane.b32.xlu0 %v605, 32
    %v607 = vpop.permute.xlu0 %606
    %vm609 = vcmask 523526
    %610 = vst.msk [vmem:[#allocation3] sm:$0xc0] %vm609, %v607
    %vm611 = vcmask 516352
    %612 = vst.msk [vmem:[#allocation3 + $0x20] sm:$0x1] %vm611, %v607
    %v613 = vld [vmem:[#allocation2 + $0x21] sm:$0x7]
    %v615 = vrot.slane %v613, 2
    %616 = vrot.lane.b32.xlu0 %v615, 64
    %v617 = vpop.permute.xlu0 %616
    %vm619 = vcmask 785926
    %620 = vst.msk [vmem:[#allocation3] sm:$0xc0] %vm619, %v617
    %vm621 = vcmask 778752
    %622 = vst.msk [vmem:[#allocation3 + $0x20] sm:$0x1] %vm621, %v617
    %v623 = vld [vmem:[#allocation2 + $0x25] sm:$0x7]
    %v625 = vrot.slane %v623, 2
    %626 = vrot.lane.b32.xlu0 %v625, 96
    %v627 = vpop.permute.xlu0 %626
    %vm629 = vcmask 1048326
    %630 = vst.msk [vmem:[#allocation3] sm:$0xc0] %vm629, %v627
    %vm631 = vcmask 1041152
    %632 = vst.msk [vmem:[#allocation3 + $0x20] sm:$0x1] %vm631, %v627
    %v633 = vld [vmem:[#allocation2 + $0x28] sm:$0x7]
    %v635 = vrot.slane %v633, 2
    %637 = vst.msk [vmem:[#allocation3 + $0x8] sm:$0xc0] %vm599, %v635
    %638 = vst.msk [vmem:[#allocation3 + $0x28] sm:$0x1] %vm601, %v635
    %v639 = vld [vmem:[#allocation2 + $0x2c] sm:$0x7]
    %v641 = vrot.slane %v639, 2
    %642 = vrot.lane.b32.xlu0 %v641, 32
    %v643 = vpop.permute.xlu0 %642
    %645 = vst.msk [vmem:[#allocation3 + $0x8] sm:$0xc0] %vm609, %v643
    %646 = vst.msk [vmem:[#allocation3 + $0x28] sm:$0x1] %vm611, %v643
    %v647 = vld [vmem:[#allocation2 + $0x29] sm:$0x7]
    %v649 = vrot.slane %v647, 2
    %650 = vrot.lane.b32.xlu0 %v649, 64
    %v651 = vpop.permute.xlu0 %650
    %653 = vst.msk [vmem:[#allocation3 + $0x8] sm:$0xc0] %vm619, %v651
    %654 = vst.msk [vmem:[#allocation3 + $0x28] sm:$0x1] %vm621, %v651
    %v655 = vld [vmem:[#allocation2 + $0x2d] sm:$0x7]
    %v657 = vrot.slane %v655, 2
    %658 = vrot.lane.b32.xlu0 %v657, 96
    %v659 = vpop.permute.xlu0 %658
    %661 = vst.msk [vmem:[#allocation3 + $0x8] sm:$0xc0] %vm629, %v659
    %662 = vst.msk [vmem:[#allocation3 + $0x28] sm:$0x1] %vm631, %v659
    %v663 = vld [vmem:[#allocation2 + $0x30] sm:$0x7]
    %v665 = vrot.slane %v663, 2
    %667 = vst.msk [vmem:[#allocation3 + $0x10] sm:$0xc0] %vm599, %v665
    %668 = vst.msk [vmem:[#allocation3 + $0x30] sm:$0x1] %vm601, %v665
    %v669 = vld [vmem:[#allocation2 + $0x34] sm:$0x7]
    %v671 = vrot.slane %v669, 2
    %672 = vrot.lane.b32.xlu0 %v671, 32
    %v673 = vpop.permute.xlu0 %672
    %675 = vst.msk [vmem:[#allocation3 + $0x10] sm:$0xc0] %vm609, %v673
    %676 = vst.msk [vmem:[#allocation3 + $0x30] sm:$0x1] %vm611, %v673
    %v677 = vld [vmem:[#allocation2 + $0x31] sm:$0x7]
    %v679 = vrot.slane %v677, 2
    %680 = vrot.lane.b32.xlu0 %v679, 64
    %v681 = vpop.permute.xlu0 %680
    %683 = vst.msk [vmem:[#allocation3 + $0x10] sm:$0xc0] %vm619, %v681
    %684 = vst.msk [vmem:[#allocation3 + $0x30] sm:$0x1] %vm621, %v681
    %v685 = vld [vmem:[#allocation2 + $0x35] sm:$0x7]
    %v687 = vrot.slane %v685, 2
    %688 = vrot.lane.b32.xlu0 %v687, 96
    %v689 = vpop.permute.xlu0 %688
    %691 = vst.msk [vmem:[#allocation3 + $0x10] sm:$0xc0] %vm629, %v689
    %692 = vst.msk [vmem:[#allocation3 + $0x30] sm:$0x1] %vm631, %v689
    %v693 = vld [vmem:[#allocation2 + $0x38] sm:$0x7]
    %v695 = vrot.slane %v693, 2
    %697 = vst.msk [vmem:[#allocation3 + $0x18] sm:$0xc0] %vm599, %v695
    %698 = vst.msk [vmem:[#allocation3 + $0x38] sm:$0x1] %vm601, %v695
    %v699 = vld [vmem:[#allocation2 + $0x3c] sm:$0x7]
    %v701 = vrot.slane %v699, 2
    %702 = vrot.lane.b32.xlu0 %v701, 32
    %v703 = vpop.permute.xlu0 %702
    %705 = vst.msk [vmem:[#allocation3 + $0x18] sm:$0xc0] %vm609, %v703
    %706 = vst.msk [vmem:[#allocation3 + $0x38] sm:$0x1] %vm611, %v703
    %v707 = vld [vmem:[#allocation2 + $0x39] sm:$0x7]
    %v709 = vrot.slane %v707, 2
    %710 = vrot.lane.b32.xlu0 %v709, 64
    %v711 = vpop.permute.xlu0 %710
    %713 = vst.msk [vmem:[#allocation3 + $0x18] sm:$0xc0] %vm619, %v711
    %714 = vst.msk [vmem:[#allocation3 + $0x38] sm:$0x1] %vm621, %v711
    %v715 = vld [vmem:[#allocation2 + $0x3d] sm:$0x7]
    %v717 = vrot.slane %v715, 2
    %718 = vrot.lane.b32.xlu0 %v717, 96
    %v719 = vpop.permute.xlu0 %718
    %721 = vst.msk [vmem:[#allocation3 + $0x18] sm:$0xc0] %vm629, %v719
    %722 = vst.msk [vmem:[#allocation3 + $0x38] sm:$0x1] %vm631, %v719
    %v723 = vld [vmem:[#allocation2 + $0x40] sm:$0x7]
    %v725 = vrot.slane %v723, 7
    %vm727 = vcmask 257025
    %728 = vst.msk [vmem:[#allocation3 + $0x20] sm:$0xe] %vm727, %v725
    %v729 = vld [vmem:[#allocation2 + $0x44] sm:$0x7]
    %v731 = vrot.slane %v729, 7
    %732 = vrot.lane.b32.xlu0 %v731, 32
    %v733 = vpop.permute.xlu0 %732
    %vm735 = vcmask 519425
    %736 = vst.msk [vmem:[#allocation3 + $0x20] sm:$0xe] %vm735, %v733
    %v737 = vld [vmem:[#allocation2 + $0x41] sm:$0x7]
    %v739 = vrot.slane %v737, 7
    %740 = vrot.lane.b32.xlu0 %v739, 64
    %v741 = vpop.permute.xlu0 %740
    %vm743 = vcmask 781825
    %744 = vst.msk [vmem:[#allocation3 + $0x20] sm:$0xe] %vm743, %v741
    %v745 = vld [vmem:[#allocation2 + $0x45] sm:$0x7]
    %v747 = vrot.slane %v745, 7
    %748 = vrot.lane.b32.xlu0 %v747, 96
    %v749 = vpop.permute.xlu0 %748
    %vm751 = vcmask 1044225
    %752 = vst.msk [vmem:[#allocation3 + $0x20] sm:$0xe] %vm751, %v749
    %v753 = vld [vmem:[#allocation2 + $0x48] sm:$0x7]
    %v755 = vrot.slane %v753, 7
    %757 = vst.msk [vmem:[#allocation3 + $0x28] sm:$0xe] %vm727, %v755
    %v758 = vld [vmem:[#allocation2 + $0x4c] sm:$0x7]
    %v760 = vrot.slane %v758, 7
    %761 = vrot.lane.b32.xlu0 %v760, 32
    %v762 = vpop.permute.xlu0 %761
    %764 = vst.msk [vmem:[#allocation3 + $0x28] sm:$0xe] %vm735, %v762
    %v765 = vld [vmem:[#allocation2 + $0x49] sm:$0x7]
    %v767 = vrot.slane %v765, 7
    %768 = vrot.lane.b32.xlu0 %v767, 64
    %v769 = vpop.permute.xlu0 %768
    %771 = vst.msk [vmem:[#allocation3 + $0x28] sm:$0xe] %vm743, %v769
    %v772 = vld [vmem:[#allocation2 + $0x4d] sm:$0x7]
    %v774 = vrot.slane %v772, 7
    %775 = vrot.lane.b32.xlu0 %v774, 96
    %v776 = vpop.permute.xlu0 %775
    %778 = vst.msk [vmem:[#allocation3 + $0x28] sm:$0xe] %vm751, %v776
    %v779 = vld [vmem:[#allocation2 + $0x50] sm:$0x7]
    %v781 = vrot.slane %v779, 7
    %783 = vst.msk [vmem:[#allocation3 + $0x30] sm:$0xe] %vm727, %v781
    %v784 = vld [vmem:[#allocation2 + $0x54] sm:$0x7]
    %v786 = vrot.slane %v784, 7
    %787 = vrot.lane.b32.xlu0 %v786, 32
    %v788 = vpop.permute.xlu0 %787
    %790 = vst.msk [vmem:[#allocation3 + $0x30] sm:$0xe] %vm735, %v788
    %v791 = vld [vmem:[#allocation2 + $0x51] sm:$0x7]
    %v793 = vrot.slane %v791, 7
    %794 = vrot.lane.b32.xlu0 %v793, 64
    %v795 = vpop.permute.xlu0 %794
    %797 = vst.msk [vmem:[#allocation3 + $0x30] sm:$0xe] %vm743, %v795
    %v798 = vld [vmem:[#allocation2 + $0x55] sm:$0x7]
    %v800 = vrot.slane %v798, 7
    %801 = vrot.lane.b32.xlu0 %v800, 96
    %v802 = vpop.permute.xlu0 %801
    %804 = vst.msk [vmem:[#allocation3 + $0x30] sm:$0xe] %vm751, %v802
    %v805 = vld [vmem:[#allocation2 + $0x58] sm:$0x7]
    %v807 = vrot.slane %v805, 7
    %809 = vst.msk [vmem:[#allocation3 + $0x38] sm:$0xe] %vm727, %v807
    %v810 = vld [vmem:[#allocation2 + $0x5c] sm:$0x7]
    %v812 = vrot.slane %v810, 7
    %813 = vrot.lane.b32.xlu0 %v812, 32
    %v814 = vpop.permute.xlu0 %813
    %816 = vst.msk [vmem:[#allocation3 + $0x38] sm:$0xe] %vm735, %v814
    %v817 = vld [vmem:[#allocation2 + $0x59] sm:$0x7]
    %v819 = vrot.slane %v817, 7
    %820 = vrot.lane.b32.xlu0 %v819, 64
    %v821 = vpop.permute.xlu0 %820
    %823 = vst.msk [vmem:[#allocation3 + $0x38] sm:$0xe] %vm743, %v821
    %v824 = vld [vmem:[#allocation2 + $0x5d] sm:$0x7]
    %v826 = vrot.slane %v824, 7
    %827 = vrot.lane.b32.xlu0 %v826, 96
    %v828 = vpop.permute.xlu0 %827
    %830 = vst.msk [vmem:[#allocation3 + $0x38] sm:$0xe] %vm751, %v828
    %v831 = vld [vmem:[#allocation2 + $0x50] sm:$0x7]
    %v833 = vrot.slane %v831, 4
    %vm835 = vcmask 260100
    %836 = vst.msk [vmem:[#allocation3 + $0x20] sm:$0x70] %vm835, %v833
    %v837 = vld [vmem:[#allocation2 + $0x54] sm:$0x7]
    %v839 = vrot.slane %v837, 4
    %840 = vrot.lane.b32.xlu0 %v839, 32
    %v841 = vpop.permute.xlu0 %840
    %vm843 = vcmask 522500
    %844 = vst.msk [vmem:[#allocation3 + $0x20] sm:$0x70] %vm843, %v841
    %v845 = vld [vmem:[#allocation2 + $0x51] sm:$0x7]
    %v847 = vrot.slane %v845, 4
    %848 = vrot.lane.b32.xlu0 %v847, 64
    %v849 = vpop.permute.xlu0 %848
    %vm851 = vcmask 784900
    %852 = vst.msk [vmem:[#allocation3 + $0x20] sm:$0x70] %vm851, %v849
    %v853 = vld [vmem:[#allocation2 + $0x55] sm:$0x7]
    %v855 = vrot.slane %v853, 4
    %856 = vrot.lane.b32.xlu0 %v855, 96
    %v857 = vpop.permute.xlu0 %856
    %vm859 = vcmask 1047300
    %860 = vst.msk [vmem:[#allocation3 + $0x20] sm:$0x70] %vm859, %v857
    %v861 = vld [vmem:[#allocation2 + $0x58] sm:$0x7]
    %v863 = vrot.slane %v861, 4
    %865 = vst.msk [vmem:[#allocation3 + $0x28] sm:$0x70] %vm835, %v863
    %v866 = vld [vmem:[#allocation2 + $0x5c] sm:$0x7]
    %v868 = vrot.slane %v866, 4
    %869 = vrot.lane.b32.xlu0 %v868, 32
    %v870 = vpop.permute.xlu0 %869
    %872 = vst.msk [vmem:[#allocation3 + $0x28] sm:$0x70] %vm843, %v870
    %v873 = vld [vmem:[#allocation2 + $0x59] sm:$0x7]
    %v875 = vrot.slane %v873, 4
    %876 = vrot.lane.b32.xlu0 %v875, 64
    %v877 = vpop.permute.xlu0 %876
    %879 = vst.msk [vmem:[#allocation3 + $0x28] sm:$0x70] %vm851, %v877
    %v880 = vld [vmem:[#allocation2 + $0x5d] sm:$0x7]
    %v882 = vrot.slane %v880, 4
    %883 = vrot.lane.b32.xlu0 %v882, 96
    %v884 = vpop.permute.xlu0 %883
    %886 = vst.msk [vmem:[#allocation3 + $0x28] sm:$0x70] %vm859, %v884
    %v887 = vld [vmem:[#allocation2 + $0x60] sm:$0x7]
    %v889 = vrot.slane %v887, 4
    %891 = vst.msk [vmem:[#allocation3 + $0x30] sm:$0x70] %vm835, %v889
    %v892 = vld [vmem:[#allocation2 + $0x64] sm:$0x7]
    %v894 = vrot.slane %v892, 4
    %895 = vrot.lane.b32.xlu0 %v894, 32
    %v896 = vpop.permute.xlu0 %895
    %898 = vst.msk [vmem:[#allocation3 + $0x30] sm:$0x70] %vm843, %v896
    %v899 = vld [vmem:[#allocation2 + $0x61] sm:$0x7]
    %v901 = vrot.slane %v899, 4
    %902 = vrot.lane.b32.xlu0 %v901, 64
    %v903 = vpop.permute.xlu0 %902
    %905 = vst.msk [vmem:[#allocation3 + $0x30] sm:$0x70] %vm851, %v903
    %v906 = vld [vmem:[#allocation2 + $0x65] sm:$0x7]
    %v908 = vrot.slane %v906, 4
    %909 = vrot.lane.b32.xlu0 %v908, 96
    %v910 = vpop.permute.xlu0 %909
    %912 = vst.msk [vmem:[#allocation3 + $0x30] sm:$0x70] %vm859, %v910
    %v913 = vld [vmem:[#allocation2 + $0x68] sm:$0x7]
    %v915 = vrot.slane %v913, 4
    %917 = vst.msk [vmem:[#allocation3 + $0x38] sm:$0x70] %vm835, %v915
    %v918 = vld [vmem:[#allocation2 + $0x6c] sm:$0x7]
    %v920 = vrot.slane %v918, 4
    %921 = vrot.lane.b32.xlu0 %v920, 32
    %v922 = vpop.permute.xlu0 %921
    %924 = vst.msk [vmem:[#allocation3 + $0x38] sm:$0x70] %vm843, %v922
    %v925 = vld [vmem:[#allocation2 + $0x69] sm:$0x7]
    %v927 = vrot.slane %v925, 4
    %928 = vrot.lane.b32.xlu0 %v927, 64
    %v929 = vpop.permute.xlu0 %928
    %931 = vst.msk [vmem:[#allocation3 + $0x38] sm:$0x70] %vm851, %v929
    %v932 = vld [vmem:[#allocation2 + $0x6d] sm:$0x7]
    %v934 = vrot.slane %v932, 4
    %935 = vrot.lane.b32.xlu0 %v934, 96
    %v936 = vpop.permute.xlu0 %935
    %938 = vst.msk [vmem:[#allocation3 + $0x38] sm:$0x70] %vm859, %v936
    %v939 = vld [vmem:[#allocation2 + $0x60] sm:$0x7]
    %v941 = vrot.slane %v939, 1
    %vm943 = vcmask 261127
    %944 = vst.msk [vmem:[#allocation3 + $0x20] sm:$0x80] %vm943, %v941
    %vm945 = vcmask 254976
    %946 = vst.msk [vmem:[#allocation3 + $0x40] sm:$0x3] %vm945, %v941
    %v947 = vld [vmem:[#allocation2 + $0x64] sm:$0x7]
    %v949 = vrot.slane %v947, 1
    %950 = vrot.lane.b32.xlu0 %v949, 32
    %v951 = vpop.permute.xlu0 %950
    %vm953 = vcmask 523527
    %954 = vst.msk [vmem:[#allocation3 + $0x20] sm:$0x80] %vm953, %v951
    %vm955 = vcmask 517376
    %956 = vst.msk [vmem:[#allocation3 + $0x40] sm:$0x3] %vm955, %v951
    %v957 = vld [vmem:[#allocation2 + $0x61] sm:$0x7]
    %v959 = vrot.slane %v957, 1
    %960 = vrot.lane.b32.xlu0 %v959, 64
    %v961 = vpop.permute.xlu0 %960
    %vm963 = vcmask 785927
    %964 = vst.msk [vmem:[#allocation3 + $0x20] sm:$0x80] %vm963, %v961
    %vm965 = vcmask 779776
    %966 = vst.msk [vmem:[#allocation3 + $0x40] sm:$0x3] %vm965, %v961
    %v967 = vld [vmem:[#allocation2 + $0x65] sm:$0x7]
    %v969 = vrot.slane %v967, 1
    %970 = vrot.lane.b32.xlu0 %v969, 96
    %v971 = vpop.permute.xlu0 %970
    %vm973 = vcmask 1048327
    %974 = vst.msk [vmem:[#allocation3 + $0x20] sm:$0x80] %vm973, %v971
    %vm975 = vcmask 1042176
    %976 = vst.msk [vmem:[#allocation3 + $0x40] sm:$0x3] %vm975, %v971
    %v977 = vld [vmem:[#allocation2 + $0x68] sm:$0x7]
    %v979 = vrot.slane %v977, 1
    %981 = vst.msk [vmem:[#allocation3 + $0x28] sm:$0x80] %vm943, %v979
    %982 = vst.msk [vmem:[#allocation3 + $0x48] sm:$0x3] %vm945, %v979
    %v983 = vld [vmem:[#allocation2 + $0x6c] sm:$0x7]
    %v985 = vrot.slane %v983, 1
    %986 = vrot.lane.b32.xlu0 %v985, 32
    %v987 = vpop.permute.xlu0 %986
    %989 = vst.msk [vmem:[#allocation3 + $0x28] sm:$0x80] %vm953, %v987
    %990 = vst.msk [vmem:[#allocation3 + $0x48] sm:$0x3] %vm955, %v987
    %v991 = vld [vmem:[#allocation2 + $0x69] sm:$0x7]
    %v993 = vrot.slane %v991, 1
    %994 = vrot.lane.b32.xlu0 %v993, 64
    %v995 = vpop.permute.xlu0 %994
    %997 = vst.msk [vmem:[#allocation3 + $0x28] sm:$0x80] %vm963, %v995
    %998 = vst.msk [vmem:[#allocation3 + $0x48] sm:$0x3] %vm965, %v995
    %v999 = vld [vmem:[#allocation2 + $0x6d] sm:$0x7]
    %v1001 = vrot.slane %v999, 1
    %1002 = vrot.lane.b32.xlu0 %v1001, 96
    %v1003 = vpop.permute.xlu0 %1002
    %1005 = vst.msk [vmem:[#allocation3 + $0x28] sm:$0x80] %vm973, %v1003
    %1006 = vst.msk [vmem:[#allocation3 + $0x48] sm:$0x3] %vm975, %v1003
    %v1007 = vld [vmem:[#allocation2 + $0x70] sm:$0x7]
    %v1009 = vrot.slane %v1007, 1
    %1011 = vst.msk [vmem:[#allocation3 + $0x30] sm:$0x80] %vm943, %v1009
    %1012 = vst.msk [vmem:[#allocation3 + $0x50] sm:$0x3] %vm945, %v1009
    %v1013 = vld [vmem:[#allocation2 + $0x74] sm:$0x7]
    %v1015 = vrot.slane %v1013, 1
    %1016 = vrot.lane.b32.xlu0 %v1015, 32
    %v1017 = vpop.permute.xlu0 %1016
    %1019 = vst.msk [vmem:[#allocation3 + $0x30] sm:$0x80] %vm953, %v1017
    %1020 = vst.msk [vmem:[#allocation3 + $0x50] sm:$0x3] %vm955, %v1017
    %v1021 = vld [vmem:[#allocation2 + $0x71] sm:$0x7]
    %v1023 = vrot.slane %v1021, 1
    %1024 = vrot.lane.b32.xlu0 %v1023, 64
    %v1025 = vpop.permute.xlu0 %1024
    %1027 = vst.msk [vmem:[#allocation3 + $0x30] sm:$0x80] %vm963, %v1025
    %1028 = vst.msk [vmem:[#allocation3 + $0x50] sm:$0x3] %vm965, %v1025
    %v1029 = vld [vmem:[#allocation2 + $0x75] sm:$0x7]
    %v1031 = vrot.slane %v1029, 1
    %1032 = vrot.lane.b32.xlu0 %v1031, 96
    %v1033 = vpop.permute.xlu0 %1032
    %1035 = vst.msk [vmem:[#allocation3 + $0x30] sm:$0x80] %vm973, %v1033
    %1036 = vst.msk [vmem:[#allocation3 + $0x50] sm:$0x3] %vm975, %v1033
    %v1037 = vld [vmem:[#allocation2 + $0x78] sm:$0x7]
    %v1039 = vrot.slane %v1037, 1
    %1041 = vst.msk [vmem:[#allocation3 + $0x38] sm:$0x80] %vm943, %v1039
    %1042 = vst.msk [vmem:[#allocation3 + $0x58] sm:$0x3] %vm945, %v1039
    %v1043 = vld [vmem:[#allocation2 + $0x7c] sm:$0x7]
    %v1045 = vrot.slane %v1043, 1
    %1046 = vrot.lane.b32.xlu0 %v1045, 32
    %v1047 = vpop.permute.xlu0 %1046
    %1049 = vst.msk [vmem:[#allocation3 + $0x38] sm:$0x80] %vm953, %v1047
    %1050 = vst.msk [vmem:[#allocation3 + $0x58] sm:$0x3] %vm955, %v1047
    %v1051 = vld [vmem:[#allocation2 + $0x79] sm:$0x7]
    %v1053 = vrot.slane %v1051, 1
    %1054 = vrot.lane.b32.xlu0 %v1053, 64
    %v1055 = vpop.permute.xlu0 %1054
    %1057 = vst.msk [vmem:[#allocation3 + $0x38] sm:$0x80] %vm963, %v1055
    %1058 = vst.msk [vmem:[#allocation3 + $0x58] sm:$0x3] %vm965, %v1055
    %v1059 = vld [vmem:[#allocation2 + $0x7d] sm:$0x7]
    %v1061 = vrot.slane %v1059, 1
    %1062 = vrot.lane.b32.xlu0 %v1061, 96
    %v1063 = vpop.permute.xlu0 %1062
    %1065 = vst.msk [vmem:[#allocation3 + $0x38] sm:$0x80] %vm973, %v1063
    %1066 = vst.msk [vmem:[#allocation3 + $0x58] sm:$0x3] %vm975, %v1063
    %v1067 = vld [vmem:[#allocation3] sm:$0xff]
    %v1068 = vld [vmem:[#allocation3 + $0x8] sm:$0xff]
    %v1069 = vld [vmem:[#allocation3 + $0x10] sm:$0xff]
    %v1070 = vld [vmem:[#allocation3 + $0x18] sm:$0xff]
    %v1071 = vld [vmem:[#allocation3 + $0x20] sm:$0xff]
    %v1072 = vld [vmem:[#allocation3 + $0x28] sm:$0xff]
    %v1073 = vld [vmem:[#allocation3 + $0x30] sm:$0xff]
    %v1074 = vld [vmem:[#allocation3 + $0x38] sm:$0xff]
    %v1075 = vld [vmem:[#allocation3 + $0x40] sm:$0x3]
    %v1076 = vld [vmem:[#allocation3 + $0x48] sm:$0x3]
    %v1077 = vld [vmem:[#allocation3 + $0x50] sm:$0x3]
    %v1078 = vld [vmem:[#allocation3 + $0x58] sm:$0x3]
    %v1079 = vld [vmem:[%s2 + $0x60] sm:$0xf]
    %v1080 = vld [vmem:[%s2 + $0x64] sm:$0xf]
    %v1081 = vld [vmem:[%s2 + $0x68] sm:$0xf]
    %v1082 = vld [vmem:[%s2 + $0x6c] sm:$0xf]
    %v1083 = vld [vmem:[%s2 + $0x70] sm:$0xf]
    %v1084 = vld [vmem:[%s2 + $0x74] sm:$0xf]
    %v1085 = vld [vmem:[%s2 + $0x78] sm:$0xf]
    %v1086 = vld [vmem:[%s2 + $0x7c] sm:$0xf]
    %v1087 = vld [vmem:[%s2 + $0x80] sm:$0xf]
    %v1088 = vld [vmem:[%s2 + $0x84] sm:$0xf]
    %v1089 = vld [vmem:[%s2 + $0x88] sm:$0xf]
    %v1090 = vld [vmem:[%s2 + $0x8c] sm:$0xf]
    %v1091 = vld [vmem:[%s2 + $0x90] sm:$0xf]
    %v1092 = vld [vmem:[%s2 + $0x94] sm:$0xf]
    %v1093 = vld [vmem:[%s2 + $0x98] sm:$0xf]
    %v1094 = vld [vmem:[%s2 + $0x9c] sm:$0xf]
    %v1095 = vld [vmem:[%s2 + $0xa0] sm:$0xf]
    %v1096 = vld [vmem:[%s2 + $0xa4] sm:$0xf]
    %v1097 = vld [vmem:[%s2 + $0xa8] sm:$0xf]
    %v1098 = vld [vmem:[%s2 + $0xac] sm:$0xf]
    %v1099 = vld [vmem:[%s2 + $0xb0] sm:$0xf]
    %v1100 = vld [vmem:[%s2 + $0xb4] sm:$0xf]
    %v1101 = vld [vmem:[%s2 + $0xb8] sm:$0xf]
    %v1102 = vld [vmem:[%s2 + $0xbc] sm:$0xf]
    %v1103 = vld [vmem:[%s2 + $0xc0] sm:$0xf]
    %v1104 = vld [vmem:[%s2 + $0xc4] sm:$0xf]
    %v1105 = vld [vmem:[%s2 + $0xc8] sm:$0xf]
    %v1106 = vld [vmem:[%s2 + $0xcc] sm:$0xf]
    %v1107 = vld [vmem:[%s2 + $0xd0] sm:$0xf]
    %v1108 = vld [vmem:[%s2 + $0xd4] sm:$0xf]
    %v1109 = vld [vmem:[%s2 + $0xd8] sm:$0xf]
    %v1110 = vld [vmem:[%s2 + $0xdc] sm:$0xf]
    %v1111 = vld [vmem:[%s2 + $0xe0] sm:$0xf]
    %v1112 = vld [vmem:[%s2 + $0xe4] sm:$0xf]
    %v1113 = vld [vmem:[%s2 + $0xe8] sm:$0xf]
    %v1114 = vld [vmem:[%s2 + $0xec] sm:$0xf]
    %v1115 = vld [vmem:[%s2 + $0xf0] sm:$0xf]
    %v1116 = vld [vmem:[%s2 + $0xf4] sm:$0xf]
    %v1117 = vld [vmem:[%s2 + $0xf8] sm:$0xf]
    %v1118 = vld [vmem:[%s2 + $0xfc] sm:$0xf]
    %v1119 = vld [vmem:[%s2 + $0x100] sm:$0xf]
    %v1120 = vld [vmem:[%s2 + $0x104] sm:$0xf]
    %v1121 = vld [vmem:[%s2 + $0x108] sm:$0xf]
    %v1122 = vld [vmem:[%s2 + $0x10c] sm:$0xf]
    %v1123 = vld [vmem:[%s2 + $0x110] sm:$0xf]
    %v1124 = vld [vmem:[%s2 + $0x114] sm:$0xf]
    %v1125 = vld [vmem:[%s2 + $0x118] sm:$0xf]
    %v1126 = vld [vmem:[%s2 + $0x11c] sm:$0xf]
    %v1127 = vld [vmem:[%s2 + $0x120] sm:$0xf]
    %v1128 = vld [vmem:[%s2 + $0x124] sm:$0xf]
    %v1129 = vld [vmem:[%s2 + $0x128] sm:$0xf]
    %v1130 = vld [vmem:[%s2 + $0x12c] sm:$0xf]
    %v1131 = vld [vmem:[%s2 + $0x130] sm:$0xf]
    %v1132 = vld [vmem:[%s2 + $0x134] sm:$0xf]
    %v1133 = vld [vmem:[%s2 + $0x138] sm:$0xf]
    %v1134 = vld [vmem:[%s2 + $0x13c] sm:$0xf]
    %v1135 = vld [vmem:[%s2 + $0x140] sm:$0xf]
    %v1136 = vld [vmem:[%s2 + $0x144] sm:$0xf]
    %v1137 = vld [vmem:[%s2 + $0x148] sm:$0xf]
    %v1138 = vld [vmem:[%s2 + $0x14c] sm:$0xf]
    %v1139 = vld [vmem:[%s2 + $0x150] sm:$0xf]
    %v1140 = vld [vmem:[%s2 + $0x154] sm:$0xf]
    %v1141 = vld [vmem:[%s2 + $0x158] sm:$0xf]
    %v1142 = vld [vmem:[%s2 + $0x15c] sm:$0xf]
    %v1143 = vpack.c.bf16 %v1071, %v1067
    %v1144 = vpack.c.bf16 %v1072, %v1068
    %v1145 = vpack.c.bf16 %v1073, %v1069
    %v1146 = vpack.c.bf16 %v1074, %v1070
    %v1147 = vpack.c.bf16 %v1075, %v1075
    %v1148 = vpack.c.bf16 %v1076, %v1076
    %v1149 = vpack.c.bf16 %v1077, %v1077
    %v1150 = vpack.c.bf16 %v1078, %v1078
    %v1151 = vld [vmem:[%s3 + $0x1] sm:$0x1]
    %v1152 = vlaneseq
    %v1153 = vshrl.u32 %v1152, 7
    %v1154 = vsub.s32 0, %v1153
    %v1155 = vrot.slane %v1151, %v1154
    %v1220 = vunpack.c.l.b16 %v1079
    %v1221 = vunpack.c.l.b16 %v1080
    %v1222 = vunpack.c.l.b16 %v1081
    %v1223 = vunpack.c.l.b16 %v1082
    %v1224 = vunpack.c.l.b16 %v1083
    %v1225 = vunpack.c.l.b16 %v1084
    %v1226 = vunpack.c.l.b16 %v1085
    %v1227 = vunpack.c.l.b16 %v1086
    %v1228 = vunpack.c.l.b16 %v1087
    %v1229 = vunpack.c.l.b16 %v1088
    %v1230 = vunpack.c.l.b16 %v1089
    %v1231 = vunpack.c.l.b16 %v1090
    %v1232 = vunpack.c.l.b16 %v1091
    %v1233 = vunpack.c.l.b16 %v1092
    %v1234 = vunpack.c.l.b16 %v1093
    %v1235 = vunpack.c.l.b16 %v1094
    %v1236 = vunpack.c.l.b16 %v1095
    %v1237 = vunpack.c.l.b16 %v1096
    %v1238 = vunpack.c.l.b16 %v1097
    %v1239 = vunpack.c.l.b16 %v1098
    %v1240 = vunpack.c.l.b16 %v1099
    %v1241 = vunpack.c.l.b16 %v1100
    %v1242 = vunpack.c.l.b16 %v1101
    %v1243 = vunpack.c.l.b16 %v1102
    %v1244 = vunpack.c.l.b16 %v1103
    %v1245 = vunpack.c.l.b16 %v1104
    %v1246 = vunpack.c.l.b16 %v1105
    %v1247 = vunpack.c.l.b16 %v1106
    %v1248 = vunpack.c.l.b16 %v1107
    %v1249 = vunpack.c.l.b16 %v1108
    %v1250 = vunpack.c.l.b16 %v1109
    %v1251 = vunpack.c.l.b16 %v1110
    %v1252 = vunpack.c.l.b16 %v1111
    %v1253 = vunpack.c.l.b16 %v1112
    %v1254 = vunpack.c.l.b16 %v1113
    %v1255 = vunpack.c.l.b16 %v1114
    %v1256 = vunpack.c.l.b16 %v1115
    %v1257 = vunpack.c.l.b16 %v1116
    %v1258 = vunpack.c.l.b16 %v1117
    %v1259 = vunpack.c.l.b16 %v1118
    %v1260 = vunpack.c.l.b16 %v1119
    %v1261 = vunpack.c.l.b16 %v1120
    %v1262 = vunpack.c.l.b16 %v1121
    %v1263 = vunpack.c.l.b16 %v1122
    %v1264 = vunpack.c.l.b16 %v1123
    %v1265 = vunpack.c.l.b16 %v1124
    %v1266 = vunpack.c.l.b16 %v1125
    %v1267 = vunpack.c.l.b16 %v1126
    %v1268 = vunpack.c.l.b16 %v1127
    %v1269 = vunpack.c.l.b16 %v1128
    %v1270 = vunpack.c.l.b16 %v1129
    %v1271 = vunpack.c.l.b16 %v1130
    %v1272 = vunpack.c.l.b16 %v1131
    %v1273 = vunpack.c.l.b16 %v1132
    %v1274 = vunpack.c.l.b16 %v1133
    %v1275 = vunpack.c.l.b16 %v1134
    %v1276 = vunpack.c.l.b16 %v1135
    %v1277 = vunpack.c.l.b16 %v1136
    %v1278 = vunpack.c.l.b16 %v1137
    %v1279 = vunpack.c.l.b16 %v1138
    %v1280 = vunpack.c.l.b16 %v1139
    %v1281 = vunpack.c.l.b16 %v1140
    %v1282 = vunpack.c.l.b16 %v1141
    %v1283 = vunpack.c.l.b16 %v1142
    %v1284 = vpack.c.b16 %v1221, %v1220
    %v1285 = vpack.c.b16 %v1223, %v1222
    %v1286 = vpack.c.b16 %v1225, %v1224
    %v1287 = vpack.c.b16 %v1227, %v1226
    %v1288 = vpack.c.b16 %v1229, %v1228
    %v1289 = vpack.c.b16 %v1231, %v1230
    %v1290 = vpack.c.b16 %v1233, %v1232
    %v1291 = vpack.c.b16 %v1235, %v1234
    %v1292 = vpack.c.b16 %v1237, %v1236
    %v1293 = vpack.c.b16 %v1239, %v1238
    %v1294 = vpack.c.b16 %v1241, %v1240
    %v1295 = vpack.c.b16 %v1243, %v1242
    %v1296 = vpack.c.b16 %v1245, %v1244
    %v1297 = vpack.c.b16 %v1247, %v1246
    %v1298 = vpack.c.b16 %v1249, %v1248
    %v1299 = vpack.c.b16 %v1251, %v1250
    %v1300 = vpack.c.b16 %v1253, %v1252
    %v1301 = vpack.c.b16 %v1255, %v1254
    %v1302 = vpack.c.b16 %v1257, %v1256
    %v1303 = vpack.c.b16 %v1259, %v1258
    %v1304 = vpack.c.b16 %v1261, %v1260
    %v1305 = vpack.c.b16 %v1263, %v1262
    %v1306 = vpack.c.b16 %v1265, %v1264
    %v1307 = vpack.c.b16 %v1267, %v1266
    %v1308 = vpack.c.b16 %v1269, %v1268
    %v1309 = vpack.c.b16 %v1271, %v1270
    %v1310 = vpack.c.b16 %v1273, %v1272
    %v1311 = vpack.c.b16 %v1275, %v1274
    %v1312 = vpack.c.b16 %v1277, %v1276
    %v1313 = vpack.c.b16 %v1279, %v1278
    %v1314 = vpack.c.b16 %v1281, %v1280
    %v1315 = vpack.c.b16 %v1283, %v1282
    %1348 = vmatprep.subr.bf16.mxu0 0
    %1349 = vmatpush1.bf16.msra.mxu0 %v1284
    %1350 = vmatprep.subr.bf16.mxu0 0
    %1351 = vmatpush1.bf16.msra.mxu0 %v1285
    %1352 = vmatprep.subr.bf16.mxu0 0
    %1353 = vmatpush1.bf16.msra.mxu0 %v1286
    %1354 = vmatprep.subr.bf16.mxu0 0
    %1355 = vmatpush1.bf16.msra.mxu0 %v1287
    %1356 = vmatprep.subr.bf16.mxu0 0
    %1357 = vmatpush1.bf16.msra.mxu0 %v1288
    %1358 = vmatprep.subr.bf16.mxu0 0
    %1359 = vmatpush1.bf16.msra.mxu0 %v1289
    %1360 = vmatprep.subr.bf16.mxu0 0
    %1361 = vmatpush1.bf16.msra.mxu0 %v1290
    %1362 = vmatprep.subr.bf16.mxu0 0
    %1363 = vmatpush1.bf16.msra.mxu0 %v1291
    %1364 = vmatprep.subr.bf16.mxu0 0
    %1365 = vmatpush1.bf16.msra.mxu0 %v1292
    %1366 = vmatprep.subr.bf16.mxu0 0
    %1367 = vmatpush1.bf16.msra.mxu0 %v1293
    %1368 = vmatprep.subr.bf16.mxu0 0
    %1369 = vmatpush1.bf16.msra.mxu0 %v1294
    %1370 = vmatprep.subr.bf16.mxu0 0
    %1371 = vmatpush1.bf16.msra.mxu0 %v1295
    %1372 = vmatprep.subr.bf16.mxu0 0
    %1373 = vmatpush1.bf16.msra.mxu0 %v1296
    %1374 = vmatprep.subr.bf16.mxu0 0
    %1375 = vmatpush1.bf16.msra.mxu0 %v1297
    %1376 = vmatprep.subr.bf16.mxu0 0
    %1377 = vmatpush1.bf16.msra.mxu0 %v1298
    %1378 = vmatprep.subr.bf16.mxu0 0
    %1379 = vmatpush1.bf16.msra.mxu0 %v1299
    %1380 = vmatprep.mubr.bf16.mxu0 %v1144
    %1381 = vmatmul.mubr.bf16.gmra.mrb[0].mxu0 %v1143
    %v1382 = vpop.f32.mrb[0].mxu0
    %v1383 = vadd.f32 %v1155, %v1382
    %v1384 = vpop.f32.mrb[0].mxu0
    %v1385 = vpop.f32.mrb[0].mxu0
    %v1386 = vadd.f32 %v1155, %v1385
    %v1387 = vpop.f32.mrb[0].mxu0
    %1388 = vmatprep.mubr.bf16.mxu0 %v1148
    %1389 = vmatmul.mubr.bf16.gmra.mrb[0].mxu0 %v1147
    %v1390 = vpop.f32.mrb[0].mxu0
    %v1391 = vadd.f32 %v1155, %v1390
    %v1392 = vpop.f32.mrb[0].mxu0
    %v1393 = vpop.f32.mrb[0].mxu0
    %v1394 = vpop.f32.mrb[0].mxu0
    %1395 = vdwg.mxu0
    %1396 = vmatprep.subr.bf16.mxu0 0
    %1397 = vmatpush1.bf16.msra.mxu0 %v1300
    %1398 = vmatprep.subr.bf16.mxu0 0
    %1399 = vmatpush1.bf16.msra.mxu0 %v1301
    %1400 = vmatprep.subr.bf16.mxu0 0
    %1401 = vmatpush1.bf16.msra.mxu0 %v1302
    %1402 = vmatprep.subr.bf16.mxu0 0
    %1403 = vmatpush1.bf16.msra.mxu0 %v1303
    %1404 = vmatprep.subr.bf16.mxu0 0
    %1405 = vmatpush1.bf16.msra.mxu0 %v1304
    %1406 = vmatprep.subr.bf16.mxu0 0
    %1407 = vmatpush1.bf16.msra.mxu0 %v1305
    %1408 = vmatprep.subr.bf16.mxu0 0
    %1409 = vmatpush1.bf16.msra.mxu0 %v1306
    %1410 = vmatprep.subr.bf16.mxu0 0
    %1411 = vmatpush1.bf16.msra.mxu0 %v1307
    %1412 = vmatprep.subr.bf16.mxu0 0
    %1413 = vmatpush1.bf16.msra.mxu0 %v1308
    %1414 = vmatprep.subr.bf16.mxu0 0
    %1415 = vmatpush1.bf16.msra.mxu0 %v1309
    %1416 = vmatprep.subr.bf16.mxu0 0
    %1417 = vmatpush1.bf16.msra.mxu0 %v1310
    %1418 = vmatprep.subr.bf16.mxu0 0
    %1419 = vmatpush1.bf16.msra.mxu0 %v1311
    %1420 = vmatprep.subr.bf16.mxu0 0
    %1421 = vmatpush1.bf16.msra.mxu0 %v1312
    %1422 = vmatprep.subr.bf16.mxu0 0
    %1423 = vmatpush1.bf16.msra.mxu0 %v1313
    %1424 = vmatprep.subr.bf16.mxu0 0
    %1425 = vmatpush1.bf16.msra.mxu0 %v1314
    %1426 = vmatprep.subr.bf16.mxu0 0
    %1427 = vmatpush1.bf16.msra.mxu0 %v1315
    %1428 = vmatprep.mubr.bf16.mxu0 %v1146
    %1429 = vmatmul.mubr.bf16.gmra.mrb[0].mxu0 %v1145
    %v1430 = vpop.f32.mrb[0].mxu0
    %v1431 = vadd.f32 %v1383, %v1430
    %v1432 = vpop.f32.mrb[0].mxu0
    %v1433 = vpop.f32.mrb[0].mxu0
    %v1434 = vadd.f32 %v1386, %v1433
    %v1435 = vpop.f32.mrb[0].mxu0
    %1436 = vmatprep.mubr.bf16.mxu0 %v1150
    %1437 = vmatmul.mubr.bf16.gmra.mrb[0].mxu0 %v1149
    %v1438 = vpop.f32.mrb[0].mxu0
    %v1439 = vadd.f32 %v1391, %v1438
    %v1440 = vpop.f32.mrb[0].mxu0
    %v1441 = vpop.f32.mrb[0].mxu0
    %v1442 = vpop.f32.mrb[0].mxu0
    %1443 = vdwg.mxu0
    %v1444 = vmax.f32 %v1431, 0.0
    %v1445 = vmax.f32 %v1434, 0.0
    %v1446 = vmax.f32 %v1439, 0.0
    %1447 = vst.msk [vmem:[#allocation4] sm:$0xff] %vm248, %v1444
    %1448 = vst.msk [vmem:[#allocation4 + $0x8] sm:$0xff] %vm248, %v1445
    %vm1449 = vcmask 517120
    %1450 = vst.msk [vmem:[#allocation4 + $0x10] sm:$0x3] %vm1449, %v1446
    %v1451 = vld [vmem:[#allocation4] sm:$0x1]
    %vm1452 = vcmask 516096
    %1453 = vst.msk [vmem:[#allocation5] sm:$0x1] %vm1452, %v1451
    %v1454 = vld [vmem:[#allocation4 + $0x1] sm:$0x1]
    %v1457 = vunpack.c.l.s4 1983009808
    %v1458 = vunpack.c.0.s8 %v1457
    %v1459 = vlaneseq
    %v1460 = vshrl.u32 %v1459, 7
    %v1461 = vsub.s32 %v1458, %v1460
    %v1462 = vrot.slane %v1454, %v1461
    %1463 = vrot.lane.b32.xlu0 %v1462, 64
    %v1464 = vpop.permute.xlu0 %1463
    %vm1466 = vcmask 1040896
    %1467 = vst.msk [vmem:[#allocation5] sm:$0x1] %vm1466, %v1464
    %v1468 = vld [vmem:[#allocation4 + $0x2] sm:$0x1]
    %1469 = vst.msk [vmem:[#allocation5 + $0x2] sm:$0x1] %vm1452, %v1468
    %v1470 = vld [vmem:[#allocation4 + $0x3] sm:$0x1]
    %v1473 = vunpack.c.l.s4 1983009808
    %v1474 = vunpack.c.0.s8 %v1473
    %v1475 = vlaneseq
    %v1476 = vshrl.u32 %v1475, 7
    %v1477 = vsub.s32 %v1474, %v1476
    %v1478 = vrot.slane %v1470, %v1477
    %1479 = vrot.lane.b32.xlu0 %v1478, 64
    %v1480 = vpop.permute.xlu0 %1479
    %1482 = vst.msk [vmem:[#allocation5 + $0x2] sm:$0x1] %vm1466, %v1480
    %v1483 = vld [vmem:[#allocation4 + $0x4] sm:$0x1]
    %1484 = vst.msk [vmem:[#allocation5 + $0x4] sm:$0x1] %vm1452, %v1483
    %v1485 = vld [vmem:[#allocation4 + $0x5] sm:$0x1]
    %v1488 = vunpack.c.l.s4 1983009808
    %v1489 = vunpack.c.0.s8 %v1488
    %v1490 = vlaneseq
    %v1491 = vshrl.u32 %v1490, 7
    %v1492 = vsub.s32 %v1489, %v1491
    %v1493 = vrot.slane %v1485, %v1492
    %1494 = vrot.lane.b32.xlu0 %v1493, 64
    %v1495 = vpop.permute.xlu0 %1494
    %1497 = vst.msk [vmem:[#allocation5 + $0x4] sm:$0x1] %vm1466, %v1495
    %v1498 = vld [vmem:[#allocation4 + $0x6] sm:$0x1]
    %1499 = vst.msk [vmem:[#allocation5 + $0x6] sm:$0x1] %vm1452, %v1498
    %v1500 = vld [vmem:[#allocation4 + $0x7] sm:$0x1]
    %v1503 = vunpack.c.l.s4 1983009808
    %v1504 = vunpack.c.0.s8 %v1503
    %v1505 = vlaneseq
    %v1506 = vshrl.u32 %v1505, 7
    %v1507 = vsub.s32 %v1504, %v1506
    %v1508 = vrot.slane %v1500, %v1507
    %1509 = vrot.lane.b32.xlu0 %v1508, 64
    %v1510 = vpop.permute.xlu0 %1509
    %1512 = vst.msk [vmem:[#allocation5 + $0x6] sm:$0x1] %vm1466, %v1510
    %v1513 = vld [vmem:[#allocation4 + $0x8] sm:$0x1]
    %1514 = vst.msk [vmem:[#allocation5 + $0x8] sm:$0x1] %vm1452, %v1513
    %v1515 = vld [vmem:[#allocation4 + $0x9] sm:$0x1]
    %1516 = vst.msk [vmem:[#allocation5 + $0x1] sm:$0x1] %vm1452, %v1515
    %v1517 = vld [vmem:[#allocation4 + $0xa] sm:$0x1]
    %v1520 = vunpack.c.l.s4 1983009808
    %v1521 = vunpack.c.0.s8 %v1520
    %v1522 = vlaneseq
    %v1523 = vshrl.u32 %v1522, 7
    %v1524 = vsub.s32 %v1521, %v1523
    %v1525 = vrot.slane %v1517, %v1524
    %1526 = vrot.lane.b32.xlu0 %v1525, 64
    %v1527 = vpop.permute.xlu0 %1526
    %1529 = vst.msk [vmem:[#allocation5 + $0x1] sm:$0x1] %vm1466, %v1527
    %v1530 = vld [vmem:[#allocation4 + $0xb] sm:$0x1]
    %1531 = vst.msk [vmem:[#allocation5 + $0x3] sm:$0x1] %vm1452, %v1530
    %v1532 = vld [vmem:[#allocation4 + $0xc] sm:$0x1]
    %v1535 = vunpack.c.l.s4 1983009808
    %v1536 = vunpack.c.0.s8 %v1535
    %v1537 = vlaneseq
    %v1538 = vshrl.u32 %v1537, 7
    %v1539 = vsub.s32 %v1536, %v1538
    %v1540 = vrot.slane %v1532, %v1539
    %1541 = vrot.lane.b32.xlu0 %v1540, 64
    %v1542 = vpop.permute.xlu0 %1541
    %1544 = vst.msk [vmem:[#allocation5 + $0x3] sm:$0x1] %vm1466, %v1542
    %v1545 = vld [vmem:[#allocation4 + $0xd] sm:$0x1]
    %1546 = vst.msk [vmem:[#allocation5 + $0x5] sm:$0x1] %vm1452, %v1545
    %v1547 = vld [vmem:[#allocation4 + $0xe] sm:$0x1]
    %v1550 = vunpack.c.l.s4 1983009808
    %v1551 = vunpack.c.0.s8 %v1550
    %v1552 = vlaneseq
    %v1553 = vshrl.u32 %v1552, 7
    %v1554 = vsub.s32 %v1551, %v1553
    %v1555 = vrot.slane %v1547, %v1554
    %1556 = vrot.lane.b32.xlu0 %v1555, 64
    %v1557 = vpop.permute.xlu0 %1556
    %1559 = vst.msk [vmem:[#allocation5 + $0x5] sm:$0x1] %vm1466, %v1557
    %v1560 = vld [vmem:[#allocation4 + $0xf] sm:$0x1]
    %1561 = vst.msk [vmem:[#allocation5 + $0x7] sm:$0x1] %vm1452, %v1560
    %v1562 = vld [vmem:[#allocation4 + $0x10] sm:$0x1]
    %v1565 = vunpack.c.l.s4 1983009808
    %v1566 = vunpack.c.0.s8 %v1565
    %v1567 = vlaneseq
    %v1568 = vshrl.u32 %v1567, 7
    %v1569 = vsub.s32 %v1566, %v1568
    %v1570 = vrot.slane %v1562, %v1569
    %1571 = vrot.lane.b32.xlu0 %v1570, 64
    %v1572 = vpop.permute.xlu0 %1571
    %1574 = vst.msk [vmem:[#allocation5 + $0x7] sm:$0x1] %vm1466, %v1572
    %v1575 = vld [vmem:[#allocation4 + $0x11] sm:$0x1]
    %1576 = vst.msk [vmem:[#allocation5 + $0x9] sm:$0x1] %vm1452, %v1575
    %v1577 = vld [vmem:[#allocation5] sm:$0xff]
    %v1578 = vld [vmem:[#allocation5 + $0x8] sm:$0x3]
    %v1579 = vld [vmem:[%s2 + $0x160] sm:$0xf]
    %v1580 = vld [vmem:[%s2 + $0x164] sm:$0xf]
    %v1581 = vld [vmem:[%s2 + $0x168] sm:$0xf]
    %v1582 = vld [vmem:[%s2 + $0x16c] sm:$0xf]
    %v1583 = vld [vmem:[%s2 + $0x170] sm:$0xf]
    %v1584 = vld [vmem:[%s2 + $0x174] sm:$0xf]
    %v1585 = vld [vmem:[%s2 + $0x178] sm:$0xf]
    %v1586 = vld [vmem:[%s2 + $0x17c] sm:$0xf]
    %v1587 = vld [vmem:[%s2 + $0x180] sm:$0xf]
    %v1588 = vld [vmem:[%s2 + $0x184] sm:$0xf]
    %v1589 = vld [vmem:[%s2 + $0x188] sm:$0xf]
    %v1590 = vld [vmem:[%s2 + $0x18c] sm:$0xf]
    %v1591 = vld [vmem:[%s2 + $0x190] sm:$0xf]
    %v1592 = vld [vmem:[%s2 + $0x194] sm:$0xf]
    %v1593 = vld [vmem:[%s2 + $0x198] sm:$0xf]
    %v1594 = vld [vmem:[%s2 + $0x19c] sm:$0xf]
    %v1595 = vld [vmem:[%s2 + $0x1a0] sm:$0xf]
    %v1596 = vld [vmem:[%s2 + $0x1a4] sm:$0xf]
    %v1597 = vld [vmem:[%s2 + $0x1a8] sm:$0xf]
    %v1598 = vld [vmem:[%s2 + $0x1ac] sm:$0xf]
    %v1599 = vld [vmem:[%s2 + $0x1b0] sm:$0xf]
    %v1600 = vld [vmem:[%s2 + $0x1b4] sm:$0xf]
    %v1601 = vld [vmem:[%s2 + $0x1b8] sm:$0xf]
    %v1602 = vld [vmem:[%s2 + $0x1bc] sm:$0xf]
    %v1603 = vld [vmem:[%s2 + $0x1c0] sm:$0xf]
    %v1604 = vld [vmem:[%s2 + $0x1c4] sm:$0xf]
    %v1605 = vld [vmem:[%s2 + $0x1c8] sm:$0xf]
    %v1606 = vld [vmem:[%s2 + $0x1cc] sm:$0xf]
    %v1607 = vld [vmem:[%s2 + $0x1d0] sm:$0xf]
    %v1608 = vld [vmem:[%s2 + $0x1d4] sm:$0xf]
    %v1609 = vld [vmem:[%s2 + $0x1d8] sm:$0xf]
    %v1610 = vld [vmem:[%s2 + $0x1dc] sm:$0xf]
    %v1611 = vld [vmem:[%s2 + $0x1e0] sm:$0xf]
    %v1612 = vld [vmem:[%s2 + $0x1e4] sm:$0xf]
    %v1613 = vld [vmem:[%s2 + $0x1e8] sm:$0xf]
    %v1614 = vld [vmem:[%s2 + $0x1ec] sm:$0xf]
    %v1615 = vld [vmem:[%s2 + $0x1f0] sm:$0xf]
    %v1616 = vld [vmem:[%s2 + $0x1f4] sm:$0xf]
    %v1617 = vld [vmem:[%s2 + $0x1f8] sm:$0xf]
    %v1618 = vld [vmem:[%s2 + $0x1fc] sm:$0xf]
    %v1619 = vld [vmem:[%s2 + $0x200] sm:$0xf]
    %v1620 = vld [vmem:[%s2 + $0x204] sm:$0xf]
    %v1621 = vld [vmem:[%s2 + $0x208] sm:$0xf]
    %v1622 = vld [vmem:[%s2 + $0x20c] sm:$0xf]
    %v1623 = vld [vmem:[%s2 + $0x210] sm:$0xf]
    %v1624 = vld [vmem:[%s2 + $0x214] sm:$0xf]
    %v1625 = vld [vmem:[%s2 + $0x218] sm:$0xf]
    %v1626 = vld [vmem:[%s2 + $0x21c] sm:$0xf]
    %v1627 = vld [vmem:[%s2 + $0x220] sm:$0xf]
    %v1628 = vld [vmem:[%s2 + $0x224] sm:$0xf]
    %v1629 = vld [vmem:[%s2 + $0x228] sm:$0xf]
    %v1630 = vld [vmem:[%s2 + $0x22c] sm:$0xf]
    %v1631 = vld [vmem:[%s2 + $0x230] sm:$0xf]
    %v1632 = vld [vmem:[%s2 + $0x234] sm:$0xf]
    %v1633 = vld [vmem:[%s2 + $0x238] sm:$0xf]
    %v1634 = vld [vmem:[%s2 + $0x23c] sm:$0xf]
    %v1635 = vld [vmem:[%s2 + $0x240] sm:$0xf]
    %v1636 = vld [vmem:[%s2 + $0x244] sm:$0xf]
    %v1637 = vld [vmem:[%s2 + $0x248] sm:$0xf]
    %v1638 = vld [vmem:[%s2 + $0x24c] sm:$0xf]
    %v1639 = vld [vmem:[%s2 + $0x250] sm:$0xf]
    %v1640 = vld [vmem:[%s2 + $0x254] sm:$0xf]
    %v1641 = vld [vmem:[%s2 + $0x258] sm:$0xf]
    %v1642 = vld [vmem:[%s2 + $0x25c] sm:$0xf]
    %v1643 = vld [vmem:[%s2 + $0x260] sm:$0xf]
    %v1644 = vld [vmem:[%s2 + $0x264] sm:$0xf]
    %v1645 = vld [vmem:[%s2 + $0x268] sm:$0xf]
    %v1646 = vld [vmem:[%s2 + $0x26c] sm:$0xf]
    %v1647 = vld [vmem:[%s2 + $0x270] sm:$0xf]
    %v1648 = vld [vmem:[%s2 + $0x274] sm:$0xf]
    %v1649 = vld [vmem:[%s2 + $0x278] sm:$0xf]
    %v1650 = vld [vmem:[%s2 + $0x27c] sm:$0xf]
    %v1653 = vcombine.high %v1577, %v1577
    %v1655 = vunpack.c.l.s4 1983009808
    %v1656 = vunpack.c.0.s8 %v1655
    %v1657 = vlaneseq
    %v1658 = vshrl.u32 %v1657, 7
    %v1659 = vsub.s32 %v1656, %v1658
    %v1660 = vrot.slane %v1577, %v1659
    %v1662 = vunpack.c.l.s4 1983009808
    %v1663 = vunpack.c.0.s8 %v1662
    %v1664 = vlaneseq
    %v1665 = vshrl.u32 %v1664, 7
    %v1666 = vsub.s32 %v1663, %v1665
    %v1667 = vrot.slane %v1653, %v1666
    %v1668 = vcombine.high %v1660, %v1660
    %v1669 = vcombine.high %v1667, %v1667
    %v1671 = vunpack.c.l.s4 1983009808
    %v1672 = vunpack.c.0.s8 %v1671
    %v1673 = vlaneseq
    %v1674 = vshrl.u32 %v1673, 7
    %v1675 = vsub.s32 %v1672, %v1674
    %v1676 = vrot.slane %v1578, %v1675
    %v1682 = vpack.c.bf16 %v1660, %v1660
    %v1683 = vpack.c.bf16 %v1668, %v1668
    %v1684 = vpack.c.bf16 %v1667, %v1667
    %v1685 = vpack.c.bf16 %v1669, %v1669
    %v1686 = vpack.c.bf16 %v1676, %v1676
    %v1687 = vld [vmem:[%s3 + $0x2] sm:$0x1]
    %v1688 = vlaneseq
    %v1689 = vshrl.u32 %v1688, 7
    %v1690 = vsub.s32 0, %v1689
    %v1691 = vrot.slane %v1687, %v1690
    %v1764 = vunpack.c.l.b16 %v1579
    %v1765 = vunpack.c.l.b16 %v1580
    %v1766 = vunpack.c.l.b16 %v1581
    %v1767 = vunpack.c.l.b16 %v1582
    %v1768 = vunpack.c.l.b16 %v1583
    %v1769 = vunpack.c.l.b16 %v1584
    %v1770 = vunpack.c.l.b16 %v1585
    %v1771 = vunpack.c.l.b16 %v1586
    %v1772 = vunpack.c.l.b16 %v1587
    %v1773 = vunpack.c.l.b16 %v1588
    %v1774 = vunpack.c.l.b16 %v1589
    %v1775 = vunpack.c.l.b16 %v1590
    %v1776 = vunpack.c.l.b16 %v1591
    %v1777 = vunpack.c.l.b16 %v1592
    %v1778 = vunpack.c.l.b16 %v1593
    %v1779 = vunpack.c.l.b16 %v1594
    %v1780 = vunpack.c.l.b16 %v1595
    %v1781 = vunpack.c.l.b16 %v1596
    %v1782 = vunpack.c.l.b16 %v1597
    %v1783 = vunpack.c.l.b16 %v1598
    %v1784 = vunpack.c.l.b16 %v1599
    %v1785 = vunpack.c.l.b16 %v1600
    %v1786 = vunpack.c.l.b16 %v1601
    %v1787 = vunpack.c.l.b16 %v1602
    %v1788 = vunpack.c.l.b16 %v1603
    %v1789 = vunpack.c.l.b16 %v1604
    %v1790 = vunpack.c.l.b16 %v1605
    %v1791 = vunpack.c.l.b16 %v1606
    %v1792 = vunpack.c.l.b16 %v1607
    %v1793 = vunpack.c.l.b16 %v1608
    %v1794 = vunpack.c.l.b16 %v1609
    %v1795 = vunpack.c.l.b16 %v1610
    %v1796 = vunpack.c.l.b16 %v1611
    %v1797 = vunpack.c.l.b16 %v1612
    %v1798 = vunpack.c.l.b16 %v1613
    %v1799 = vunpack.c.l.b16 %v1614
    %v1800 = vunpack.c.l.b16 %v1615
    %v1801 = vunpack.c.l.b16 %v1616
    %v1802 = vunpack.c.l.b16 %v1617
    %v1803 = vunpack.c.l.b16 %v1618
    %v1804 = vunpack.c.l.b16 %v1619
    %v1805 = vunpack.c.l.b16 %v1620
    %v1806 = vunpack.c.l.b16 %v1621
    %v1807 = vunpack.c.l.b16 %v1622
    %v1808 = vunpack.c.l.b16 %v1623
    %v1809 = vunpack.c.l.b16 %v1624
    %v1810 = vunpack.c.l.b16 %v1625
    %v1811 = vunpack.c.l.b16 %v1626
    %v1812 = vunpack.c.l.b16 %v1627
    %v1813 = vunpack.c.l.b16 %v1628
    %v1814 = vunpack.c.l.b16 %v1629
    %v1815 = vunpack.c.l.b16 %v1630
    %v1816 = vunpack.c.l.b16 %v1631
    %v1817 = vunpack.c.l.b16 %v1632
    %v1818 = vunpack.c.l.b16 %v1633
    %v1819 = vunpack.c.l.b16 %v1634
    %v1820 = vunpack.c.l.b16 %v1635
    %v1821 = vunpack.c.l.b16 %v1636
    %v1822 = vunpack.c.l.b16 %v1637
    %v1823 = vunpack.c.l.b16 %v1638
    %v1824 = vunpack.c.l.b16 %v1639
    %v1825 = vunpack.c.l.b16 %v1640
    %v1826 = vunpack.c.l.b16 %v1641
    %v1827 = vunpack.c.l.b16 %v1642
    %v1828 = vunpack.c.l.b16 %v1643
    %v1829 = vunpack.c.l.b16 %v1644
    %v1830 = vunpack.c.l.b16 %v1645
    %v1831 = vunpack.c.l.b16 %v1646
    %v1832 = vunpack.c.l.b16 %v1647
    %v1833 = vunpack.c.l.b16 %v1648
    %v1834 = vunpack.c.l.b16 %v1649
    %v1835 = vunpack.c.l.b16 %v1650
    %v1836 = vpack.c.b16 %v1765, %v1764
    %v1837 = vpack.c.b16 %v1767, %v1766
    %v1838 = vpack.c.b16 %v1769, %v1768
    %v1839 = vpack.c.b16 %v1771, %v1770
    %v1840 = vpack.c.b16 %v1773, %v1772
    %v1841 = vpack.c.b16 %v1775, %v1774
    %v1842 = vpack.c.b16 %v1777, %v1776
    %v1843 = vpack.c.b16 %v1779, %v1778
    %v1844 = vpack.c.b16 %v1781, %v1780
    %v1845 = vpack.c.b16 %v1783, %v1782
    %v1846 = vpack.c.b16 %v1785, %v1784
    %v1847 = vpack.c.b16 %v1787, %v1786
    %v1848 = vpack.c.b16 %v1789, %v1788
    %v1849 = vpack.c.b16 %v1791, %v1790
    %v1850 = vpack.c.b16 %v1793, %v1792
    %v1851 = vpack.c.b16 %v1795, %v1794
    %v1852 = vpack.c.b16 %v1797, %v1796
    %v1853 = vpack.c.b16 %v1799, %v1798
    %v1854 = vpack.c.b16 %v1801, %v1800
    %v1855 = vpack.c.b16 %v1803, %v1802
    %v1856 = vpack.c.b16 %v1805, %v1804
    %v1857 = vpack.c.b16 %v1807, %v1806
    %v1858 = vpack.c.b16 %v1809, %v1808
    %v1859 = vpack.c.b16 %v1811, %v1810
    %v1860 = vpack.c.b16 %v1813, %v1812
    %v1861 = vpack.c.b16 %v1815, %v1814
    %v1862 = vpack.c.b16 %v1817, %v1816
    %v1863 = vpack.c.b16 %v1819, %v1818
    %v1864 = vpack.c.b16 %v1821, %v1820
    %v1865 = vpack.c.b16 %v1823, %v1822
    %v1866 = vpack.c.b16 %v1825, %v1824
    %v1867 = vpack.c.b16 %v1827, %v1826
    %v1868 = vpack.c.b16 %v1829, %v1828
    %v1869 = vpack.c.b16 %v1831, %v1830
    %v1870 = vpack.c.b16 %v1833, %v1832
    %v1871 = vpack.c.b16 %v1835, %v1834
    %v1909 = vsel %vm248, %v1686, 0
    %1911 = vmatprep.subr.bf16.mxu0 0
    %1912 = vmatpush1.bf16.msra.mxu0 %v1836
    %1913 = vmatprep.subr.bf16.mxu0 0
    %1914 = vmatpush1.bf16.msra.mxu0 %v1837
    %1915 = vmatprep.subr.bf16.mxu0 0
    %1916 = vmatpush1.bf16.msra.mxu0 %v1838
    %1917 = vmatprep.subr.bf16.mxu0 0
    %1918 = vmatpush1.bf16.msra.mxu0 %v1839
    %1919 = vmatprep.subr.bf16.mxu0 0
    %1920 = vmatpush1.bf16.msra.mxu0 %v1840
    %1921 = vmatprep.subr.bf16.mxu0 0
    %1922 = vmatpush1.bf16.msra.mxu0 %v1841
    %1923 = vmatprep.subr.bf16.mxu0 0
    %1924 = vmatpush1.bf16.msra.mxu0 %v1842
    %1925 = vmatprep.subr.bf16.mxu0 0
    %1926 = vmatpush1.bf16.msra.mxu0 %v1843
    %1927 = vmatprep.subr.bf16.mxu0 0
    %1928 = vmatpush1.bf16.msra.mxu0 %v1844
    %1929 = vmatprep.subr.bf16.mxu0 0
    %1930 = vmatpush1.bf16.msra.mxu0 %v1845
    %1931 = vmatprep.subr.bf16.mxu0 0
    %1932 = vmatpush1.bf16.msra.mxu0 %v1846
    %1933 = vmatprep.subr.bf16.mxu0 0
    %1934 = vmatpush1.bf16.msra.mxu0 %v1847
    %1935 = vmatprep.subr.bf16.mxu0 0
    %1936 = vmatpush1.bf16.msra.mxu0 %v1848
    %1937 = vmatprep.subr.bf16.mxu0 0
    %1938 = vmatpush1.bf16.msra.mxu0 %v1849
    %1939 = vmatprep.subr.bf16.mxu0 0
    %1940 = vmatpush1.bf16.msra.mxu0 %v1850
    %1941 = vmatprep.subr.bf16.mxu0 0
    %1942 = vmatpush1.bf16.msra.mxu0 %v1851
    %1943 = vmatprep.mubr.bf16.mxu0 %v1683
    %1944 = vmatmul.mubr.bf16.gmra.mrb[0].mxu0 %v1682
    %v1945 = vpop.f32.mrb[0].mxu0
    %v1946 = vadd.f32 %v1691, %v1945
    %v1947 = vpop.f32.mrb[0].mxu0
    %v1948 = vpop.f32.mrb[0].mxu0
    %v1949 = vpop.f32.mrb[0].mxu0
    %1950 = vdwg.mxu0
    %1951 = vmatprep.subr.bf16.mxu0 0
    %1952 = vmatpush1.bf16.msra.mxu0 %v1852
    %1953 = vmatprep.subr.bf16.mxu0 0
    %1954 = vmatpush1.bf16.msra.mxu0 %v1853
    %1955 = vmatprep.subr.bf16.mxu0 0
    %1956 = vmatpush1.bf16.msra.mxu0 %v1854
    %1957 = vmatprep.subr.bf16.mxu0 0
    %1958 = vmatpush1.bf16.msra.mxu0 %v1855
    %1959 = vmatprep.subr.bf16.mxu0 0
    %1960 = vmatpush1.bf16.msra.mxu0 %v1856
    %1961 = vmatprep.subr.bf16.mxu0 0
    %1962 = vmatpush1.bf16.msra.mxu0 %v1857
    %1963 = vmatprep.subr.bf16.mxu0 0
    %1964 = vmatpush1.bf16.msra.mxu0 %v1858
    %1965 = vmatprep.subr.bf16.mxu0 0
    %1966 = vmatpush1.bf16.msra.mxu0 %v1859
    %1967 = vmatprep.subr.bf16.mxu0 0
    %1968 = vmatpush1.bf16.msra.mxu0 %v1860
    %1969 = vmatprep.subr.bf16.mxu0 0
    %1970 = vmatpush1.bf16.msra.mxu0 %v1861
    %1971 = vmatprep.subr.bf16.mxu0 0
    %1972 = vmatpush1.bf16.msra.mxu0 %v1862
    %1973 = vmatprep.subr.bf16.mxu0 0
    %1974 = vmatpush1.bf16.msra.mxu0 %v1863
    %1975 = vmatprep.subr.bf16.mxu0 0
    %1976 = vmatpush1.bf16.msra.mxu0 %v1864
    %1977 = vmatprep.subr.bf16.mxu0 0
    %1978 = vmatpush1.bf16.msra.mxu0 %v1865
    %1979 = vmatprep.subr.bf16.mxu0 0
    %1980 = vmatpush1.bf16.msra.mxu0 %v1866
    %1981 = vmatprep.subr.bf16.mxu0 0
    %1982 = vmatpush1.bf16.msra.mxu0 %v1867
    %1983 = vmatprep.mubr.bf16.mxu0 %v1685
    %1984 = vmatmul.mubr.bf16.gmra.mrb[0].mxu0 %v1684
    %v1985 = vpop.f32.mrb[0].mxu0
    %v1986 = vadd.f32 %v1946, %v1985
    %v1987 = vpop.f32.mrb[0].mxu0
    %v1988 = vpop.f32.mrb[0].mxu0
    %v1989 = vpop.f32.mrb[0].mxu0
    %1990 = vdwg.mxu0
    %1991 = vmatprep.subr.bf16.mxu0 0
    %1992 = vmatpush1.bf16.msra.mxu0 %v1868
    %1993 = vmatprep.subr.bf16.mxu0 0
    %1994 = vmatpush1.bf16.msra.mxu0 %v1869
    %1995 = vmatprep.subr.bf16.mxu0 0
    %1996 = vmatpush1.bf16.msra.mxu0 %v1870
    %1997 = vmatprep.subr.bf16.mxu0 0
    %1998 = vmatpush1.bf16.msra.mxu0 %v1871
    %1999 = vmatprep.subr.bf16.mxu0 0
    %2000 = vmatpush1.bf16.msra.mxu0 0
    %2001 = vmatprep.subr.bf16.mxu0 0
    %2002 = vmatpush1.bf16.msra.mxu0 0
    %2003 = vmatprep.subr.bf16.mxu0 0
    %2004 = vmatpush1.bf16.msra.mxu0 0
    %2005 = vmatprep.subr.bf16.mxu0 0
    %2006 = vmatpush1.bf16.msra.mxu0 0
    %2007 = vmatprep.subr.bf16.mxu0 0
    %2008 = vmatpush1.bf16.msra.mxu0 0
    %2009 = vmatprep.subr.bf16.mxu0 0
    %2010 = vmatpush1.bf16.msra.mxu0 0
    %2011 = vmatprep.subr.bf16.mxu0 0
    %2012 = vmatpush1.bf16.msra.mxu0 0
    %2013 = vmatprep.subr.bf16.mxu0 0
    %2014 = vmatpush1.bf16.msra.mxu0 0
    %2015 = vmatprep.subr.bf16.mxu0 0
    %2016 = vmatpush1.bf16.msra.mxu0 0
    %2017 = vmatprep.subr.bf16.mxu0 0
    %2018 = vmatpush1.bf16.msra.mxu0 0
    %2019 = vmatprep.subr.bf16.mxu0 0
    %2020 = vmatpush1.bf16.msra.mxu0 0
    %2021 = vmatprep.subr.bf16.mxu0 0
    %2022 = vmatpush1.bf16.msra.mxu0 0
    %2023 = vmatprep.mubr.bf16.mxu0 0
    %2024 = vmatmul.mubr.bf16.gmra.mrb[0].mxu0 %v1909
    %v2025 = vpop.f32.mrb[0].mxu0
    %v2026 = vadd.f32 %v1986, %v2025
    %v2027 = vpop.f32.mrb[0].mxu0
    %v2028 = vpop.f32.mrb[0].mxu0
    %v2029 = vpop.f32.mrb[0].mxu0
    %2030 = vdwg.mxu0
    %v2031 = vmax.f32 %v2026, 0.0
    %v2032 = vld [vmem:[%s2 + $0x280] sm:$0xf]
    %v2033 = vld [vmem:[%s2 + $0x284] sm:$0xf]
    %v2034 = vld [vmem:[%s2 + $0x288] sm:$0xf]
    %v2035 = vld [vmem:[%s2 + $0x28c] sm:$0xf]
    %v2036 = vld [vmem:[%s2 + $0x290] sm:$0xf]
    %v2037 = vld [vmem:[%s2 + $0x294] sm:$0xf]
    %v2038 = vld [vmem:[%s2 + $0x298] sm:$0xf]
    %v2039 = vld [vmem:[%s2 + $0x29c] sm:$0xf]
    %v2040 = vpack.c.bf16 %v2031, %v2031
    %v2041 = vld [vmem:[%s3 + $0x3] sm:$0x1]
    %v2042 = vlaneseq
    %v2043 = vshrl.u32 %v2042, 7
    %v2044 = vsub.s32 0, %v2043
    %v2045 = vrot.slane %v2041, %v2044
    %v2054 = vunpack.c.l.b16 %v2032
    %v2055 = vunpack.c.l.b16 %v2033
    %v2056 = vunpack.c.l.b16 %v2034
    %v2057 = vunpack.c.l.b16 %v2035
    %v2058 = vunpack.c.l.b16 %v2036
    %v2059 = vunpack.c.l.b16 %v2037
    %v2060 = vunpack.c.l.b16 %v2038
    %v2061 = vunpack.c.l.b16 %v2039
    %v2062 = vpack.c.b16 %v2055, %v2054
    %v2063 = vpack.c.b16 %v2057, %v2056
    %v2064 = vpack.c.b16 %v2059, %v2058
    %v2065 = vpack.c.b16 %v2061, %v2060
    %v2071 = vsel %vm248, %v2040, 0
    %2073 = vmatprep.subr.bf16.mxu0 0
    %2074 = vmatpush1.bf16.msra.mxu0 %v2062
    %2075 = vmatprep.subr.bf16.mxu0 0
    %2076 = vmatpush1.bf16.msra.mxu0 %v2063
    %2077 = vmatprep.subr.bf16.mxu0 0
    %2078 = vmatpush1.bf16.msra.mxu0 %v2064
    %2079 = vmatprep.subr.bf16.mxu0 0
    %2080 = vmatpush1.bf16.msra.mxu0 %v2065
    %2081 = vmatprep.subr.bf16.mxu0 0
    %2082 = vmatpush1.bf16.msra.mxu0 0
    %2083 = vmatprep.subr.bf16.mxu0 0
    %2084 = vmatpush1.bf16.msra.mxu0 0
    %2085 = vmatprep.subr.bf16.mxu0 0
    %2086 = vmatpush1.bf16.msra.mxu0 0
    %2087 = vmatprep.subr.bf16.mxu0 0
    %2088 = vmatpush1.bf16.msra.mxu0 0
    %2089 = vmatprep.subr.bf16.mxu0 0
    %2090 = vmatpush1.bf16.msra.mxu0 0
    %2091 = vmatprep.subr.bf16.mxu0 0
    %2092 = vmatpush1.bf16.msra.mxu0 0
    %2093 = vmatprep.subr.bf16.mxu0 0
    %2094 = vmatpush1.bf16.msra.mxu0 0
    %2095 = vmatprep.subr.bf16.mxu0 0
    %2096 = vmatpush1.bf16.msra.mxu0 0
    %2097 = vmatprep.subr.bf16.mxu0 0
    %2098 = vmatpush1.bf16.msra.mxu0 0
    %2099 = vmatprep.subr.bf16.mxu0 0
    %2100 = vmatpush1.bf16.msra.mxu0 0
    %2101 = vmatprep.subr.bf16.mxu0 0
    %2102 = vmatpush1.bf16.msra.mxu0 0
    %2103 = vmatprep.subr.bf16.mxu0 0
    %2104 = vmatpush1.bf16.msra.mxu0 0
    %2105 = vmatprep.mubr.bf16.mxu0 0
    %2106 = vmatmul.mubr.bf16.gmra.mrb[0].mxu0 %v2071
    %v2107 = vpop.f32.mrb[0].mxu0
    %v2108 = vadd.f32 %v2045, %v2107
    %v2109 = vpop.f32.mrb[0].mxu0
    %v2110 = vpop.f32.mrb[0].mxu0
    %v2111 = vpop.f32.mrb[0].mxu0
    %2112 = vdwg.mxu0
    %v2113 = vmax.f32 %v2108, 0.0
    %v2114 = vld [vmem:[%s1] sm:$0x3]
    %v2115 = vld [vmem:[%s2 + $0x2a0] sm:$0xf]
    %v2116 = vpack.c.bf16 %v2114, %v2114
    %v2117 = vld [vmem:[%s3 + $0x4] sm:$0x1]
    %v2118 = vlaneseq
    %v2119 = vshrl.u32 %v2118, 7
    %v2120 = vsub.s32 0, %v2119
    %v2121 = vrot.slane %v2117, %v2120
    %vm2122 = vcmask 64512
    %v2124 = vsel %vm2122, %v2116, 0
    %vm2126 = vcmask 1043456
    %v2128 = vsel %vm2126, %v2115, 0
    %2130 = vmatprep.subr.bf16.mxu0 0
    %2131 = vmatpush1.bf16.msra.mxu0 %v2128
    %2132 = vmatprep.subr.bf16.mxu0 0
    %2133 = vmatpush1.bf16.msra.mxu0 0
    %2134 = vmatprep.subr.bf16.mxu0 0
    %2135 = vmatpush1.bf16.msra.mxu0 0
    %2136 = vmatprep.subr.bf16.mxu0 0
    %2137 = vmatpush1.bf16.msra.mxu0 0
    %2138 = vmatprep.subr.bf16.mxu0 0
    %2139 = vmatpush1.bf16.msra.mxu0 0
    %2140 = vmatprep.subr.bf16.mxu0 0
    %2141 = vmatpush1.bf16.msra.mxu0 0
    %2142 = vmatprep.subr.bf16.mxu0 0
    %2143 = vmatpush1.bf16.msra.mxu0 0
    %2144 = vmatprep.subr.bf16.mxu0 0
    %2145 = vmatpush1.bf16.msra.mxu0 0
    %2146 = vmatprep.subr.bf16.mxu0 0
    %2147 = vmatpush1.bf16.msra.mxu0 0
    %2148 = vmatprep.subr.bf16.mxu0 0
    %2149 = vmatpush1.bf16.msra.mxu0 0
    %2150 = vmatprep.subr.bf16.mxu0 0
    %2151 = vmatpush1.bf16.msra.mxu0 0
    %2152 = vmatprep.subr.bf16.mxu0 0
    %2153 = vmatpush1.bf16.msra.mxu0 0
    %2154 = vmatprep.subr.bf16.mxu0 0
    %2155 = vmatpush1.bf16.msra.mxu0 0
    %2156 = vmatprep.subr.bf16.mxu0 0
    %2157 = vmatpush1.bf16.msra.mxu0 0
    %2158 = vmatprep.subr.bf16.mxu0 0
    %2159 = vmatpush1.bf16.msra.mxu0 0
    %2160 = vmatprep.subr.bf16.mxu0 0
    %2161 = vmatpush1.bf16.msra.mxu0 0
    %2162 = vmatprep.mubr.bf16.mxu0 0
    %2163 = vmatmul.mubr.bf16.gmra.mrb[0].mxu0 %v2124
    %v2164 = vpop.f32.mrb[0].mxu0
    %v2165 = vadd.f32 %v2121, %v2164
    %v2166 = vpop.f32.mrb[0].mxu0
    %v2167 = vpop.f32.mrb[0].mxu0
    %v2168 = vpop.f32.mrb[0].mxu0
    %2169 = vdwg.mxu0
    %v2170 = vmax.f32 %v2165, 0.0
    %v2171 = vld [vmem:[%s2 + $0x2a8] sm:$0xf]
    %v2172 = vld [vmem:[%s2 + $0x2ac] sm:$0xf]
    %v2173 = vld [vmem:[%s2 + $0x2b0] sm:$0xf]
    %v2174 = vld [vmem:[%s2 + $0x2b4] sm:$0xf]
    %v2175 = vld [vmem:[%s2 + $0x2b8] sm:$0xf]
    %v2176 = vpack.c.bf16 %v2170, %v2170
    %v2177 = vld [vmem:[%s3 + $0x5] sm:$0x1]
    %v2178 = vlaneseq
    %v2179 = vshrl.u32 %v2178, 7
    %v2180 = vsub.s32 0, %v2179
    %v2181 = vrot.slane %v2177, %v2180
    %v2187 = vunpack.c.l.b16 %v2171
    %v2188 = vunpack.c.l.b16 %v2172
    %v2189 = vunpack.c.l.b16 %v2173
    %v2190 = vunpack.c.l.b16 %v2174
    %v2191 = vunpack.c.l.b16 %v2175
    %v2192 = vpack.c.b16 %v2188, %v2187
    %v2193 = vpack.c.b16 %v2190, %v2189
    %v2194 = vpack.c.b16 %v2191, %v2191
    %vm2197 = vcmask 326656
    %v2199 = vsel %vm2197, %v2176, 0
    %v2202 = vsel %vm2126, %v2194, 0
    %2204 = vmatprep.subr.bf16.mxu0 0
    %2205 = vmatpush1.bf16.msra.mxu0 %v2192
    %2206 = vmatprep.subr.bf16.mxu0 0
    %2207 = vmatpush1.bf16.msra.mxu0 %v2193
    %2208 = vmatprep.subr.bf16.mxu0 0
    %2209 = vmatpush1.bf16.msra.mxu0 %v2202
    %2210 = vmatprep.subr.bf16.mxu0 0
    %2211 = vmatpush1.bf16.msra.mxu0 0
    %2212 = vmatprep.subr.bf16.mxu0 0
    %2213 = vmatpush1.bf16.msra.mxu0 0
    %2214 = vmatprep.subr.bf16.mxu0 0
    %2215 = vmatpush1.bf16.msra.mxu0 0
    %2216 = vmatprep.subr.bf16.mxu0 0
    %2217 = vmatpush1.bf16.msra.mxu0 0
    %2218 = vmatprep.subr.bf16.mxu0 0
    %2219 = vmatpush1.bf16.msra.mxu0 0
    %2220 = vmatprep.subr.bf16.mxu0 0
    %2221 = vmatpush1.bf16.msra.mxu0 0
    %2222 = vmatprep.subr.bf16.mxu0 0
    %2223 = vmatpush1.bf16.msra.mxu0 0
    %2224 = vmatprep.subr.bf16.mxu0 0
    %2225 = vmatpush1.bf16.msra.mxu0 0
    %2226 = vmatprep.subr.bf16.mxu0 0
    %2227 = vmatpush1.bf16.msra.mxu0 0
    %2228 = vmatprep.subr.bf16.mxu0 0
    %2229 = vmatpush1.bf16.msra.mxu0 0
    %2230 = vmatprep.subr.bf16.mxu0 0
    %2231 = vmatpush1.bf16.msra.mxu0 0
    %2232 = vmatprep.subr.bf16.mxu0 0
    %2233 = vmatpush1.bf16.msra.mxu0 0
    %2234 = vmatprep.subr.bf16.mxu0 0
    %2235 = vmatpush1.bf16.msra.mxu0 0
    %2236 = vmatprep.mubr.bf16.mxu0 0
    %2237 = vmatmul.mubr.bf16.gmra.mrb[0].mxu0 %v2199
    %v2238 = vpop.f32.mrb[0].mxu0
    %v2239 = vadd.f32 %v2181, %v2238
    %v2240 = vpop.f32.mrb[0].mxu0
    %v2241 = vpop.f32.mrb[0].mxu0
    %v2242 = vpop.f32.mrb[0].mxu0
    %2243 = vdwg.mxu0
    %v2244 = vmax.f32 %v2239, 0.0
    %v2245 = vld [vmem:[%s2 + $0x2c0] sm:$0xf]
    %v2246 = vld [vmem:[%s2 + $0x2c4] sm:$0xf]
    %v2247 = vld [vmem:[%s2 + $0x2c8] sm:$0xf]
    %v2248 = vld [vmem:[%s2 + $0x2cc] sm:$0xf]
    %v2249 = vld [vmem:[%s2 + $0x2d0] sm:$0xf]
    %v2250 = vld [vmem:[%s2 + $0x2d4] sm:$0xf]
    %v2251 = vld [vmem:[%s2 + $0x2d8] sm:$0xf]
    %v2252 = vld [vmem:[%s2 + $0x2dc] sm:$0x3]
    %v2253 = vpack.c.bf16 %v2244, %v2244
    %v2254 = vld [vmem:[%s3 + $0x6] sm:$0x1]
    %v2255 = vlaneseq
    %v2256 = vshrl.u32 %v2255, 7
    %v2257 = vsub.s32 0, %v2256
    %v2258 = vrot.slane %v2254, %v2257
    %v2267 = vunpack.c.l.b16 %v2245
    %v2268 = vunpack.c.l.b16 %v2246
    %v2269 = vunpack.c.l.b16 %v2247
    %v2270 = vunpack.c.l.b16 %v2248
    %v2271 = vunpack.c.l.b16 %v2249
    %v2272 = vunpack.c.l.b16 %v2250
    %v2273 = vunpack.c.l.b16 %v2251
    %v2274 = vunpack.c.l.b16 %v2252
    %v2275 = vpack.c.b16 %v2268, %v2267
    %v2276 = vpack.c.b16 %v2270, %v2269
    %v2277 = vpack.c.b16 %v2272, %v2271
    %v2278 = vpack.c.b16 %v2274, %v2273
    %vm2282 = vcmask 490496
    %v2284 = vsel %vm2282, %v2253, 0
    %vm2286 = vcmask 1045504
    %v2288 = vsel %vm2286, %v2278, 0
    %2290 = vmatprep.subr.bf16.mxu0 0
    %2291 = vmatpush1.bf16.msra.mxu0 %v2275
    %2292 = vmatprep.subr.bf16.mxu0 0
    %2293 = vmatpush1.bf16.msra.mxu0 %v2276
    %2294 = vmatprep.subr.bf16.mxu0 0
    %2295 = vmatpush1.bf16.msra.mxu0 %v2277
    %2296 = vmatprep.subr.bf16.mxu0 0
    %2297 = vmatpush1.bf16.msra.mxu0 %v2288
    %2298 = vmatprep.subr.bf16.mxu0 0
    %2299 = vmatpush1.bf16.msra.mxu0 0
    %2300 = vmatprep.subr.bf16.mxu0 0
    %2301 = vmatpush1.bf16.msra.mxu0 0
    %2302 = vmatprep.subr.bf16.mxu0 0
    %2303 = vmatpush1.bf16.msra.mxu0 0
    %2304 = vmatprep.subr.bf16.mxu0 0
    %2305 = vmatpush1.bf16.msra.mxu0 0
    %2306 = vmatprep.subr.bf16.mxu0 0
    %2307 = vmatpush1.bf16.msra.mxu0 0
    %2308 = vmatprep.subr.bf16.mxu0 0
    %2309 = vmatpush1.bf16.msra.mxu0 0
    %2310 = vmatprep.subr.bf16.mxu0 0
    %2311 = vmatpush1.bf16.msra.mxu0 0
    %2312 = vmatprep.subr.bf16.mxu0 0
    %2313 = vmatpush1.bf16.msra.mxu0 0
    %2314 = vmatprep.subr.bf16.mxu0 0
    %2315 = vmatpush1.bf16.msra.mxu0 0
    %2316 = vmatprep.subr.bf16.mxu0 0
    %2317 = vmatpush1.bf16.msra.mxu0 0
    %2318 = vmatprep.subr.bf16.mxu0 0
    %2319 = vmatpush1.bf16.msra.mxu0 0
    %2320 = vmatprep.subr.bf16.mxu0 0
    %2321 = vmatpush1.bf16.msra.mxu0 0
    %2322 = vmatprep.mubr.bf16.mxu0 0
    %2323 = vmatmul.mubr.bf16.gmra.mrb[0].mxu0 %v2284
    %v2324 = vpop.f32.mrb[0].mxu0
    %v2325 = vadd.f32 %v2258, %v2324
    %v2326 = vpop.f32.mrb[0].mxu0
    %v2327 = vpop.f32.mrb[0].mxu0
    %v2328 = vpop.f32.mrb[0].mxu0
    %2329 = vdwg.mxu0
    %v2330 = vmax.f32 %v2325, 0.0
    %v2331 = vld [vmem:[%s2 + $0x2e0] sm:$0xf]
    %v2332 = vld [vmem:[%s2 + $0x2e4] sm:$0xf]
    %v2333 = vld [vmem:[%s2 + $0x2e8] sm:$0x3]
    %v2334 = vpack.c.bf16 %v2330, %v2330
    %v2335 = vld [vmem:[%s3 + $0x7] sm:$0x1]
    %v2336 = vlaneseq
    %v2337 = vshrl.u32 %v2336, 7
    %v2338 = vsub.s32 0, %v2337
    %v2339 = vrot.slane %v2335, %v2338
    %v2343 = vunpack.c.l.b16 %v2331
    %v2344 = vunpack.c.l.b16 %v2332
    %v2345 = vunpack.c.l.b16 %v2333
    %v2346 = vpack.c.b16 %v2344, %v2343
    %v2347 = vpack.c.b16 %v2345, %v2345
    %vm2349 = vcmask 162816
    %v2351 = vsel %vm2349, %v2334, 0
    %vm2353 = vcmask 1041408
    %v2355 = vsel %vm2353, %v2347, 0
    %2357 = vmatprep.subr.bf16.mxu0 0
    %2358 = vmatpush1.bf16.msra.mxu0 %v2346
    %2359 = vmatprep.subr.bf16.mxu0 0
    %2360 = vmatpush1.bf16.msra.mxu0 %v2355
    %2361 = vmatprep.subr.bf16.mxu0 0
    %2362 = vmatpush1.bf16.msra.mxu0 0
    %2363 = vmatprep.subr.bf16.mxu0 0
    %2364 = vmatpush1.bf16.msra.mxu0 0
    %2365 = vmatprep.subr.bf16.mxu0 0
    %2366 = vmatpush1.bf16.msra.mxu0 0
    %2367 = vmatprep.subr.bf16.mxu0 0
    %2368 = vmatpush1.bf16.msra.mxu0 0
    %2369 = vmatprep.subr.bf16.mxu0 0
    %2370 = vmatpush1.bf16.msra.mxu0 0
    %2371 = vmatprep.subr.bf16.mxu0 0
    %2372 = vmatpush1.bf16.msra.mxu0 0
    %2373 = vmatprep.subr.bf16.mxu0 0
    %2374 = vmatpush1.bf16.msra.mxu0 0
    %2375 = vmatprep.subr.bf16.mxu0 0
    %2376 = vmatpush1.bf16.msra.mxu0 0
    %2377 = vmatprep.subr.bf16.mxu0 0
    %2378 = vmatpush1.bf16.msra.mxu0 0
    %2379 = vmatprep.subr.bf16.mxu0 0
    %2380 = vmatpush1.bf16.msra.mxu0 0
    %2381 = vmatprep.subr.bf16.mxu0 0
    %2382 = vmatpush1.bf16.msra.mxu0 0
    %2383 = vmatprep.subr.bf16.mxu0 0
    %2384 = vmatpush1.bf16.msra.mxu0 0
    %2385 = vmatprep.subr.bf16.mxu0 0
    %2386 = vmatpush1.bf16.msra.mxu0 0
    %2387 = vmatprep.subr.bf16.mxu0 0
    %2388 = vmatpush1.bf16.msra.mxu0 0
    %2389 = vmatprep.mubr.bf16.mxu0 0
    %2390 = vmatmul.mubr.bf16.gmra.mrb[0].mxu0 %v2351
    %v2391 = vpop.f32.mrb[0].mxu0
    %v2392 = vadd.f32 %v2339, %v2391
    %v2393 = vpop.f32.mrb[0].mxu0
    %v2394 = vpop.f32.mrb[0].mxu0
    %v2395 = vpop.f32.mrb[0].mxu0
    %2396 = vdwg.mxu0
    %v2397 = vmax.f32 %v2392, 0.0
    %v2398 = vld [vmem:[%s2 + $0x2f0] sm:$0x3]
    %v2399 = vld [vmem:[%s2 + $0x2f0] sm:$0xc]
    %v2400 = vpack.c.bf16 %v2113, %v2113
    %v2401 = vpack.c.bf16 %v2397, %v2397
    %v2403 = vunpack.c.l.b16 %v2399
    %v2404 = vpack.c.b16 %v2403, %v2403
    %v2405 = vrot.slane %v2404, 2
    %vm2406 = vcmask 31744
    %v2408 = vsel %vm2406, %v2401, 0
    %v2411 = vsel %vm2353, %v2405, 0
    %2413 = vmatprep.subr.bf16.mxu0 0
    %2414 = vmatpush1.bf16.msra.mxu0 %v2411
    %2415 = vmatprep.subr.bf16.mxu0 0
    %2416 = vmatpush1.bf16.msra.mxu0 0
    %2417 = vmatprep.subr.bf16.mxu0 0
    %2418 = vmatpush1.bf16.msra.mxu0 0
    %2419 = vmatprep.subr.bf16.mxu0 0
    %2420 = vmatpush1.bf16.msra.mxu0 0
    %2421 = vmatprep.subr.bf16.mxu0 0
    %2422 = vmatpush1.bf16.msra.mxu0 0
    %2423 = vmatprep.subr.bf16.mxu0 0
    %2424 = vmatpush1.bf16.msra.mxu0 0
    %2425 = vmatprep.subr.bf16.mxu0 0
    %2426 = vmatpush1.bf16.msra.mxu0 0
    %2427 = vmatprep.subr.bf16.mxu0 0
    %2428 = vmatpush1.bf16.msra.mxu0 0
    %2429 = vmatprep.subr.bf16.mxu0 0
    %2430 = vmatpush1.bf16.msra.mxu0 0
    %2431 = vmatprep.subr.bf16.mxu0 0
    %2432 = vmatpush1.bf16.msra.mxu0 0
    %2433 = vmatprep.subr.bf16.mxu0 0
    %2434 = vmatpush1.bf16.msra.mxu0 0
    %2435 = vmatprep.subr.bf16.mxu0 0
    %2436 = vmatpush1.bf16.msra.mxu0 0
    %2437 = vmatprep.subr.bf16.mxu0 0
    %2438 = vmatpush1.bf16.msra.mxu0 0
    %2439 = vmatprep.subr.bf16.mxu0 0
    %2440 = vmatpush1.bf16.msra.mxu0 0
    %2441 = vmatprep.subr.bf16.mxu0 0
    %2442 = vmatpush1.bf16.msra.mxu0 0
    %2443 = vmatprep.subr.bf16.mxu0 0
    %2444 = vmatpush1.bf16.msra.mxu0 0
    %2445 = vmatprep.mubr.bf16.mxu0 0
    %2446 = vmatmul.mubr.bf16.gmra.mrb[0].mxu0 %v2408
    %v2447 = vpop.f32.mrb[0].mxu0
    %v2448 = vadd.f32 0.0, %v2447
    %v2449 = vpop.f32.mrb[0].mxu0
    %v2450 = vpop.f32.mrb[0].mxu0
    %v2451 = vpop.f32.mrb[0].mxu0
    %2452 = vdwg.mxu0
    %v2454 = vsel %vm2406, %v2400, 0
    %v2457 = vsel %vm2353, %v2398, 0
    %2459 = vmatprep.subr.bf16.mxu0 0
    %2460 = vmatpush1.bf16.msra.mxu0 %v2457
    %2461 = vmatprep.subr.bf16.mxu0 0
    %2462 = vmatpush1.bf16.msra.mxu0 0
    %2463 = vmatprep.subr.bf16.mxu0 0
    %2464 = vmatpush1.bf16.msra.mxu0 0
    %2465 = vmatprep.subr.bf16.mxu0 0
    %2466 = vmatpush1.bf16.msra.mxu0 0
    %2467 = vmatprep.subr.bf16.mxu0 0
    %2468 = vmatpush1.bf16.msra.mxu0 0
    %2469 = vmatprep.subr.bf16.mxu0 0
    %2470 = vmatpush1.bf16.msra.mxu0 0
    %2471 = vmatprep.subr.bf16.mxu0 0
    %2472 = vmatpush1.bf16.msra.mxu0 0
    %2473 = vmatprep.subr.bf16.mxu0 0
    %2474 = vmatpush1.bf16.msra.mxu0 0
    %2475 = vmatprep.subr.bf16.mxu0 0
    %2476 = vmatpush1.bf16.msra.mxu0 0
    %2477 = vmatprep.subr.bf16.mxu0 0
    %2478 = vmatpush1.bf16.msra.mxu0 0
    %2479 = vmatprep.subr.bf16.mxu0 0
    %2480 = vmatpush1.bf16.msra.mxu0 0
    %2481 = vmatprep.subr.bf16.mxu0 0
    %2482 = vmatpush1.bf16.msra.mxu0 0
    %2483 = vmatprep.subr.bf16.mxu0 0
    %2484 = vmatpush1.bf16.msra.mxu0 0
    %2485 = vmatprep.subr.bf16.mxu0 0
    %2486 = vmatpush1.bf16.msra.mxu0 0
    %2487 = vmatprep.subr.bf16.mxu0 0
    %2488 = vmatpush1.bf16.msra.mxu0 0
    %2489 = vmatprep.subr.bf16.mxu0 0
    %2490 = vmatpush1.bf16.msra.mxu0 0
    %2491 = vmatprep.mubr.bf16.mxu0 0
    %2492 = vmatmul.mubr.bf16.gmra.mrb[0].mxu0 %v2454
    %v2493 = vpop.f32.mrb[0].mxu0
    %v2494 = vadd.f32 %v2448, %v2493
    %v2495 = vpop.f32.mrb[0].mxu0
    %v2496 = vpop.f32.mrb[0].mxu0
    %v2497 = vpop.f32.mrb[0].mxu0
    %2498 = vdwg.mxu0
    %v2499 = vld [vmem:[%s3 + $0x8] sm:$0x1]
    %v2500 = vlaneseq
    %v2501 = vshrl.u32 %v2500, 7
    %v2502 = vsub.s32 0, %v2501
    %v2503 = vrot.slane %v2499, %v2502
    %v2504 = vadd.f32 %v2494, %v2503
    %v2505 = vtanh.pop %v2504
    %vm2506 = vcmask 25600
    %2507 = vst.msk [vmem:[#allocation6] sm:$0x3] %vm2506, %v2505
    // Predicated region
    $region18: #{forward.1} parent=1 // pred_check
      _
    $region19: #{forward.1} parent=1 // pred_check_branch
      %2509 = sbr.rel (0) target = $region21
    $region20: #{forward.1} parent=1 // pred_region
      %s2511 = ssub.s32 32, 32
      %2512 = vsyncadd [#allocation7], %s2511
      %s2514 = sshll.u32 [#allocation6], 4
      %s2515 = int_to_ptr.vmem [resolvable:$true] %s2514
      %2517 = dma.vmem_to_hbm [thread:$0]  %s2515, 32, %s4, [#allocation7]
    $region21: #{forward.1} parent=1 // pred_fallthru
      _
    // Predicated region
    $region22: #{forward.1} parent=1 // pred_check
      _
    $region23: #{forward.1} parent=1 // pred_check_branch
      %2519 = sbr.rel (0) target = $region25
    $region24: #{forward.1} parent=1 // pred_region
      %2520 = dma.done [#allocation7], 32
    $region25: #{forward.1} parent=1 // pred_fallthru
      _
    %2521 = vsyncpa [#allocation7], 1

</llo_original>
